<compile_context>
chip_gen: v7x
topology: tpu7x:2x2x1
jax: 0.10.0
libtpu: 0.0.40
codegen_flags: <defaults>
</compile_context>

<pallas_src>
import functools

import jax
import jax.numpy as jnp
from jax import lax
from jax.experimental import pallas as pl
from jax.experimental.pallas import tpu as pltpu


NEG_SLOPE = 0.2
BN_EPS = 1e-5


def _round_up(x, m):
    return (x + m - 1) // m * m


# ----------------------------------------------------------------------------
# Kernel A: tiled matmul (+ bias) (+ LeakyReLU) (+ BN partial statistics)
# ----------------------------------------------------------------------------
def _make_matmul_kernel(nk, use_bias, fuse_act, compute_stats):
    """grid = (M_tiles, K_tiles); f32 accumulator scratch, epilogue on last k."""

    def step(p_ref, w_ref, b_ref, y_ref, stats_ref, acc_ref):
        k = pl.program_id(1)

        @pl.when(k == 0)
        def _():
            acc_ref[...] = jnp.zeros_like(acc_ref)

        acc_ref[...] += jnp.dot(p_ref[...], w_ref[...],
                                preferred_element_type=jnp.float32)

        @pl.when(k == nk - 1)
        def _():
            y = acc_ref[...]
            if use_bias:
                y = y + b_ref[...]
            if compute_stats:
                # Per-M-tile partials for two-pass BatchNorm (padded rows of
                # the patch matrix are zero and bias is absent on BN layers,
                # so they contribute nothing).
                s = jnp.sum(y, axis=0, keepdims=True)          # (1, C)
                ss = jnp.sum(y * y, axis=0, keepdims=True)     # (1, C)
                row = lax.broadcasted_iota(jnp.int32, stats_ref.shape, 0)
                stats_ref[...] = jnp.where(row == 0, s,
                                           jnp.where(row == 1, ss, 0.0))
            if fuse_act:
                y = jnp.where(y >= 0, y, NEG_SLOPE * y)
            y_ref[...] = y.astype(y_ref.dtype)

    if use_bias and compute_stats:
        def kernel(p, w, b, y, s, acc):
            step(p, w, b, y, s, acc)
    elif use_bias:
        def kernel(p, w, b, y, acc):
            step(p, w, b, y, None, acc)
    elif compute_stats:
        def kernel(p, w, y, s, acc):
            step(p, w, None, y, s, acc)
    else:
        def kernel(p, w, y, acc):
            step(p, w, None, y, None, acc)
    return kernel


def _fused_conv_matmul(patches, w_mat, bias, *, use_bias, fuse_act,
                       compute_stats, out_dtype, tm, tk):
    m_pad, k_dim = patches.shape
    cp = w_mat.shape[1]
    nm, nk = m_pad // tm, k_dim // tk
    kernel = _make_matmul_kernel(nk, use_bias, fuse_act, compute_stats)

    in_specs = [
        pl.BlockSpec((tm, tk), lambda i, k: (i, k)),      # patch tile
        pl.BlockSpec((tk, cp), lambda i, k: (k, 0)),      # weight tile
    ]
    args = [patches, w_mat]
    if use_bias:
        in_specs.append(pl.BlockSpec((1, cp), lambda i, k: (0, 0)))
        args.append(bias)

    y_shape = jax.ShapeDtypeStruct((m_pad, cp), out_dtype)
    y_spec = pl.BlockSpec((tm, cp), lambda i, k: (i, 0))
    if compute_stats:
        out_shape = (y_shape, jax.ShapeDtypeStruct((nm * 8, cp), jnp.float32))
        out_specs = (y_spec, pl.BlockSpec((8, cp), lambda i, k: (i, 0)))
    else:
        out_shape = y_shape
        out_specs = y_spec

    res = pl.pallas_call(
        kernel,
        out_shape=out_shape,
        grid=(nm, nk),
        in_specs=in_specs,
        out_specs=out_specs,
        scratch_shapes=[pltpu.VMEM((tm, cp), jnp.float32)],
        compiler_params=pltpu.CompilerParams(
            dimension_semantics=("parallel", "arbitrary")),
    )(*args)

    if compute_stats:
        return res[0], res[1]
    return res, None


# ----------------------------------------------------------------------------
# Kernel B: BatchNorm normalization + LeakyReLU (second BN pass, tiled over M)
# ----------------------------------------------------------------------------
def _bn_act_kernel(y_ref, mean_ref, istd_ref, o_ref):
    y = (y_ref[...] - mean_ref[...]) * istd_ref[...]
    o_ref[...] = jnp.where(y >= 0, y, NEG_SLOPE * y).astype(o_ref.dtype)


def _bn_act(y, mean, istd, *, tm, out_dtype):
    m_pad, cp = y.shape
    nm = m_pad // tm
    return pl.pallas_call(
        _bn_act_kernel,
        out_shape=jax.ShapeDtypeStruct((m_pad, cp), out_dtype),
        grid=(nm,),
        in_specs=[pl.BlockSpec((tm, cp), lambda i: (i, 0)),
                  pl.BlockSpec((1, cp), lambda i: (0, 0)),
                  pl.BlockSpec((1, cp), lambda i: (0, 0))],
        out_specs=pl.BlockSpec((tm, cp), lambda i: (i, 0)),
        compiler_params=pltpu.CompilerParams(
            dimension_semantics=("parallel",)),
    )(y, mean, istd)


# ----------------------------------------------------------------------------
# Glue: im2col (plain JAX, static slicing) and parameter construction
# ----------------------------------------------------------------------------
def _im2col(x_nhwc, kh, kw, stride, pad):
    n, h, w, c = x_nhwc.shape
    xp = jnp.pad(x_nhwc, ((0, 0), (pad, pad), (pad, pad), (0, 0)))
    ho = (h + 2 * pad - kh) // stride + 1
    wo = (w + 2 * pad - kw) // stride + 1
    cols = []
    for i in range(kh):
        for j in range(kw):
            cols.append(xp[:, i:i + (ho - 1) * stride + 1:stride,
                              j:j + (wo - 1) * stride + 1:stride, :])
    p = jnp.stack(cols, axis=3)                    # (N, Ho, Wo, kh*kw, C)
    return p.reshape(n * ho * wo, kh * kw * c), ho, wo


def init_patchgan_params(key, input_nc, ndf=64, n_layers=3):
    """Mirror the PyTorch constructor (norm_layer=BatchNorm2d -> conv bias
    disabled on normalized layers) with the default Conv2d init."""
    kw = 4
    layer_defs = [dict(cin=input_nc, cout=ndf, stride=2, use_bias=True,
                       bn=False, act=True)]
    nf_mult, nf_mult_prev = 1, 1
    for n in range(1, n_layers):
        nf_mult_prev, nf_mult = nf_mult, min(2 ** n, 8)
        layer_defs.append(dict(cin=ndf * nf_mult_prev, cout=ndf * nf_mult,
                               stride=2, use_bias=False, bn=True, act=True))
    nf_mult_prev, nf_mult = nf_mult, min(2 ** n_layers, 8)
    layer_defs.append(dict(cin=ndf * nf_mult_prev, cout=ndf * nf_mult,
                           stride=1, use_bias=False, bn=True, act=True))
    layer_defs.append(dict(cin=ndf * nf_mult, cout=1, stride=1, use_bias=True,
                           bn=False, act=False))

    params = []
    for d in layer_defs:
        key, k_w, k_b = jax.random.split(key, 3)
        fan_in = d["cin"] * kw * kw
        bound = 1.0 / (fan_in ** 0.5)
        w = jax.random.uniform(k_w, (d["cout"], d["cin"], kw, kw),
                               jnp.float32, -bound, bound)
        if d["use_bias"]:
            b = jax.random.uniform(k_b, (d["cout"],), jnp.float32,
                                   -bound, bound)
        else:
            b = jnp.zeros((d["cout"],), jnp.float32)
        params.append(dict(w=w, b=b, stride=d["stride"], bn=d["bn"],
                           act=d["act"], use_bias=d["use_bias"]))
    return params


def patchgan_forward(params, x_nchw, *, tm_max=256, tk_max=512):
    """Pallas forward. Input NCHW (PyTorch convention), output NCHW.

    Tile defaults target v6e/v7x (256-wide MXU, tk multiple of 256/512); on
    v5e prefer tk_max=128 to match its 128-wide MXU / smaller scoped VMEM.
    """
    x = jnp.transpose(x_nchw, (0, 2, 3, 1)).astype(jnp.bfloat16)   # NHWC bf16
    n_batch = x.shape[0]
    n_total = len(params)

    for li, layer in enumerate(params):
        w, b = layer["w"], layer["b"]
        cout, cin, kh, kw = w.shape
        use_bn, use_act, use_bias = layer["bn"], layer["act"], layer["use_bias"]
        is_last = li == n_total - 1
        # PatchGAN always pairs BatchNorm with LeakyReLU; kernel B fuses both.
        assert use_act or not use_bn

        cin_p = _round_up(cin, 8)        # => K = 16*cin_p is a multiple of 128
        cout_p = _round_up(cout, 128)    # lane-dense kernel outputs

        # Feature map: slice to the real Cin, zero-pad channels to cin_p.
        xc = x[..., :cin]
        if cin_p > cin:
            xc = jnp.pad(xc, ((0, 0), (0, 0), (0, 0), (0, cin_p - cin)))

        # TODO(synk): fuse im2col into kernel A (per-tap matmul accumulation
        # from a pl.ANY input) to remove the kh*kw HBM duplication.
        patches, ho, wo = _im2col(xc, kh, kw, layer["stride"], pad=1)
        m_real, k_dim = patches.shape

        tm = min(tm_max, _round_up(m_real, 8))
        m_pad = _round_up(m_real, tm)
        if m_pad > m_real:
            patches = jnp.pad(patches, ((0, m_pad - m_real), (0, 0)))
        tk = min(tk_max, k_dim)

        # Weights: (Cout, Cin, kh, kw) -> (kh*kw*cin_p, cout_p) in bf16,
        # K ordering (tap-major, channel-minor) matches the im2col layout.
        wp = jnp.pad(w, ((0, 0), (0, cin_p - cin), (0, 0), (0, 0)))
        w_mat = jnp.transpose(wp, (2, 3, 1, 0)).reshape(k_dim, cout)
        if cout_p > cout:
            w_mat = jnp.pad(w_mat, ((0, 0), (0, cout_p - cout)))
        w_mat = w_mat.astype(jnp.bfloat16)
        bias = jnp.pad(b, (0, cout_p - cout)).reshape(1, cout_p)
        bias = bias.astype(jnp.float32)

        out_dtype = jnp.float32 if (use_bn or is_last) else jnp.bfloat16
        y, stats = _fused_conv_matmul(
            patches, w_mat, bias,
            use_bias=use_bias, fuse_act=(use_act and not use_bn),
            compute_stats=use_bn, out_dtype=out_dtype, tm=tm, tk=tk)

        if use_bn:
            nm = m_pad // tm
            st = stats.reshape(nm, 8, cout_p)
            ch_sum = jnp.sum(st[:, 0, :], axis=0)
            ch_sq = jnp.sum(st[:, 1, :], axis=0)
            mean = ch_sum / m_real                         # biased batch stats
            var = jnp.maximum(ch_sq / m_real - mean * mean, 0.0)
            istd = lax.rsqrt(var + BN_EPS)
            y = _bn_act(y, mean.reshape(1, cout_p), istd.reshape(1, cout_p),
                        tm=tm, out_dtype=jnp.bfloat16)

        x = y[:m_real].reshape(n_batch, ho, wo, cout_p)

    out = x[..., :params[-1]["w"].shape[0]]                # drop Cout padding
    return jnp.transpose(out, (0, 3, 1, 2)).astype(jnp.float32)   # -> NCHW


# ----------------------------------------------------------------------------
# Pure-JAX reference (same semantics & same bf16 operand rounding)
# ----------------------------------------------------------------------------
def reference_forward(params, x_nchw, eps=BN_EPS, neg=NEG_SLOPE):
    x = x_nchw
    for layer in params:
        w, b, s = layer["w"], layer["b"], layer["stride"]
        y = lax.conv_general_dilated(
            x.astype(jnp.bfloat16), w.astype(jnp.bfloat16), (s, s),
            [(1, 1), (1, 1)], dimension_numbers=("NCHW", "OIHW", "NCHW"),
            preferred_element_type=jnp.float32)
        y = y + b.reshape(1, -1, 1, 1)
        if layer["bn"]:
            mean = jnp.mean(y, axis=(0, 2, 3), keepdims=True)
            var = jnp.mean(jnp.square(y - mean), axis=(0, 2, 3), keepdims=True)
            y = (y - mean) * lax.rsqrt(var + eps)
        if layer["act"]:
            y = jnp.where(y >= 0, y, neg * y)
        x = y
    return x


if __name__ == "__main__":
    key = jax.random.PRNGKey(0)
    k_param, k_x = jax.random.split(key)

    input_nc, ndf, n_layers = 4, 32, 3
    params = init_patchgan_params(k_param, input_nc, ndf=ndf, n_layers=n_layers)

    # 32x32 input -> 5 convs -> final 2x2 patch map.
    x = jax.random.normal(k_x, (2, input_nc, 32, 32), jnp.float32)

    fwd = jax.jit(functools.partial(patchgan_forward, params))
    out = jax.block_until_ready(fwd(x))

    ref = jax.block_until_ready(reference_forward(params, x))
    assert out.shape == ref.shape == (2, 1, 2, 2), (out.shape, ref.shape)
    max_err = float(jnp.max(jnp.abs(out - ref)))
    assert jnp.allclose(out, ref, atol=5e-3, rtol=5e-3), max_err

    print("KERNEL_OK")
</pallas_src>

<mosaic_0001>
module attributes {stable_mosaic.version = 11 : i64} {
  func.func @kernel(%arg0: i32, %arg1: i32, %arg2: memref<256x128xbf16, #tpu.memory_space<vmem>>, %arg3: memref<128x128xbf16, #tpu.memory_space<vmem>>, %arg4: memref<1x128xf32, #tpu.memory_space<vmem>>, %arg5: memref<256x128xbf16, #tpu.memory_space<vmem>>, %arg6: memref<256x128xf32, #tpu.memory_space<vmem>>) attributes {dimension_semantics = [#tpu.dimension_semantics<parallel>, #tpu.dimension_semantics<arbitrary>], iteration_bounds = array<i64: 2, 1>, scalar_prefetch = 0 : i64, scratch_operands = 1 : i64, tpu.core_type = #tpu.core_type<tc>, window_params = [{transform_indices = @transform_0, window_bounds = array<i64: 256, 128>}, {transform_indices = @transform_1, window_bounds = array<i64: 128, 128>}, {pipeline_mode = #tpu.pipeline_mode<synchronous>, transform_indices = @transform_2, window_bounds = array<i64: 1, 128>}, {transform_indices = @transform_3, window_bounds = array<i64: 256, 128>}]} {
    %c0_i32 = arith.constant 0 : i32
    %0 = arith.cmpi eq, %arg1, %c0_i32 : i32
    %1 = arith.extui %0 : i1 to i32
    %c0_i32_0 = arith.constant 0 : i32
    %2 = arith.cmpi ne, %1, %c0_i32_0 : i32
    scf.if %2 {
      %cst_10 = arith.constant 0.000000e+00 : f32
      %12 = vector.broadcast %cst_10 : f32 to vector<256x128xf32>
      %c0_11 = arith.constant 0 : index
      %c0_12 = arith.constant 0 : index
      %13 = vector.load %arg6[%c0_11, %c0_12] : memref<256x128xf32, #tpu.memory_space<vmem>>, vector<256x128xf32>
      tpu.vector_store %arg6[%c0_11, %c0_12], %12 {strides = array<i32>} : memref<256x128xf32, #tpu.memory_space<vmem>>, vector<256x128xf32>,
    } else {
    }
    %c0 = arith.constant 0 : index
    %c0_1 = arith.constant 0 : index
    %3 = vector.load %arg6[%c0, %c0_1] : memref<256x128xf32, #tpu.memory_space<vmem>>, vector<256x128xf32>
    %c0_2 = arith.constant 0 : index
    %c0_3 = arith.constant 0 : index
    %4 = vector.load %arg2[%c0_2, %c0_3] : memref<256x128xbf16, #tpu.memory_space<vmem>>, vector<256x128xbf16>
    %c0_4 = arith.constant 0 : index
    %c0_5 = arith.constant 0 : index
    %5 = vector.load %arg3[%c0_4, %c0_5] : memref<128x128xbf16, #tpu.memory_space<vmem>>, vector<128x128xbf16>
    %cst = arith.constant dense<0.000000e+00> : vector<256x128xf32>
    %6 = tpu.matmul %4, %5, %cst {dimension_numbers = #tpu.dot_dimension_numbers<[1], [0], [0], [1], [0, 0, 1, 1], [], []>} : vector<256x128xbf16>, vector<128x128xbf16>, vector<256x128xf32> -> vector<256x128xf32>
    %7 = arith.addf %3, %6 : vector<256x128xf32>
    %c0_6 = arith.constant 0 : index
    %c0_7 = arith.constant 0 : index
    %8 = vector.load %arg6[%c0_6, %c0_7] : memref<256x128xf32, #tpu.memory_space<vmem>>, vector<256x128xf32>
    tpu.vector_store %arg6[%c0_6, %c0_7], %7 {strides = array<i32>} : memref<256x128xf32, #tpu.memory_space<vmem>>, vector<256x128xf32>,
    %c0_i32_8 = arith.constant 0 : i32
    %9 = arith.cmpi eq, %arg1, %c0_i32_8 : i32
    %10 = arith.extui %9 : i1 to i32
    %c0_i32_9 = arith.constant 0 : i32
    %11 = arith.cmpi ne, %10, %c0_i32_9 : i32
    scf.if %11 {
      %c0_10 = arith.constant 0 : index
      %c0_11 = arith.constant 0 : index
      %12 = vector.load %arg6[%c0_10, %c0_11] : memref<256x128xf32, #tpu.memory_space<vmem>>, vector<256x128xf32>
      %c0_12 = arith.constant 0 : index
      %c0_13 = arith.constant 0 : index
      %13 = vector.load %arg4[%c0_12, %c0_13] : memref<1x128xf32, #tpu.memory_space<vmem>>, vector<1x128xf32>
      %14 = vector.broadcast %13 : vector<1x128xf32> to vector<256x128xf32>
      %15 = arith.addf %12, %14 : vector<256x128xf32>
      %cst_14 = arith.constant 0.000000e+00 : f32
      %16 = vector.broadcast %cst_14 : f32 to vector<256x128xf32>
      %17 = arith.cmpf oge, %15, %16 : vector<256x128xf32>
      %cst_15 = arith.constant 2.000000e-01 : f32
      %18 = vector.broadcast %cst_15 : f32 to vector<256x128xf32>
      %19 = arith.mulf %18, %15 : vector<256x128xf32>
      %20 = arith.select %17, %15, %19 : vector<256x128xi1>, vector<256x128xf32>
      %21 = arith.truncf %20 : vector<256x128xf32> to vector<256x128xbf16>
      %c0_16 = arith.constant 0 : index
      %c0_17 = arith.constant 0 : index
      %22 = vector.load %arg5[%c0_16, %c0_17] : memref<256x128xbf16, #tpu.memory_space<vmem>>, vector<256x128xbf16>
      tpu.vector_store %arg5[%c0_16, %c0_17], %21 {strides = array<i32>} : memref<256x128xbf16, #tpu.memory_space<vmem>>, vector<256x128xbf16>,
    } else {
    }
    return
  }
  func.func @transform_0(%arg0: i32, %arg1: i32) -> (i32, i32) {
    %c0_i32 = arith.constant 0 : i32
    return %arg0, %arg1 : i32, i32
  }
  func.func @transform_1(%arg0: i32, %arg1: i32) -> (i32, i32) {
    %c0_i32 = arith.constant 0 : i32
    %c0_i32_0 = arith.constant 0 : i32
    return %arg1, %c0_i32 : i32, i32
  }
  func.func @transform_2(%arg0: i32, %arg1: i32) -> (i32, i32) {
    %c0_i32 = arith.constant 0 : i32
    %c0_i32_0 = arith.constant 0 : i32
    %c0_i32_1 = arith.constant 0 : i32
    return %c0_i32, %c0_i32_0 : i32, i32
  }
  func.func @transform_3(%arg0: i32, %arg1: i32) -> (i32, i32) {
    %c0_i32 = arith.constant 0 : i32
    %c0_i32_0 = arith.constant 0 : i32
    return %arg0, %c0_i32 : i32, i32
  }
}

module attributes {stable_mosaic.version = 11 : i64} {
  func.func @kernel(%arg0: i32, %arg1: i32, %arg2: memref<128x512xbf16, #tpu.memory_space<vmem>>, %arg3: memref<512x128xbf16, #tpu.memory_space<vmem>>, %arg4: memref<128x128xf32, #tpu.memory_space<vmem>>, %arg5: memref<8x128xf32, #tpu.memory_space<vmem>>, %arg6: memref<128x128xf32, #tpu.memory_space<vmem>>) attributes {dimension_semantics = [#tpu.dimension_semantics<parallel>, #tpu.dimension_semantics<arbitrary>], iteration_bounds = array<i64: 1, 1>, scalar_prefetch = 0 : i64, scratch_operands = 1 : i64, tpu.core_type = #tpu.core_type<tc>, window_params = [{transform_indices = @transform_0, window_bounds = array<i64: 128, 512>}, {transform_indices = @transform_1, window_bounds = array<i64: 512, 128>}, {transform_indices = @transform_2, window_bounds = array<i64: 128, 128>}, {transform_indices = @transform_3, window_bounds = array<i64: 8, 128>}]} {
    %c0_i32 = arith.constant 0 : i32
    %0 = arith.cmpi eq, %arg1, %c0_i32 : i32
    %1 = arith.extui %0 : i1 to i32
    %c0_i32_0 = arith.constant 0 : i32
    %2 = arith.cmpi ne, %1, %c0_i32_0 : i32
    scf.if %2 {
      %cst_10 = arith.constant 0.000000e+00 : f32
      %12 = vector.broadcast %cst_10 : f32 to vector<128x128xf32>
      %c0_11 = arith.constant 0 : index
      %c0_12 = arith.constant 0 : index
      %13 = vector.load %arg6[%c0_11, %c0_12] : memref<128x128xf32, #tpu.memory_space<vmem>>, vector<128x128xf32>
      tpu.vector_store %arg6[%c0_11, %c0_12], %12 {strides = array<i32>} : memref<128x128xf32, #tpu.memory_space<vmem>>, vector<128x128xf32>,
    } else {
    }
    %c0 = arith.constant 0 : index
    %c0_1 = arith.constant 0 : index
    %3 = vector.load %arg6[%c0, %c0_1] : memref<128x128xf32, #tpu.memory_space<vmem>>, vector<128x128xf32>
    %c0_2 = arith.constant 0 : index
    %c0_3 = arith.constant 0 : index
    %4 = vector.load %arg2[%c0_2, %c0_3] : memref<128x512xbf16, #tpu.memory_space<vmem>>, vector<128x512xbf16>
    %c0_4 = arith.constant 0 : index
    %c0_5 = arith.constant 0 : index
    %5 = vector.load %arg3[%c0_4, %c0_5] : memref<512x128xbf16, #tpu.memory_space<vmem>>, vector<512x128xbf16>
    %cst = arith.constant dense<0.000000e+00> : vector<128x128xf32>
    %6 = tpu.matmul %4, %5, %cst {dimension_numbers = #tpu.dot_dimension_numbers<[1], [0], [0], [1], [0, 0, 1, 1], [], []>} : vector<128x512xbf16>, vector<512x128xbf16>, vector<128x128xf32> -> vector<128x128xf32>
    %7 = arith.addf %3, %6 : vector<128x128xf32>
    %c0_6 = arith.constant 0 : index
    %c0_7 = arith.constant 0 : index
    %8 = vector.load %arg6[%c0_6, %c0_7] : memref<128x128xf32, #tpu.memory_space<vmem>>, vector<128x128xf32>
    tpu.vector_store %arg6[%c0_6, %c0_7], %7 {strides = array<i32>} : memref<128x128xf32, #tpu.memory_space<vmem>>, vector<128x128xf32>,
    %c0_i32_8 = arith.constant 0 : i32
    %9 = arith.cmpi eq, %arg1, %c0_i32_8 : i32
    %10 = arith.extui %9 : i1 to i32
    %c0_i32_9 = arith.constant 0 : i32
    %11 = arith.cmpi ne, %10, %c0_i32_9 : i32
    scf.if %11 {
      %c0_10 = arith.constant 0 : index
      %c0_11 = arith.constant 0 : index
      %12 = vector.load %arg6[%c0_10, %c0_11] : memref<128x128xf32, #tpu.memory_space<vmem>>, vector<128x128xf32>
      %cst_12 = arith.constant dense<0.000000e+00> : vector<128xf32>
      %13 = vector.multi_reduction <add>, %12, %cst_12 [0] : vector<128x128xf32> to vector<128xf32>
      %14 = vector.shape_cast %13 : vector<128xf32> to vector<1x128xf32>
      %15 = arith.mulf %12, %12 : vector<128x128xf32>
      %cst_13 = arith.constant dense<0.000000e+00> : vector<128xf32>
      %16 = vector.multi_reduction <add>, %15, %cst_13 [0] : vector<128x128xf32> to vector<128xf32>
      %17 = vector.shape_cast %16 : vector<128xf32> to vector<1x128xf32>
      %18 = tpu.iota {dimensions = array<i32: 0>} : vector<8x128xi32>
      %c0_i32_14 = arith.constant 0 : i32
      %19 = vector.broadcast %c0_i32_14 : i32 to vector<8x128xi32>
      %20 = arith.cmpi eq, %18, %19 : vector<8x128xi32>
      %c1_i32 = arith.constant 1 : i32
      %21 = vector.broadcast %c1_i32 : i32 to vector<8x128xi32>
      %22 = arith.cmpi eq, %18, %21 : vector<8x128xi32>
      %cst_15 = arith.constant 0.000000e+00 : f32
      %23 = vector.shape_cast %17 : vector<1x128xf32> to vector<1x128xf32>
      %24 = vector.broadcast %23 : vector<1x128xf32> to vector<8x128xf32>
      %25 = vector.broadcast %cst_15 : f32 to vector<8x128xf32>
      %26 = arith.select %22, %24, %25 : vector<8x128xi1>, vector<8x128xf32>
      %27 = vector.shape_cast %14 : vector<1x128xf32> to vector<1x128xf32>
      %28 = vector.broadcast %27 : vector<1x128xf32> to vector<8x128xf32>
      %29 = arith.select %20, %28, %26 : vector<8x128xi1>, vector<8x128xf32>
      %c0_16 = arith.constant 0 : index
      %c0_17 = arith.constant 0 : index
      %30 = vector.load %arg5[%c0_16, %c0_17] : memref<8x128xf32, #tpu.memory_space<vmem>>, vector<8x128xf32>
      tpu.vector_store %arg5[%c0_16, %c0_17], %29 {strides = array<i32>} : memref<8x128xf32, #tpu.memory_space<vmem>>, vector<8x128xf32>,
      %c0_18 = arith.constant 0 : index
      %c0_19 = arith.constant 0 : index
      %31 = vector.load %arg4[%c0_18, %c0_19] : memref<128x128xf32, #tpu.memory_space<vmem>>, vector<128x128xf32>
      tpu.vector_store %arg4[%c0_18, %c0_19], %12 {strides = array<i32>} : memref<128x128xf32, #tpu.memory_space<vmem>>, vector<128x128xf32>,
    } else {
    }
    return
  }
  func.func @transform_0(%arg0: i32, %arg1: i32) -> (i32, i32) {
    %c0_i32 = arith.constant 0 : i32
    return %arg0, %arg1 : i32, i32
  }
  func.func @transform_1(%arg0: i32, %arg1: i32) -> (i32, i32) {
    %c0_i32 = arith.constant 0 : i32
    %c0_i32_0 = arith.constant 0 : i32
    return %arg1, %c0_i32 : i32, i32
  }
  func.func @transform_2(%arg0: i32, %arg1: i32) -> (i32, i32) {
    %c0_i32 = arith.constant 0 : i32
    %c0_i32_0 = arith.constant 0 : i32
    return %arg0, %c0_i32 : i32, i32
  }
  func.func @transform_3(%arg0: i32, %arg1: i32) -> (i32, i32) {
    %c0_i32 = arith.constant 0 : i32
    %c0_i32_0 = arith.constant 0 : i32
    return %arg0, %c0_i32 : i32, i32
  }
}

module attributes {stable_mosaic.version = 11 : i64} {
  func.func @_bn_act_kernel(%arg0: i32, %arg1: memref<128x128xf32, #tpu.memory_space<vmem>>, %arg2: memref<1x128xf32, #tpu.memory_space<vmem>>, %arg3: memref<1x128xf32, #tpu.memory_space<vmem>>, %arg4: memref<128x128xbf16, #tpu.memory_space<vmem>>) attributes {dimension_semantics = [#tpu.dimension_semantics<parallel>], iteration_bounds = array<i64: 1>, scalar_prefetch = 0 : i64, scratch_operands = 0 : i64, tpu.core_type = #tpu.core_type<tc>, window_params = [{transform_indices = @transform_0, window_bounds = array<i64: 128, 128>}, {pipeline_mode = #tpu.pipeline_mode<synchronous>, transform_indices = @transform_1, window_bounds = array<i64: 1, 128>}, {pipeline_mode = #tpu.pipeline_mode<synchronous>, transform_indices = @transform_2, window_bounds = array<i64: 1, 128>}, {transform_indices = @transform_3, window_bounds = array<i64: 128, 128>}]} {
    %c0 = arith.constant 0 : index
    %c0_0 = arith.constant 0 : index
    %0 = vector.load %arg1[%c0, %c0_0] : memref<128x128xf32, #tpu.memory_space<vmem>>, vector<128x128xf32>
    %c0_1 = arith.constant 0 : index
    %c0_2 = arith.constant 0 : index
    %1 = vector.load %arg2[%c0_1, %c0_2] : memref<1x128xf32, #tpu.memory_space<vmem>>, vector<1x128xf32>
    %2 = vector.broadcast %1 : vector<1x128xf32> to vector<128x128xf32>
    %3 = arith.subf %0, %2 : vector<128x128xf32>
    %c0_3 = arith.constant 0 : index
    %c0_4 = arith.constant 0 : index
    %4 = vector.load %arg3[%c0_3, %c0_4] : memref<1x128xf32, #tpu.memory_space<vmem>>, vector<1x128xf32>
    %5 = vector.broadcast %4 : vector<1x128xf32> to vector<128x128xf32>
    %6 = arith.mulf %3, %5 : vector<128x128xf32>
    %cst = arith.constant 0.000000e+00 : f32
    %7 = vector.broadcast %cst : f32 to vector<128x128xf32>
    %8 = arith.cmpf oge, %6, %7 : vector<128x128xf32>
    %cst_5 = arith.constant 2.000000e-01 : f32
    %9 = vector.broadcast %cst_5 : f32 to vector<128x128xf32>
    %10 = arith.mulf %9, %6 : vector<128x128xf32>
    %11 = arith.select %8, %6, %10 : vector<128x128xi1>, vector<128x128xf32>
    %12 = arith.truncf %11 : vector<128x128xf32> to vector<128x128xbf16>
    %c0_6 = arith.constant 0 : index
    %c0_7 = arith.constant 0 : index
    %13 = vector.load %arg4[%c0_6, %c0_7] : memref<128x128xbf16, #tpu.memory_space<vmem>>, vector<128x128xbf16>
    tpu.vector_store %arg4[%c0_6, %c0_7], %12 {strides = array<i32>} : memref<128x128xbf16, #tpu.memory_space<vmem>>, vector<128x128xbf16>,
    return
  }
  func.func @transform_0(%arg0: i32) -> (i32, i32) {
    %c0_i32 = arith.constant 0 : i32
    %c0_i32_0 = arith.constant 0 : i32
    return %arg0, %c0_i32 : i32, i32
  }
  func.func @transform_1(%arg0: i32) -> (i32, i32) {
    %c0_i32 = arith.constant 0 : i32
    %c0_i32_0 = arith.constant 0 : i32
    %c0_i32_1 = arith.constant 0 : i32
    return %c0_i32, %c0_i32_0 : i32, i32
  }
  func.func @transform_2(%arg0: i32) -> (i32, i32) {
    %c0_i32 = arith.constant 0 : i32
    %c0_i32_0 = arith.constant 0 : i32
    %c0_i32_1 = arith.constant 0 : i32
    return %c0_i32, %c0_i32_0 : i32, i32
  }
  func.func @transform_3(%arg0: i32) -> (i32, i32) {
    %c0_i32 = arith.constant 0 : i32
    %c0_i32_0 = arith.constant 0 : i32
    return %arg0, %c0_i32 : i32, i32
  }
}

module attributes {stable_mosaic.version = 11 : i64} {
  func.func @kernel(%arg0: i32, %arg1: i32, %arg2: memref<32x512xbf16, #tpu.memory_space<vmem>>, %arg3: memref<512x128xbf16, #tpu.memory_space<vmem>>, %arg4: memref<32x128xf32, #tpu.memory_space<vmem>>, %arg5: memref<8x128xf32, #tpu.memory_space<vmem>>, %arg6: memref<32x128xf32, #tpu.memory_space<vmem>>) attributes {dimension_semantics = [#tpu.dimension_semantics<parallel>, #tpu.dimension_semantics<arbitrary>], iteration_bounds = array<i64: 1, 2>, scalar_prefetch = 0 : i64, scratch_operands = 1 : i64, tpu.core_type = #tpu.core_type<tc>, window_params = [{transform_indices = @transform_0, window_bounds = array<i64: 32, 512>}, {transform_indices = @transform_1, window_bounds = array<i64: 512, 128>}, {transform_indices = @transform_2, window_bounds = array<i64: 32, 128>}, {transform_indices = @transform_3, window_bounds = array<i64: 8, 128>}]} {
    %c0_i32 = arith.constant 0 : i32
    %0 = arith.cmpi eq, %arg1, %c0_i32 : i32
    %1 = arith.extui %0 : i1 to i32
    %c0_i32_0 = arith.constant 0 : i32
    %2 = arith.cmpi ne, %1, %c0_i32_0 : i32
    scf.if %2 {
      %cst_9 = arith.constant 0.000000e+00 : f32
      %12 = vector.broadcast %cst_9 : f32 to vector<32x128xf32>
      %c0_10 = arith.constant 0 : index
      %c0_11 = arith.constant 0 : index
      %13 = vector.load %arg6[%c0_10, %c0_11] : memref<32x128xf32, #tpu.memory_space<vmem>>, vector<32x128xf32>
      tpu.vector_store %arg6[%c0_10, %c0_11], %12 {strides = array<i32>} : memref<32x128xf32, #tpu.memory_space<vmem>>, vector<32x128xf32>,
    } else {
    }
    %c0 = arith.constant 0 : index
    %c0_1 = arith.constant 0 : index
    %3 = vector.load %arg6[%c0, %c0_1] : memref<32x128xf32, #tpu.memory_space<vmem>>, vector<32x128xf32>
    %c0_2 = arith.constant 0 : index
    %c0_3 = arith.constant 0 : index
    %4 = vector.load %arg2[%c0_2, %c0_3] : memref<32x512xbf16, #tpu.memory_space<vmem>>, vector<32x512xbf16>
    %c0_4 = arith.constant 0 : index
    %c0_5 = arith.constant 0 : index
    %5 = vector.load %arg3[%c0_4, %c0_5] : memref<512x128xbf16, #tpu.memory_space<vmem>>, vector<512x128xbf16>
    %cst = arith.constant dense<0.000000e+00> : vector<32x128xf32>
    %6 = tpu.matmul %4, %5, %cst {dimension_numbers = #tpu.dot_dimension_numbers<[1], [0], [0], [1], [0, 0, 1, 1], [], []>} : vector<32x512xbf16>, vector<512x128xbf16>, vector<32x128xf32> -> vector<32x128xf32>
    %7 = arith.addf %3, %6 : vector<32x128xf32>
    %c0_6 = arith.constant 0 : index
    %c0_7 = arith.constant 0 : index
    %8 = vector.load %arg6[%c0_6, %c0_7] : memref<32x128xf32, #tpu.memory_space<vmem>>, vector<32x128xf32>
    tpu.vector_store %arg6[%c0_6, %c0_7], %7 {strides = array<i32>} : memref<32x128xf32, #tpu.memory_space<vmem>>, vector<32x128xf32>,
    %c1_i32 = arith.constant 1 : i32
    %9 = arith.cmpi eq, %arg1, %c1_i32 : i32
    %10 = arith.extui %9 : i1 to i32
    %c0_i32_8 = arith.constant 0 : i32
    %11 = arith.cmpi ne, %10, %c0_i32_8 : i32
    scf.if %11 {
      %c0_9 = arith.constant 0 : index
      %c0_10 = arith.constant 0 : index
      %12 = vector.load %arg6[%c0_9, %c0_10] : memref<32x128xf32, #tpu.memory_space<vmem>>, vector<32x128xf32>
      %cst_11 = arith.constant dense<0.000000e+00> : vector<128xf32>
      %13 = vector.multi_reduction <add>, %12, %cst_11 [0] : vector<32x128xf32> to vector<128xf32>
      %14 = vector.shape_cast %13 : vector<128xf32> to vector<1x128xf32>
      %15 = arith.mulf %12, %12 : vector<32x128xf32>
      %cst_12 = arith.constant dense<0.000000e+00> : vector<128xf32>
      %16 = vector.multi_reduction <add>, %15, %cst_12 [0] : vector<32x128xf32> to vector<128xf32>
      %17 = vector.shape_cast %16 : vector<128xf32> to vector<1x128xf32>
      %18 = tpu.iota {dimensions = array<i32: 0>} : vector<8x128xi32>
      %c0_i32_13 = arith.constant 0 : i32
      %19 = vector.broadcast %c0_i32_13 : i32 to vector<8x128xi32>
      %20 = arith.cmpi eq, %18, %19 : vector<8x128xi32>
      %c1_i32_14 = arith.constant 1 : i32
      %21 = vector.broadcast %c1_i32_14 : i32 to vector<8x128xi32>
      %22 = arith.cmpi eq, %18, %21 : vector<8x128xi32>
      %cst_15 = arith.constant 0.000000e+00 : f32
      %23 = vector.shape_cast %17 : vector<1x128xf32> to vector<1x128xf32>
      %24 = vector.broadcast %23 : vector<1x128xf32> to vector<8x128xf32>
      %25 = vector.broadcast %cst_15 : f32 to vector<8x128xf32>
      %26 = arith.select %22, %24, %25 : vector<8x128xi1>, vector<8x128xf32>
      %27 = vector.shape_cast %14 : vector<1x128xf32> to vector<1x128xf32>
      %28 = vector.broadcast %27 : vector<1x128xf32> to vector<8x128xf32>
      %29 = arith.select %20, %28, %26 : vector<8x128xi1>, vector<8x128xf32>
      %c0_16 = arith.constant 0 : index
      %c0_17 = arith.constant 0 : index
      %30 = vector.load %arg5[%c0_16, %c0_17] : memref<8x128xf32, #tpu.memory_space<vmem>>, vector<8x128xf32>
      tpu.vector_store %arg5[%c0_16, %c0_17], %29 {strides = array<i32>} : memref<8x128xf32, #tpu.memory_space<vmem>>, vector<8x128xf32>,
      %c0_18 = arith.constant 0 : index
      %c0_19 = arith.constant 0 : index
      %31 = vector.load %arg4[%c0_18, %c0_19] : memref<32x128xf32, #tpu.memory_space<vmem>>, vector<32x128xf32>
      tpu.vector_store %arg4[%c0_18, %c0_19], %12 {strides = array<i32>} : memref<32x128xf32, #tpu.memory_space<vmem>>, vector<32x128xf32>,
    } else {
    }
    return
  }
  func.func @transform_0(%arg0: i32, %arg1: i32) -> (i32, i32) {
    %c0_i32 = arith.constant 0 : i32
    return %arg0, %arg1 : i32, i32
  }
  func.func @transform_1(%arg0: i32, %arg1: i32) -> (i32, i32) {
    %c0_i32 = arith.constant 0 : i32
    %c0_i32_0 = arith.constant 0 : i32
    return %arg1, %c0_i32 : i32, i32
  }
  func.func @transform_2(%arg0: i32, %arg1: i32) -> (i32, i32) {
    %c0_i32 = arith.constant 0 : i32
    %c0_i32_0 = arith.constant 0 : i32
    return %arg0, %c0_i32 : i32, i32
  }
  func.func @transform_3(%arg0: i32, %arg1: i32) -> (i32, i32) {
    %c0_i32 = arith.constant 0 : i32
    %c0_i32_0 = arith.constant 0 : i32
    return %arg0, %c0_i32 : i32, i32
  }
}

module attributes {stable_mosaic.version = 11 : i64} {
  func.func @_bn_act_kernel(%arg0: i32, %arg1: memref<32x128xf32, #tpu.memory_space<vmem>>, %arg2: memref<1x128xf32, #tpu.memory_space<vmem>>, %arg3: memref<1x128xf32, #tpu.memory_space<vmem>>, %arg4: memref<32x128xbf16, #tpu.memory_space<vmem>>) attributes {dimension_semantics = [#tpu.dimension_semantics<parallel>], iteration_bounds = array<i64: 1>, scalar_prefetch = 0 : i64, scratch_operands = 0 : i64, tpu.core_type = #tpu.core_type<tc>, window_params = [{transform_indices = @transform_0, window_bounds = array<i64: 32, 128>}, {pipeline_mode = #tpu.pipeline_mode<synchronous>, transform_indices = @transform_1, window_bounds = array<i64: 1, 128>}, {pipeline_mode = #tpu.pipeline_mode<synchronous>, transform_indices = @transform_2, window_bounds = array<i64: 1, 128>}, {transform_indices = @transform_3, window_bounds = array<i64: 32, 128>}]} {
    %c0 = arith.constant 0 : index
    %c0_0 = arith.constant 0 : index
    %0 = vector.load %arg1[%c0, %c0_0] : memref<32x128xf32, #tpu.memory_space<vmem>>, vector<32x128xf32>
    %c0_1 = arith.constant 0 : index
    %c0_2 = arith.constant 0 : index
    %1 = vector.load %arg2[%c0_1, %c0_2] : memref<1x128xf32, #tpu.memory_space<vmem>>, vector<1x128xf32>
    %2 = vector.broadcast %1 : vector<1x128xf32> to vector<32x128xf32>
    %3 = arith.subf %0, %2 : vector<32x128xf32>
    %c0_3 = arith.constant 0 : index
    %c0_4 = arith.constant 0 : index
    %4 = vector.load %arg3[%c0_3, %c0_4] : memref<1x128xf32, #tpu.memory_space<vmem>>, vector<1x128xf32>
    %5 = vector.broadcast %4 : vector<1x128xf32> to vector<32x128xf32>
    %6 = arith.mulf %3, %5 : vector<32x128xf32>
    %cst = arith.constant 0.000000e+00 : f32
    %7 = vector.broadcast %cst : f32 to vector<32x128xf32>
    %8 = arith.cmpf oge, %6, %7 : vector<32x128xf32>
    %cst_5 = arith.constant 2.000000e-01 : f32
    %9 = vector.broadcast %cst_5 : f32 to vector<32x128xf32>
    %10 = arith.mulf %9, %6 : vector<32x128xf32>
    %11 = arith.select %8, %6, %10 : vector<32x128xi1>, vector<32x128xf32>
    %12 = arith.truncf %11 : vector<32x128xf32> to vector<32x128xbf16>
    %c0_6 = arith.constant 0 : index
    %c0_7 = arith.constant 0 : index
    %13 = vector.load %arg4[%c0_6, %c0_7] : memref<32x128xbf16, #tpu.memory_space<vmem>>, vector<32x128xbf16>
    tpu.vector_store %arg4[%c0_6, %c0_7], %12 {strides = array<i32>} : memref<32x128xbf16, #tpu.memory_space<vmem>>, vector<32x128xbf16>,
    return
  }
  func.func @transform_0(%arg0: i32) -> (i32, i32) {
    %c0_i32 = arith.constant 0 : i32
    %c0_i32_0 = arith.constant 0 : i32
    return %arg0, %c0_i32 : i32, i32
  }
  func.func @transform_1(%arg0: i32) -> (i32, i32) {
    %c0_i32 = arith.constant 0 : i32
    %c0_i32_0 = arith.constant 0 : i32
    %c0_i32_1 = arith.constant 0 : i32
    return %c0_i32, %c0_i32_0 : i32, i32
  }
  func.func @transform_2(%arg0: i32) -> (i32, i32) {
    %c0_i32 = arith.constant 0 : i32
    %c0_i32_0 = arith.constant 0 : i32
    %c0_i32_1 = arith.constant 0 : i32
    return %c0_i32, %c0_i32_0 : i32, i32
  }
  func.func @transform_3(%arg0: i32) -> (i32, i32) {
    %c0_i32 = arith.constant 0 : i32
    %c0_i32_0 = arith.constant 0 : i32
    return %arg0, %c0_i32 : i32, i32
  }
}

module attributes {stable_mosaic.version = 11 : i64} {
  func.func @kernel(%arg0: i32, %arg1: i32, %arg2: memref<24x512xbf16, #tpu.memory_space<vmem>>, %arg3: memref<512x256xbf16, #tpu.memory_space<vmem>>, %arg4: memref<24x256xf32, #tpu.memory_space<vmem>>, %arg5: memref<8x256xf32, #tpu.memory_space<vmem>>, %arg6: memref<24x256xf32, #tpu.memory_space<vmem>>) attributes {dimension_semantics = [#tpu.dimension_semantics<parallel>, #tpu.dimension_semantics<arbitrary>], iteration_bounds = array<i64: 1, 4>, scalar_prefetch = 0 : i64, scratch_operands = 1 : i64, tpu.core_type = #tpu.core_type<tc>, window_params = [{transform_indices = @transform_0, window_bounds = array<i64: 24, 512>}, {transform_indices = @transform_1, window_bounds = array<i64: 512, 256>}, {transform_indices = @transform_2, window_bounds = array<i64: 24, 256>}, {transform_indices = @transform_3, window_bounds = array<i64: 8, 256>}]} {
    %c0_i32 = arith.constant 0 : i32
    %0 = arith.cmpi eq, %arg1, %c0_i32 : i32
    %1 = arith.extui %0 : i1 to i32
    %c0_i32_0 = arith.constant 0 : i32
    %2 = arith.cmpi ne, %1, %c0_i32_0 : i32
    scf.if %2 {
      %cst_9 = arith.constant 0.000000e+00 : f32
      %12 = vector.broadcast %cst_9 : f32 to vector<24x256xf32>
      %c0_10 = arith.constant 0 : index
      %c0_11 = arith.constant 0 : index
      %13 = vector.load %arg6[%c0_10, %c0_11] : memref<24x256xf32, #tpu.memory_space<vmem>>, vector<24x256xf32>
      tpu.vector_store %arg6[%c0_10, %c0_11], %12 {strides = array<i32>} : memref<24x256xf32, #tpu.memory_space<vmem>>, vector<24x256xf32>,
    } else {
    }
    %c0 = arith.constant 0 : index
    %c0_1 = arith.constant 0 : index
    %3 = vector.load %arg6[%c0, %c0_1] : memref<24x256xf32, #tpu.memory_space<vmem>>, vector<24x256xf32>
    %c0_2 = arith.constant 0 : index
    %c0_3 = arith.constant 0 : index
    %4 = vector.load %arg2[%c0_2, %c0_3] : memref<24x512xbf16, #tpu.memory_space<vmem>>, vector<24x512xbf16>
    %c0_4 = arith.constant 0 : index
    %c0_5 = arith.constant 0 : index
    %5 = vector.load %arg3[%c0_4, %c0_5] : memref<512x256xbf16, #tpu.memory_space<vmem>>, vector<512x256xbf16>
    %cst = arith.constant dense<0.000000e+00> : vector<24x256xf32>
    %6 = tpu.matmul %4, %5, %cst {dimension_numbers = #tpu.dot_dimension_numbers<[1], [0], [0], [1], [0, 0, 1, 1], [], []>} : vector<24x512xbf16>, vector<512x256xbf16>, vector<24x256xf32> -> vector<24x256xf32>
    %7 = arith.addf %3, %6 : vector<24x256xf32>
    %c0_6 = arith.constant 0 : index
    %c0_7 = arith.constant 0 : index
    %8 = vector.load %arg6[%c0_6, %c0_7] : memref<24x256xf32, #tpu.memory_space<vmem>>, vector<24x256xf32>
    tpu.vector_store %arg6[%c0_6, %c0_7], %7 {strides = array<i32>} : memref<24x256xf32, #tpu.memory_space<vmem>>, vector<24x256xf32>,
    %c3_i32 = arith.constant 3 : i32
    %9 = arith.cmpi eq, %arg1, %c3_i32 : i32
    %10 = arith.extui %9 : i1 to i32
    %c0_i32_8 = arith.constant 0 : i32
    %11 = arith.cmpi ne, %10, %c0_i32_8 : i32
    scf.if %11 {
      %c0_9 = arith.constant 0 : index
      %c0_10 = arith.constant 0 : index
      %12 = vector.load %arg6[%c0_9, %c0_10] : memref<24x256xf32, #tpu.memory_space<vmem>>, vector<24x256xf32>
      %cst_11 = arith.constant dense<0.000000e+00> : vector<256xf32>
      %13 = vector.multi_reduction <add>, %12, %cst_11 [0] : vector<24x256xf32> to vector<256xf32>
      %14 = vector.shape_cast %13 : vector<256xf32> to vector<1x256xf32>
      %15 = arith.mulf %12, %12 : vector<24x256xf32>
      %cst_12 = arith.constant dense<0.000000e+00> : vector<256xf32>
      %16 = vector.multi_reduction <add>, %15, %cst_12 [0] : vector<24x256xf32> to vector<256xf32>
      %17 = vector.shape_cast %16 : vector<256xf32> to vector<1x256xf32>
      %18 = tpu.iota {dimensions = array<i32: 0>} : vector<8x256xi32>
      %c0_i32_13 = arith.constant 0 : i32
      %19 = vector.broadcast %c0_i32_13 : i32 to vector<8x256xi32>
      %20 = arith.cmpi eq, %18, %19 : vector<8x256xi32>
      %c1_i32 = arith.constant 1 : i32
      %21 = vector.broadcast %c1_i32 : i32 to vector<8x256xi32>
      %22 = arith.cmpi eq, %18, %21 : vector<8x256xi32>
      %cst_14 = arith.constant 0.000000e+00 : f32
      %23 = vector.shape_cast %17 : vector<1x256xf32> to vector<1x256xf32>
      %24 = vector.broadcast %23 : vector<1x256xf32> to vector<8x256xf32>
      %25 = vector.broadcast %cst_14 : f32 to vector<8x256xf32>
      %26 = arith.select %22, %24, %25 : vector<8x256xi1>, vector<8x256xf32>
      %27 = vector.shape_cast %14 : vector<1x256xf32> to vector<1x256xf32>
      %28 = vector.broadcast %27 : vector<1x256xf32> to vector<8x256xf32>
      %29 = arith.select %20, %28, %26 : vector<8x256xi1>, vector<8x256xf32>
      %c0_15 = arith.constant 0 : index
      %c0_16 = arith.constant 0 : index
      %30 = vector.load %arg5[%c0_15, %c0_16] : memref<8x256xf32, #tpu.memory_space<vmem>>, vector<8x256xf32>
      tpu.vector_store %arg5[%c0_15, %c0_16], %29 {strides = array<i32>} : memref<8x256xf32, #tpu.memory_space<vmem>>, vector<8x256xf32>,
      %c0_17 = arith.constant 0 : index
      %c0_18 = arith.constant 0 : index
      %31 = vector.load %arg4[%c0_17, %c0_18] : memref<24x256xf32, #tpu.memory_space<vmem>>, vector<24x256xf32>
      tpu.vector_store %arg4[%c0_17, %c0_18], %12 {strides = array<i32>} : memref<24x256xf32, #tpu.memory_space<vmem>>, vector<24x256xf32>,
    } else {
    }
    return
  }
  func.func @transform_0(%arg0: i32, %arg1: i32) -> (i32, i32) {
    %c0_i32 = arith.constant 0 : i32
    return %arg0, %arg1 : i32, i32
  }
  func.func @transform_1(%arg0: i32, %arg1: i32) -> (i32, i32) {
    %c0_i32 = arith.constant 0 : i32
    %c0_i32_0 = arith.constant 0 : i32
    return %arg1, %c0_i32 : i32, i32
  }
  func.func @transform_2(%arg0: i32, %arg1: i32) -> (i32, i32) {
    %c0_i32 = arith.constant 0 : i32
    %c0_i32_0 = arith.constant 0 : i32
    return %arg0, %c0_i32 : i32, i32
  }
  func.func @transform_3(%arg0: i32, %arg1: i32) -> (i32, i32) {
    %c0_i32 = arith.constant 0 : i32
    %c0_i32_0 = arith.constant 0 : i32
    return %arg0, %c0_i32 : i32, i32
  }
}

module attributes {stable_mosaic.version = 11 : i64} {
  func.func @_bn_act_kernel(%arg0: i32, %arg1: memref<24x256xf32, #tpu.memory_space<vmem>>, %arg2: memref<1x256xf32, #tpu.memory_space<vmem>>, %arg3: memref<1x256xf32, #tpu.memory_space<vmem>>, %arg4: memref<24x256xbf16, #tpu.memory_space<vmem>>) attributes {dimension_semantics = [#tpu.dimension_semantics<parallel>], iteration_bounds = array<i64: 1>, scalar_prefetch = 0 : i64, scratch_operands = 0 : i64, tpu.core_type = #tpu.core_type<tc>, window_params = [{transform_indices = @transform_0, window_bounds = array<i64: 24, 256>}, {pipeline_mode = #tpu.pipeline_mode<synchronous>, transform_indices = @transform_1, window_bounds = array<i64: 1, 256>}, {pipeline_mode = #tpu.pipeline_mode<synchronous>, transform_indices = @transform_2, window_bounds = array<i64: 1, 256>}, {transform_indices = @transform_3, window_bounds = array<i64: 24, 256>}]} {
    %c0 = arith.constant 0 : index
    %c0_0 = arith.constant 0 : index
    %0 = vector.load %arg1[%c0, %c0_0] : memref<24x256xf32, #tpu.memory_space<vmem>>, vector<24x256xf32>
    %c0_1 = arith.constant 0 : index
    %c0_2 = arith.constant 0 : index
    %1 = vector.load %arg2[%c0_1, %c0_2] : memref<1x256xf32, #tpu.memory_space<vmem>>, vector<1x256xf32>
    %2 = vector.broadcast %1 : vector<1x256xf32> to vector<24x256xf32>
    %3 = arith.subf %0, %2 : vector<24x256xf32>
    %c0_3 = arith.constant 0 : index
    %c0_4 = arith.constant 0 : index
    %4 = vector.load %arg3[%c0_3, %c0_4] : memref<1x256xf32, #tpu.memory_space<vmem>>, vector<1x256xf32>
    %5 = vector.broadcast %4 : vector<1x256xf32> to vector<24x256xf32>
    %6 = arith.mulf %3, %5 : vector<24x256xf32>
    %cst = arith.constant 0.000000e+00 : f32
    %7 = vector.broadcast %cst : f32 to vector<24x256xf32>
    %8 = arith.cmpf oge, %6, %7 : vector<24x256xf32>
    %cst_5 = arith.constant 2.000000e-01 : f32
    %9 = vector.broadcast %cst_5 : f32 to vector<24x256xf32>
    %10 = arith.mulf %9, %6 : vector<24x256xf32>
    %11 = arith.select %8, %6, %10 : vector<24x256xi1>, vector<24x256xf32>
    %12 = arith.truncf %11 : vector<24x256xf32> to vector<24x256xbf16>
    %c0_6 = arith.constant 0 : index
    %c0_7 = arith.constant 0 : index
    %13 = vector.load %arg4[%c0_6, %c0_7] : memref<24x256xbf16, #tpu.memory_space<vmem>>, vector<24x256xbf16>
    tpu.vector_store %arg4[%c0_6, %c0_7], %12 {strides = array<i32>} : memref<24x256xbf16, #tpu.memory_space<vmem>>, vector<24x256xbf16>,
    return
  }
  func.func @transform_0(%arg0: i32) -> (i32, i32) {
    %c0_i32 = arith.constant 0 : i32
    %c0_i32_0 = arith.constant 0 : i32
    return %arg0, %c0_i32 : i32, i32
  }
  func.func @transform_1(%arg0: i32) -> (i32, i32) {
    %c0_i32 = arith.constant 0 : i32
    %c0_i32_0 = arith.constant 0 : i32
    %c0_i32_1 = arith.constant 0 : i32
    return %c0_i32, %c0_i32_0 : i32, i32
  }
  func.func @transform_2(%arg0: i32) -> (i32, i32) {
    %c0_i32 = arith.constant 0 : i32
    %c0_i32_0 = arith.constant 0 : i32
    %c0_i32_1 = arith.constant 0 : i32
    return %c0_i32, %c0_i32_0 : i32, i32
  }
  func.func @transform_3(%arg0: i32) -> (i32, i32) {
    %c0_i32 = arith.constant 0 : i32
    %c0_i32_0 = arith.constant 0 : i32
    return %arg0, %c0_i32 : i32, i32
  }
}

module attributes {stable_mosaic.version = 11 : i64} {
  func.func @kernel(%arg0: i32, %arg1: i32, %arg2: memref<8x512xbf16, #tpu.memory_space<vmem>>, %arg3: memref<512x128xbf16, #tpu.memory_space<vmem>>, %arg4: memref<1x128xf32, #tpu.memory_space<vmem>>, %arg5: memref<8x128xf32, #tpu.memory_space<vmem>>, %arg6: memref<8x128xf32, #tpu.memory_space<vmem>>) attributes {dimension_semantics = [#tpu.dimension_semantics<parallel>, #tpu.dimension_semantics<arbitrary>], iteration_bounds = array<i64: 1, 8>, scalar_prefetch = 0 : i64, scratch_operands = 1 : i64, tpu.core_type = #tpu.core_type<tc>, window_params = [{transform_indices = @transform_0, window_bounds = array<i64: 8, 512>}, {transform_indices = @transform_1, window_bounds = array<i64: 512, 128>}, {pipeline_mode = #tpu.pipeline_mode<synchronous>, transform_indices = @transform_2, window_bounds = array<i64: 1, 128>}, {transform_indices = @transform_3, window_bounds = array<i64: 8, 128>}]} {
    %c0_i32 = arith.constant 0 : i32
    %0 = arith.cmpi eq, %arg1, %c0_i32 : i32
    %1 = arith.extui %0 : i1 to i32
    %c0_i32_0 = arith.constant 0 : i32
    %2 = arith.cmpi ne, %1, %c0_i32_0 : i32
    scf.if %2 {
      %cst_9 = arith.constant 0.000000e+00 : f32
      %12 = vector.broadcast %cst_9 : f32 to vector<8x128xf32>
      %c0_10 = arith.constant 0 : index
      %c0_11 = arith.constant 0 : index
      %13 = vector.load %arg6[%c0_10, %c0_11] : memref<8x128xf32, #tpu.memory_space<vmem>>, vector<8x128xf32>
      tpu.vector_store %arg6[%c0_10, %c0_11], %12 {strides = array<i32>} : memref<8x128xf32, #tpu.memory_space<vmem>>, vector<8x128xf32>,
    } else {
    }
    %c0 = arith.constant 0 : index
    %c0_1 = arith.constant 0 : index
    %3 = vector.load %arg6[%c0, %c0_1] : memref<8x128xf32, #tpu.memory_space<vmem>>, vector<8x128xf32>
    %c0_2 = arith.constant 0 : index
    %c0_3 = arith.constant 0 : index
    %4 = vector.load %arg2[%c0_2, %c0_3] : memref<8x512xbf16, #tpu.memory_space<vmem>>, vector<8x512xbf16>
    %c0_4 = arith.constant 0 : index
    %c0_5 = arith.constant 0 : index
    %5 = vector.load %arg3[%c0_4, %c0_5] : memref<512x128xbf16, #tpu.memory_space<vmem>>, vector<512x128xbf16>
    %cst = arith.constant dense<0.000000e+00> : vector<8x128xf32>
    %6 = tpu.matmul %4, %5, %cst {dimension_numbers = #tpu.dot_dimension_numbers<[1], [0], [0], [1], [0, 0, 1, 1], [], []>} : vector<8x512xbf16>, vector<512x128xbf16>, vector<8x128xf32> -> vector<8x128xf32>
    %7 = arith.addf %3, %6 : vector<8x128xf32>
    %c0_6 = arith.constant 0 : index
    %c0_7 = arith.constant 0 : index
    %8 = vector.load %arg6[%c0_6, %c0_7] : memref<8x128xf32, #tpu.memory_space<vmem>>, vector<8x128xf32>
    tpu.vector_store %arg6[%c0_6, %c0_7], %7 {strides = array<i32>} : memref<8x128xf32, #tpu.memory_space<vmem>>, vector<8x128xf32>,
    %c7_i32 = arith.constant 7 : i32
    %9 = arith.cmpi eq, %arg1, %c7_i32 : i32
    %10 = arith.extui %9 : i1 to i32
    %c0_i32_8 = arith.constant 0 : i32
    %11 = arith.cmpi ne, %10, %c0_i32_8 : i32
    scf.if %11 {
      %c0_9 = arith.constant 0 : index
      %c0_10 = arith.constant 0 : index
      %12 = vector.load %arg6[%c0_9, %c0_10] : memref<8x128xf32, #tpu.memory_space<vmem>>, vector<8x128xf32>
      %c0_11 = arith.constant 0 : index
      %c0_12 = arith.constant 0 : index
      %13 = vector.load %arg4[%c0_11, %c0_12] : memref<1x128xf32, #tpu.memory_space<vmem>>, vector<1x128xf32>
      %14 = vector.broadcast %13 : vector<1x128xf32> to vector<8x128xf32>
      %15 = arith.addf %12, %14 : vector<8x128xf32>
      %c0_13 = arith.constant 0 : index
      %c0_14 = arith.constant 0 : index
      %16 = vector.load %arg5[%c0_13, %c0_14] : memref<8x128xf32, #tpu.memory_space<vmem>>, vector<8x128xf32>
      tpu.vector_store %arg5[%c0_13, %c0_14], %15 {strides = array<i32>} : memref<8x128xf32, #tpu.memory_space<vmem>>, vector<8x128xf32>,
    } else {
    }
    return
  }
  func.func @transform_0(%arg0: i32, %arg1: i32) -> (i32, i32) {
    %c0_i32 = arith.constant 0 : i32
    return %arg0, %arg1 : i32, i32
  }
  func.func @transform_1(%arg0: i32, %arg1: i32) -> (i32, i32) {
    %c0_i32 = arith.constant 0 : i32
    %c0_i32_0 = arith.constant 0 : i32
    return %arg1, %c0_i32 : i32, i32
  }
  func.func @transform_2(%arg0: i32, %arg1: i32) -> (i32, i32) {
    %c0_i32 = arith.constant 0 : i32
    %c0_i32_0 = arith.constant 0 : i32
    %c0_i32_1 = arith.constant 0 : i32
    return %c0_i32, %c0_i32_0 : i32, i32
  }
  func.func @transform_3(%arg0: i32, %arg1: i32) -> (i32, i32) {
    %c0_i32 = arith.constant 0 : i32
    %c0_i32_0 = arith.constant 0 : i32
    return %arg0, %c0_i32 : i32, i32
  }
}

</mosaic_0001>

<llo_original>
// kernel: patchgan_forward.8
$region0: #{patchgan_forward.8}
  #allocation0 [shape = 'u32[]', space=smem, size = 0x4, offset = 0x4, fixed_abs, tag = 'smem constant byte address 0x4 - core index']
  #allocation1 [shape = 'u32[144,128]{1,0:T(1,128)}', space=vmem, size = 0x12000, scoped, tag = 'internal scratch']
  #allocation2 [shape = 'f32[256,128]{1,0:T(8,128)}', space=vmem, size = 0x20000, scoped, tag = 'scratch operand']
  %s0 = inlined_call_operand.vmem [shape: bf16[512,128], index: 0, kind: input, shape index: {}]
  %s1 = inlined_call_operand.vmem [shape: bf16[128,128], index: 1, kind: input, shape index: {}]
  %s2 = inlined_call_operand.vmem [shape: f32[1,128], index: 2, kind: input, shape index: {}]
  %s3 = inlined_call_operand.vmem [shape: bf16[512,128], index: 3, kind: output, shape index: {}]
  %s4 = sld [smem:[#allocation0]]
  $region53: #{patchgan_forward.8} parent=0
    _
  %s6 = ssub.s32 1, %s4
  %s7 = scalar_select 0, %s6, %s4
  loop: start=0, step=1, limit=4
  $region2: #{patchgan_forward.8} parent=0 // loop_pre_header
    _
  $region3: #{patchgan_forward.8} parent=0 // loop_header
    %s9 = sphi 0, %s13
    %p10 = scmp.ge.s32.totalorder %s9, 4
    %s16 = sphi 0, %s28
    %s17 = sphi 0, %s24
    %s18 = sphi 0, %s16
    %s19 = sphi 0, %s17
    %s20 = sphi 0, %s18
    %s21 = sphi 0, %s19
    %s33 = sphi 0, %s35
    %s36 = sphi 0, %s33
    %s37 = sphi 0, %s36
    %s53 = sphi 0, %s37
    %s59 = sphi 0, %s61
    %s62 = sphi 0, %s59
    %s63 = sphi 0, %s62
    %s79 = sphi 0, %s63
    %s83 = sphi 0, %s83
    %s85 = sphi 0, %s83
    %s86 = sphi 0, %s85
    %s100 = sphi 0, %s86
    %s106 = sphi 0, %s108
    %s109 = sphi 0, %s106
    %s110 = sphi 0, %s109
    %s126 = sphi 0, %s110
  $region4: #{patchgan_forward.8} parent=0 // loop_header_branch
    %12 = sbr.rel (%p10) target = $region8
  $region5: #{patchgan_forward.8} parent=0 // loop_body
    %s14 = ssub.s32 %s9, 1
    %s15 = ssub.s32 %s9, 2
    %s22 = sadd.s32 1, %s17
    %p23 = scmp.ge.s32.totalorder %s22, 1
    %s24 = scalar_select %p23, 0, %s22
    %s25 = sadd.s32 1, %s16
    %s26 = scalar_select %p23, %s25, %s16
    %p27 = scmp.ge.s32.totalorder %s26, 2
    %s28 = scalar_select %p27, 0, %s26
    %s29 = ssub.s32 %s16, %s28
    %s30 = ssub.s32 %s17, %s24
    %s31 = sor.u32 %s29, %s30
    %p32 = scmp.eq.s32.totalorder %s31, 0
    %s34 = sadd.s32 %s33, 1
    %s35 = scalar_select %p32, %s33, %s34
    %p38 = pneg %p32
    %p39 = scmp.eq.s32.totalorder %s9, 1
    %p40 = por %p38, %p39
    %p41 = scmp.ne.s32.totalorder %s33, %s36
    %p42 = scmp.eq.s32.totalorder %s9, 0
    %p43 = por %p41, %p42
    %p44 = scmp.ne.s32.totalorder %s33, %s36
    %p45 = scmp.eq.s32.totalorder %s14, 1
    %p46 = por %p44, %p45
    %p47 = scmp.ne.s32.totalorder %s36, %s37
    %p48 = scmp.eq.s32.totalorder %s14, 0
    %p49 = por %p47, %p48
    %p50 = scmp.ne.s32.totalorder %s36, %s37
    %p51 = scmp.eq.s32.totalorder %s15, 1
    %p52 = por %p50, %p51
    %p54 = scmp.ne.s32.totalorder %s37, %s53
    %p55 = scmp.eq.s32.totalorder %s15, 0
    %p56 = por %p54, %p55
    %s57 = ssub.s32 %s17, %s24
    %p58 = scmp.eq.s32.totalorder %s57, 0
    %s60 = sadd.s32 %s59, 1
    %s61 = scalar_select %p58, %s59, %s60
    %p64 = pneg %p58
    %p65 = scmp.eq.s32.totalorder %s9, 1
    %p66 = por %p64, %p65
    %p67 = scmp.ne.s32.totalorder %s59, %s62
    %p68 = scmp.eq.s32.totalorder %s9, 0
    %p69 = por %p67, %p68
    %p70 = scmp.ne.s32.totalorder %s59, %s62
    %p71 = scmp.eq.s32.totalorder %s14, 1
    %p72 = por %p70, %p71
    %p73 = scmp.ne.s32.totalorder %s62, %s63
    %p74 = scmp.eq.s32.totalorder %s14, 0
    %p75 = por %p73, %p74
    %p76 = scmp.ne.s32.totalorder %s62, %s63
    %p77 = scmp.eq.s32.totalorder %s15, 1
    %p78 = por %p76, %p77
    %p80 = scmp.ne.s32.totalorder %s63, %s79
    %p81 = scmp.eq.s32.totalorder %s15, 0
    %p82 = por %p80, %p81
    %s84 = sadd.s32 %s83, 1
    %p87 = scmp.eq.s32.totalorder %s9, 1
    %p88 = scmp.ne.s32.totalorder %s83, %s85
    %p89 = scmp.eq.s32.totalorder %s9, 0
    %p90 = por %p88, %p89
    %p91 = scmp.ne.s32.totalorder %s83, %s85
    %p92 = scmp.eq.s32.totalorder %s14, 1
    %p93 = por %p91, %p92
    %p94 = scmp.ne.s32.totalorder %s85, %s86
    %p95 = scmp.eq.s32.totalorder %s14, 0
    %p96 = por %p94, %p95
    %p97 = scmp.ne.s32.totalorder %s85, %s86
    %p98 = scmp.eq.s32.totalorder %s15, 1
    %p99 = por %p97, %p98
    %p101 = scmp.ne.s32.totalorder %s86, %s100
    %p102 = scmp.eq.s32.totalorder %s15, 0
    %p103 = por %p101, %p102
    %s104 = ssub.s32 %s16, %s28
    %p105 = scmp.eq.s32.totalorder %s104, 0
    %s107 = sadd.s32 %s106, 1
    %s108 = scalar_select %p105, %s106, %s107
    %p111 = pneg %p105
    %p112 = scmp.eq.s32.totalorder %s9, 1
    %p113 = por %p111, %p112
    %p114 = scmp.ne.s32.totalorder %s106, %s109
    %p115 = scmp.eq.s32.totalorder %s9, 0
    %p116 = por %p114, %p115
    %p117 = scmp.ne.s32.totalorder %s106, %s109
    %p118 = scmp.eq.s32.totalorder %s14, 1
    %p119 = por %p117, %p118
    %p120 = scmp.ne.s32.totalorder %s109, %s110
    %p121 = scmp.eq.s32.totalorder %s14, 0
    %p122 = por %p120, %p121
    %p123 = scmp.ne.s32.totalorder %s109, %s110
    %p124 = scmp.eq.s32.totalorder %s15, 1
    %p125 = por %p123, %p124
    %p127 = scmp.ne.s32.totalorder %s110, %s126
    %p128 = scmp.eq.s32.totalorder %s15, 0
    %p129 = por %p127, %p128
    %p130 = scmp.le.s32.totalorder 1, %s9
    %p131 = scmp.lt.s32.totalorder %s9, 3
    %p132 = pnand %p130, %p131
    %p133 = pneg %p132
    // Predicated region
    $region9: #{patchgan_forward.8} parent=5 // pred_check
      _
    $region10: #{patchgan_forward.8} parent=5 // pred_check_branch
      %135 = sbr.rel (%p132) target = $region12
    $region11: #{patchgan_forward.8} parent=5 // pred_region
      %s136 = ssub.s32 %s9, 1
      // Predicated region
      $region13: #{patchgan_forward.8} parent=11 // pred_check
        %p137 = pneg %p75
      $region14: #{patchgan_forward.8} parent=11 // pred_check_branch
        %139 = sbr.rel (%p137) target = $region16
      $region15: #{patchgan_forward.8} parent=11 // pred_region
        %s140 = smul.u32 16, %s19
        %p141 = scmp.lt.s32.totalorder %s140, 15
        %s142 = scalar_select %p141, %s140, 15
        %s143 = smul.addr %s142, 4
        %s144 = scalar_lea.vmem %s1, %s143
        %s145 = smul.u32 16, %s19
      $region16: #{patchgan_forward.8} parent=11 // pred_fallthru
        _
      // Predicated region
      $region17: #{patchgan_forward.8} parent=11 // pred_check
        %p146 = pneg %p96
      $region18: #{patchgan_forward.8} parent=11 // pred_check_branch
        %148 = sbr.rel (%p146) target = $region20
      $region19: #{patchgan_forward.8} parent=11 // pred_region
        _
      $region20: #{patchgan_forward.8} parent=11 // pred_fallthru
        _
    $region12: #{patchgan_forward.8} parent=5 // pred_fallthru
      _
    %p149 = scmp.lt.s32.totalorder %s9, 2
    // Predicated region
    $region21: #{patchgan_forward.8} parent=5 // pred_check
      %p150 = pneg %p149
    $region22: #{patchgan_forward.8} parent=5 // pred_check_branch
      %152 = sbr.rel (%p150) target = $region24
    $region23: #{patchgan_forward.8} parent=5 // pred_region
      // Predicated region
      $region25: #{patchgan_forward.8} parent=23 // pred_check
        %p153 = pneg %p43
      $region26: #{patchgan_forward.8} parent=23 // pred_check_branch
        %155 = sbr.rel (%p153) target = $region28
      $region27: #{patchgan_forward.8} parent=23 // pred_region
        %s156 = smul.u32 32, %s16
        %p157 = scmp.lt.s32.totalorder %s156, 63
        %s158 = scalar_select %p157, %s156, 63
        %p159 = scmp.lt.s32.totalorder %s17, 0
        %s160 = scalar_select %p159, %s17, 0
        %s161 = sadd.s32 %s160, %s158
        %s162 = smul.addr %s161, 4
        %s163 = scalar_lea.vmem %s0, %s162
        %s164 = smul.u32 32, %s16
      $region28: #{patchgan_forward.8} parent=23 // pred_fallthru
        _
    $region24: #{patchgan_forward.8} parent=5 // pred_fallthru
      _
    %p165 = scmp.le.s32.totalorder 1, %s9
    %p166 = scmp.lt.s32.totalorder %s9, 3
    %p167 = pnand %p165, %p166
    %p168 = pneg %p167
    // Predicated region
    $region29: #{patchgan_forward.8} parent=5 // pred_check
      _
    $region30: #{patchgan_forward.8} parent=5 // pred_check_branch
      %170 = sbr.rel (%p167) target = $region32
    $region31: #{patchgan_forward.8} parent=5 // pred_region
      %s171 = ssub.s32 %s9, 1
      %s172 = smul.u32 32, %s18
      %p173 = scmp.lt.s32.totalorder %s172, 63
      %s174 = scalar_select %p173, %s172, 63
      %p175 = scmp.lt.s32.totalorder %s19, 0
      %s176 = scalar_select %p175, %s19, 0
      %s177 = sadd.s32 %s176, %s174
      %s178 = smul.addr %s177, 4
      %s179 = scalar_lea.vmem %s0, %s178
      %p180 = pneg %p49
      %p181 = pneg %p46
      %s182 = smul.u32 16, %s19
      %p183 = scmp.lt.s32.totalorder %s182, 15
      %s184 = scalar_select %p183, %s182, 15
      %s185 = smul.addr %s184, 4
      %s186 = scalar_lea.vmem %s1, %s185
      %p187 = pneg %p75
      %p188 = pneg %p72
      %p189 = pneg %p96
      %p190 = pneg %p93
      %p191 = pneg %p122
      %p192 = pneg %p119
      %s193 = smul.u32 32, %s18
      %p194 = scmp.lt.s32.totalorder %s193, 63
      %s195 = scalar_select %p194, %s193, 63
      %s196 = smul.addr %s195, 4
      %s197 = scalar_lea.vmem %s3, %s196
      %s198 = smul.u32 32, %s18
      %p199 = scmp.lt.s32.totalorder %s198, 63
      %s200 = scalar_select %p199, %s198, 63
      %p201 = scmp.lt.s32.totalorder %s19, 0
      %s202 = scalar_select %p201, %s19, 0
      %s203 = sadd.s32 %s202, %s200
      %s204 = smul.addr %s203, 4
      %s205 = scalar_lea.vmem %s0, %s204
      %s206 = smul.u32 32, %s18
      %s207 = smul.u32 16, %s19
      %p208 = scmp.lt.s32.totalorder %s207, 15
      %s209 = scalar_select %p208, %s207, 15
      %s210 = smul.addr %s209, 4
      %s211 = scalar_lea.vmem %s1, %s210
      %s212 = smul.u32 16, %s19
      %s213 = smul.u32 32, %s18
      %p214 = scmp.lt.s32.totalorder %s213, 63
      %s215 = scalar_select %p214, %s213, 63
      %s216 = smul.addr %s215, 4
      %s217 = scalar_lea.vmem %s3, %s216
      %s218 = smul.u32 32, %s18
      %p220 = scmp.eq.s32.totalorder %s19, 0
      // Predicated region
      $region33: #{patchgan_forward.8} parent=31 // pred_check
        %p221 = pneg %p220
      $region34: #{patchgan_forward.8} parent=31 // pred_check_branch
        %223 = sbr.rel (%p221) target = $region36
      $region35: #{patchgan_forward.8} parent=31 // pred_region
        %224 = vst [vmem:[#allocation2] sm:$0xff] 0.0
        %225 = vst [vmem:[#allocation2 + $0x8] sm:$0xff] 0.0
        %226 = vst [vmem:[#allocation2 + $0x10] sm:$0xff] 0.0
        %227 = vst [vmem:[#allocation2 + $0x18] sm:$0xff] 0.0
        %228 = vst [vmem:[#allocation2 + $0x20] sm:$0xff] 0.0
        %229 = vst [vmem:[#allocation2 + $0x28] sm:$0xff] 0.0
        %230 = vst [vmem:[#allocation2 + $0x30] sm:$0xff] 0.0
        %231 = vst [vmem:[#allocation2 + $0x38] sm:$0xff] 0.0
        %232 = vst [vmem:[#allocation2 + $0x40] sm:$0xff] 0.0
        %233 = vst [vmem:[#allocation2 + $0x48] sm:$0xff] 0.0
        %234 = vst [vmem:[#allocation2 + $0x50] sm:$0xff] 0.0
        %235 = vst [vmem:[#allocation2 + $0x58] sm:$0xff] 0.0
        %236 = vst [vmem:[#allocation2 + $0x60] sm:$0xff] 0.0
        %237 = vst [vmem:[#allocation2 + $0x68] sm:$0xff] 0.0
        %238 = vst [vmem:[#allocation2 + $0x70] sm:$0xff] 0.0
        %239 = vst [vmem:[#allocation2 + $0x78] sm:$0xff] 0.0
        %240 = vst [vmem:[#allocation2 + $0x80] sm:$0xff] 0.0
        %241 = vst [vmem:[#allocation2 + $0x88] sm:$0xff] 0.0
        %242 = vst [vmem:[#allocation2 + $0x90] sm:$0xff] 0.0
        %243 = vst [vmem:[#allocation2 + $0x98] sm:$0xff] 0.0
        %244 = vst [vmem:[#allocation2 + $0xa0] sm:$0xff] 0.0
        %245 = vst [vmem:[#allocation2 + $0xa8] sm:$0xff] 0.0
        %246 = vst [vmem:[#allocation2 + $0xb0] sm:$0xff] 0.0
        %247 = vst [vmem:[#allocation2 + $0xb8] sm:$0xff] 0.0
        %248 = vst [vmem:[#allocation2 + $0xc0] sm:$0xff] 0.0
        %249 = vst [vmem:[#allocation2 + $0xc8] sm:$0xff] 0.0
        %250 = vst [vmem:[#allocation2 + $0xd0] sm:$0xff] 0.0
        %251 = vst [vmem:[#allocation2 + $0xd8] sm:$0xff] 0.0
        %252 = vst [vmem:[#allocation2 + $0xe0] sm:$0xff] 0.0
        %253 = vst [vmem:[#allocation2 + $0xe8] sm:$0xff] 0.0
        %254 = vst [vmem:[#allocation2 + $0xf0] sm:$0xff] 0.0
        %255 = vst [vmem:[#allocation2 + $0xf8] sm:$0xff] 0.0
      $region36: #{patchgan_forward.8} parent=31 // pred_fallthru
        _
      %v256 = vld [vmem:[#allocation2] sm:$0xff]
      %v257 = vld [vmem:[#allocation2 + $0x8] sm:$0xff]
      %v258 = vld [vmem:[#allocation2 + $0x10] sm:$0xff]
      %v259 = vld [vmem:[#allocation2 + $0x18] sm:$0xff]
      %v260 = vld [vmem:[#allocation2 + $0x20] sm:$0xff]
      %v261 = vld [vmem:[#allocation2 + $0x28] sm:$0xff]
      %v262 = vld [vmem:[#allocation2 + $0x30] sm:$0xff]
      %v263 = vld [vmem:[#allocation2 + $0x38] sm:$0xff]
      %v264 = vld [vmem:[#allocation2 + $0x40] sm:$0xff]
      %v265 = vld [vmem:[#allocation2 + $0x48] sm:$0xff]
      %v266 = vld [vmem:[#allocation2 + $0x50] sm:$0xff]
      %v267 = vld [vmem:[#allocation2 + $0x58] sm:$0xff]
      %v268 = vld [vmem:[#allocation2 + $0x60] sm:$0xff]
      %v269 = vld [vmem:[#allocation2 + $0x68] sm:$0xff]
      %v270 = vld [vmem:[#allocation2 + $0x70] sm:$0xff]
      %v271 = vld [vmem:[#allocation2 + $0x78] sm:$0xff]
      %v272 = vld [vmem:[#allocation2 + $0x80] sm:$0xff]
      %v273 = vld [vmem:[#allocation2 + $0x88] sm:$0xff]
      %v274 = vld [vmem:[#allocation2 + $0x90] sm:$0xff]
      %v275 = vld [vmem:[#allocation2 + $0x98] sm:$0xff]
      %v276 = vld [vmem:[#allocation2 + $0xa0] sm:$0xff]
      %v277 = vld [vmem:[#allocation2 + $0xa8] sm:$0xff]
      %v278 = vld [vmem:[#allocation2 + $0xb0] sm:$0xff]
      %v279 = vld [vmem:[#allocation2 + $0xb8] sm:$0xff]
      %v280 = vld [vmem:[#allocation2 + $0xc0] sm:$0xff]
      %v281 = vld [vmem:[#allocation2 + $0xc8] sm:$0xff]
      %v282 = vld [vmem:[#allocation2 + $0xd0] sm:$0xff]
      %v283 = vld [vmem:[#allocation2 + $0xd8] sm:$0xff]
      %v284 = vld [vmem:[#allocation2 + $0xe0] sm:$0xff]
      %v285 = vld [vmem:[#allocation2 + $0xe8] sm:$0xff]
      %v286 = vld [vmem:[#allocation2 + $0xf0] sm:$0xff]
      %v287 = vld [vmem:[#allocation2 + $0xf8] sm:$0xff]
      %v288 = vld [vmem:[%s205] sm:$0xf]
      %v289 = vld [vmem:[%s205 + $0x4] sm:$0xf]
      %v290 = vld [vmem:[%s205 + $0x8] sm:$0xf]
      %v291 = vld [vmem:[%s205 + $0xc] sm:$0xf]
      %v292 = vld [vmem:[%s205 + $0x10] sm:$0xf]
      %v293 = vld [vmem:[%s205 + $0x14] sm:$0xf]
      %v294 = vld [vmem:[%s205 + $0x18] sm:$0xf]
      %v295 = vld [vmem:[%s205 + $0x1c] sm:$0xf]
      %v296 = vld [vmem:[%s205 + $0x20] sm:$0xf]
      %v297 = vld [vmem:[%s205 + $0x24] sm:$0xf]
      %v298 = vld [vmem:[%s205 + $0x28] sm:$0xf]
      %v299 = vld [vmem:[%s205 + $0x2c] sm:$0xf]
      %v300 = vld [vmem:[%s205 + $0x30] sm:$0xf]
      %v301 = vld [vmem:[%s205 + $0x34] sm:$0xf]
      %v302 = vld [vmem:[%s205 + $0x38] sm:$0xf]
      %v303 = vld [vmem:[%s205 + $0x3c] sm:$0xf]
      %v304 = vld [vmem:[%s205 + $0x40] sm:$0xf]
      %v305 = vld [vmem:[%s205 + $0x44] sm:$0xf]
      %v306 = vld [vmem:[%s205 + $0x48] sm:$0xf]
      %v307 = vld [vmem:[%s205 + $0x4c] sm:$0xf]
      %v308 = vld [vmem:[%s205 + $0x50] sm:$0xf]
      %v309 = vld [vmem:[%s205 + $0x54] sm:$0xf]
      %v310 = vld [vmem:[%s205 + $0x58] sm:$0xf]
      %v311 = vld [vmem:[%s205 + $0x5c] sm:$0xf]
      %v312 = vld [vmem:[%s205 + $0x60] sm:$0xf]
      %v313 = vld [vmem:[%s205 + $0x64] sm:$0xf]
      %v314 = vld [vmem:[%s205 + $0x68] sm:$0xf]
      %v315 = vld [vmem:[%s205 + $0x6c] sm:$0xf]
      %v316 = vld [vmem:[%s205 + $0x70] sm:$0xf]
      %v317 = vld [vmem:[%s205 + $0x74] sm:$0xf]
      %v318 = vld [vmem:[%s205 + $0x78] sm:$0xf]
      %v319 = vld [vmem:[%s205 + $0x7c] sm:$0xf]
      %v320 = vld [vmem:[%s211] sm:$0xf]
      %v321 = vld [vmem:[%s211 + $0x4] sm:$0xf]
      %v322 = vld [vmem:[%s211 + $0x8] sm:$0xf]
      %v323 = vld [vmem:[%s211 + $0xc] sm:$0xf]
      %v324 = vld [vmem:[%s211 + $0x10] sm:$0xf]
      %v325 = vld [vmem:[%s211 + $0x14] sm:$0xf]
      %v326 = vld [vmem:[%s211 + $0x18] sm:$0xf]
      %v327 = vld [vmem:[%s211 + $0x1c] sm:$0xf]
      %v328 = vld [vmem:[%s211 + $0x20] sm:$0xf]
      %v329 = vld [vmem:[%s211 + $0x24] sm:$0xf]
      %v330 = vld [vmem:[%s211 + $0x28] sm:$0xf]
      %v331 = vld [vmem:[%s211 + $0x2c] sm:$0xf]
      %v332 = vld [vmem:[%s211 + $0x30] sm:$0xf]
      %v333 = vld [vmem:[%s211 + $0x34] sm:$0xf]
      %v334 = vld [vmem:[%s211 + $0x38] sm:$0xf]
      %v335 = vld [vmem:[%s211 + $0x3c] sm:$0xf]
      %v368 = vunpack.c.l.b16 %v288
      %v369 = vunpack.c.l.b16 %v289
      %v370 = vunpack.c.l.b16 %v290
      %v371 = vunpack.c.l.b16 %v291
      %v372 = vunpack.c.l.b16 %v292
      %v373 = vunpack.c.l.b16 %v293
      %v374 = vunpack.c.l.b16 %v294
      %v375 = vunpack.c.l.b16 %v295
      %v376 = vunpack.c.l.b16 %v296
      %v377 = vunpack.c.l.b16 %v297
      %v378 = vunpack.c.l.b16 %v298
      %v379 = vunpack.c.l.b16 %v299
      %v380 = vunpack.c.l.b16 %v300
      %v381 = vunpack.c.l.b16 %v301
      %v382 = vunpack.c.l.b16 %v302
      %v383 = vunpack.c.l.b16 %v303
      %v384 = vunpack.c.l.b16 %v304
      %v385 = vunpack.c.l.b16 %v305
      %v386 = vunpack.c.l.b16 %v306
      %v387 = vunpack.c.l.b16 %v307
      %v388 = vunpack.c.l.b16 %v308
      %v389 = vunpack.c.l.b16 %v309
      %v390 = vunpack.c.l.b16 %v310
      %v391 = vunpack.c.l.b16 %v311
      %v392 = vunpack.c.l.b16 %v312
      %v393 = vunpack.c.l.b16 %v313
      %v394 = vunpack.c.l.b16 %v314
      %v395 = vunpack.c.l.b16 %v315
      %v396 = vunpack.c.l.b16 %v316
      %v397 = vunpack.c.l.b16 %v317
      %v398 = vunpack.c.l.b16 %v318
      %v399 = vunpack.c.l.b16 %v319
      %v400 = vpack.c.b16 %v369, %v368
      %v401 = vpack.c.b16 %v371, %v370
      %v402 = vpack.c.b16 %v373, %v372
      %v403 = vpack.c.b16 %v375, %v374
      %v404 = vpack.c.b16 %v377, %v376
      %v405 = vpack.c.b16 %v379, %v378
      %v406 = vpack.c.b16 %v381, %v380
      %v407 = vpack.c.b16 %v383, %v382
      %v408 = vpack.c.b16 %v385, %v384
      %v409 = vpack.c.b16 %v387, %v386
      %v410 = vpack.c.b16 %v389, %v388
      %v411 = vpack.c.b16 %v391, %v390
      %v412 = vpack.c.b16 %v393, %v392
      %v413 = vpack.c.b16 %v395, %v394
      %v414 = vpack.c.b16 %v397, %v396
      %v415 = vpack.c.b16 %v399, %v398
      %v448 = vunpack.c.l.b16 %v320
      %v449 = vunpack.c.l.b16 %v321
      %v450 = vunpack.c.l.b16 %v322
      %v451 = vunpack.c.l.b16 %v323
      %v452 = vunpack.c.l.b16 %v324
      %v453 = vunpack.c.l.b16 %v325
      %v454 = vunpack.c.l.b16 %v326
      %v455 = vunpack.c.l.b16 %v327
      %v456 = vunpack.c.l.b16 %v328
      %v457 = vunpack.c.l.b16 %v329
      %v458 = vunpack.c.l.b16 %v330
      %v459 = vunpack.c.l.b16 %v331
      %v460 = vunpack.c.l.b16 %v332
      %v461 = vunpack.c.l.b16 %v333
      %v462 = vunpack.c.l.b16 %v334
      %v463 = vunpack.c.l.b16 %v335
      %v464 = vpack.c.b16 %v449, %v448
      %v465 = vpack.c.b16 %v451, %v450
      %v466 = vpack.c.b16 %v453, %v452
      %v467 = vpack.c.b16 %v455, %v454
      %v468 = vpack.c.b16 %v457, %v456
      %v469 = vpack.c.b16 %v459, %v458
      %v470 = vpack.c.b16 %v461, %v460
      %v471 = vpack.c.b16 %v463, %v462
      %480 = vmatprep.subr.bf16.mxu0 0
      %481 = vmatpush1.bf16.msra.mxu0 %v464
      %482 = vmatprep.subr.bf16.mxu0 0
      %483 = vmatpush1.bf16.msra.mxu0 %v465
      %484 = vmatprep.subr.bf16.mxu0 0
      %485 = vmatpush1.bf16.msra.mxu0 %v466
      %486 = vmatprep.subr.bf16.mxu0 0
      %487 = vmatpush1.bf16.msra.mxu0 %v467
      %488 = vmatprep.subr.bf16.mxu0 0
      %489 = vmatpush1.bf16.msra.mxu0 %v468
      %490 = vmatprep.subr.bf16.mxu0 0
      %491 = vmatpush1.bf16.msra.mxu0 %v469
      %492 = vmatprep.subr.bf16.mxu0 0
      %493 = vmatpush1.bf16.msra.mxu0 %v470
      %494 = vmatprep.subr.bf16.mxu0 0
      %495 = vmatpush1.bf16.msra.mxu0 %v471
      %496 = vmatprep.subr.bf16.mxu0 0
      %497 = vmatpush1.bf16.msra.mxu0 0
      %498 = vmatprep.subr.bf16.mxu0 0
      %499 = vmatpush1.bf16.msra.mxu0 0
      %500 = vmatprep.subr.bf16.mxu0 0
      %501 = vmatpush1.bf16.msra.mxu0 0
      %502 = vmatprep.subr.bf16.mxu0 0
      %503 = vmatpush1.bf16.msra.mxu0 0
      %504 = vmatprep.subr.bf16.mxu0 0
      %505 = vmatpush1.bf16.msra.mxu0 0
      %506 = vmatprep.subr.bf16.mxu0 0
      %507 = vmatpush1.bf16.msra.mxu0 0
      %508 = vmatprep.subr.bf16.mxu0 0
      %509 = vmatpush1.bf16.msra.mxu0 0
      %510 = vmatprep.subr.bf16.mxu0 0
      %511 = vmatpush1.bf16.msra.mxu0 0
      %512 = vmatprep.mubr.bf16.mxu0 0
      %513 = vmatmul.mubr.bf16.gmra.mrb[0].mxu0 %v400
      %v514 = vpop.f32.mrb[0].mxu0
      %v515 = vadd.f32 0.0, %v514
      %v516 = vpop.f32.mrb[0].mxu0
      %v517 = vpop.f32.mrb[0].mxu0
      %v518 = vadd.f32 0.0, %v517
      %v519 = vpop.f32.mrb[0].mxu0
      %520 = vmatprep.mubr.bf16.mxu0 0
      %521 = vmatmul.mubr.bf16.gmra.mrb[0].mxu0 %v401
      %v522 = vpop.f32.mrb[0].mxu0
      %v523 = vadd.f32 0.0, %v522
      %v524 = vpop.f32.mrb[0].mxu0
      %v525 = vpop.f32.mrb[0].mxu0
      %v526 = vadd.f32 0.0, %v525
      %v527 = vpop.f32.mrb[0].mxu0
      %528 = vmatprep.mubr.bf16.mxu0 0
      %529 = vmatmul.mubr.bf16.gmra.mrb[0].mxu0 %v402
      %v530 = vpop.f32.mrb[0].mxu0
      %v531 = vadd.f32 0.0, %v530
      %v532 = vpop.f32.mrb[0].mxu0
      %v533 = vpop.f32.mrb[0].mxu0
      %v534 = vadd.f32 0.0, %v533
      %v535 = vpop.f32.mrb[0].mxu0
      %536 = vmatprep.mubr.bf16.mxu0 0
      %537 = vmatmul.mubr.bf16.gmra.mrb[0].mxu0 %v403
      %v538 = vpop.f32.mrb[0].mxu0
      %v539 = vadd.f32 0.0, %v538
      %v540 = vpop.f32.mrb[0].mxu0
      %v541 = vpop.f32.mrb[0].mxu0
      %v542 = vadd.f32 0.0, %v541
      %v543 = vpop.f32.mrb[0].mxu0
      %544 = vmatprep.mubr.bf16.mxu0 0
      %545 = vmatmul.mubr.bf16.gmra.mrb[0].mxu0 %v404
      %v546 = vpop.f32.mrb[0].mxu0
      %v547 = vadd.f32 0.0, %v546
      %v548 = vpop.f32.mrb[0].mxu0
      %v549 = vpop.f32.mrb[0].mxu0
      %v550 = vadd.f32 0.0, %v549
      %v551 = vpop.f32.mrb[0].mxu0
      %552 = vmatprep.mubr.bf16.mxu0 0
      %553 = vmatmul.mubr.bf16.gmra.mrb[0].mxu0 %v405
      %v554 = vpop.f32.mrb[0].mxu0
      %v555 = vadd.f32 0.0, %v554
      %v556 = vpop.f32.mrb[0].mxu0
      %v557 = vpop.f32.mrb[0].mxu0
      %v558 = vadd.f32 0.0, %v557
      %v559 = vpop.f32.mrb[0].mxu0
      %560 = vmatprep.mubr.bf16.mxu0 0
      %561 = vmatmul.mubr.bf16.gmra.mrb[0].mxu0 %v406
      %v562 = vpop.f32.mrb[0].mxu0
      %v563 = vadd.f32 0.0, %v562
      %v564 = vpop.f32.mrb[0].mxu0
      %v565 = vpop.f32.mrb[0].mxu0
      %v566 = vadd.f32 0.0, %v565
      %v567 = vpop.f32.mrb[0].mxu0
      %568 = vmatprep.mubr.bf16.mxu0 0
      %569 = vmatmul.mubr.bf16.gmra.mrb[0].mxu0 %v407
      %v570 = vpop.f32.mrb[0].mxu0
      %v571 = vadd.f32 0.0, %v570
      %v572 = vpop.f32.mrb[0].mxu0
      %v573 = vpop.f32.mrb[0].mxu0
      %v574 = vadd.f32 0.0, %v573
      %v575 = vpop.f32.mrb[0].mxu0
      %576 = vmatprep.mubr.bf16.mxu0 0
      %577 = vmatmul.mubr.bf16.gmra.mrb[0].mxu0 %v408
      %v578 = vpop.f32.mrb[0].mxu0
      %v579 = vadd.f32 0.0, %v578
      %v580 = vpop.f32.mrb[0].mxu0
      %v581 = vpop.f32.mrb[0].mxu0
      %v582 = vadd.f32 0.0, %v581
      %v583 = vpop.f32.mrb[0].mxu0
      %584 = vmatprep.mubr.bf16.mxu0 0
      %585 = vmatmul.mubr.bf16.gmra.mrb[0].mxu0 %v409
      %v586 = vpop.f32.mrb[0].mxu0
      %v587 = vadd.f32 0.0, %v586
      %v588 = vpop.f32.mrb[0].mxu0
      %v589 = vpop.f32.mrb[0].mxu0
      %v590 = vadd.f32 0.0, %v589
      %v591 = vpop.f32.mrb[0].mxu0
      %592 = vmatprep.mubr.bf16.mxu0 0
      %593 = vmatmul.mubr.bf16.gmra.mrb[0].mxu0 %v410
      %v594 = vpop.f32.mrb[0].mxu0
      %v595 = vadd.f32 0.0, %v594
      %v596 = vpop.f32.mrb[0].mxu0
      %v597 = vpop.f32.mrb[0].mxu0
      %v598 = vadd.f32 0.0, %v597
      %v599 = vpop.f32.mrb[0].mxu0
      %600 = vmatprep.mubr.bf16.mxu0 0
      %601 = vmatmul.mubr.bf16.gmra.mrb[0].mxu0 %v411
      %v602 = vpop.f32.mrb[0].mxu0
      %v603 = vadd.f32 0.0, %v602
      %v604 = vpop.f32.mrb[0].mxu0
      %v605 = vpop.f32.mrb[0].mxu0
      %v606 = vadd.f32 0.0, %v605
      %v607 = vpop.f32.mrb[0].mxu0
      %608 = vmatprep.mubr.bf16.mxu0 0
      %609 = vmatmul.mubr.bf16.gmra.mrb[0].mxu0 %v412
      %v610 = vpop.f32.mrb[0].mxu0
      %v611 = vadd.f32 0.0, %v610
      %v612 = vpop.f32.mrb[0].mxu0
      %v613 = vpop.f32.mrb[0].mxu0
      %v614 = vadd.f32 0.0, %v613
      %v615 = vpop.f32.mrb[0].mxu0
      %616 = vmatprep.mubr.bf16.mxu0 0
      %617 = vmatmul.mubr.bf16.gmra.mrb[0].mxu0 %v413
      %v618 = vpop.f32.mrb[0].mxu0
      %v619 = vadd.f32 0.0, %v618
      %v620 = vpop.f32.mrb[0].mxu0
      %v621 = vpop.f32.mrb[0].mxu0
      %v622 = vadd.f32 0.0, %v621
      %v623 = vpop.f32.mrb[0].mxu0
      %624 = vmatprep.mubr.bf16.mxu0 0
      %625 = vmatmul.mubr.bf16.gmra.mrb[0].mxu0 %v414
      %v626 = vpop.f32.mrb[0].mxu0
      %v627 = vadd.f32 0.0, %v626
      %v628 = vpop.f32.mrb[0].mxu0
      %v629 = vpop.f32.mrb[0].mxu0
      %v630 = vadd.f32 0.0, %v629
      %v631 = vpop.f32.mrb[0].mxu0
      %632 = vmatprep.mubr.bf16.mxu0 0
      %633 = vmatmul.mubr.bf16.gmra.mrb[0].mxu0 %v415
      %v634 = vpop.f32.mrb[0].mxu0
      %v635 = vadd.f32 0.0, %v634
      %v636 = vpop.f32.mrb[0].mxu0
      %v637 = vpop.f32.mrb[0].mxu0
      %v638 = vadd.f32 0.0, %v637
      %v639 = vpop.f32.mrb[0].mxu0
      %640 = vdwg.mxu0
      %v641 = vadd.f32 %v256, %v515
      %v642 = vadd.f32 %v257, %v518
      %v643 = vadd.f32 %v258, %v523
      %v644 = vadd.f32 %v259, %v526
      %v645 = vadd.f32 %v260, %v531
      %v646 = vadd.f32 %v261, %v534
      %v647 = vadd.f32 %v262, %v539
      %v648 = vadd.f32 %v263, %v542
      %v649 = vadd.f32 %v264, %v547
      %v650 = vadd.f32 %v265, %v550
      %v651 = vadd.f32 %v266, %v555
      %v652 = vadd.f32 %v267, %v558
      %v653 = vadd.f32 %v268, %v563
      %v654 = vadd.f32 %v269, %v566
      %v655 = vadd.f32 %v270, %v571
      %v656 = vadd.f32 %v271, %v574
      %v657 = vadd.f32 %v272, %v579
      %v658 = vadd.f32 %v273, %v582
      %v659 = vadd.f32 %v274, %v587
      %v660 = vadd.f32 %v275, %v590
      %v661 = vadd.f32 %v276, %v595
      %v662 = vadd.f32 %v277, %v598
      %v663 = vadd.f32 %v278, %v603
      %v664 = vadd.f32 %v279, %v606
      %v665 = vadd.f32 %v280, %v611
      %v666 = vadd.f32 %v281, %v614
      %v667 = vadd.f32 %v282, %v619
      %v668 = vadd.f32 %v283, %v622
      %v669 = vadd.f32 %v284, %v627
      %v670 = vadd.f32 %v285, %v630
      %v671 = vadd.f32 %v286, %v635
      %v672 = vadd.f32 %v287, %v638
      %673 = vst [vmem:[#allocation2] sm:$0xff] %v641
      %674 = vst [vmem:[#allocation2 + $0x8] sm:$0xff] %v642
      %675 = vst [vmem:[#allocation2 + $0x10] sm:$0xff] %v643
      %676 = vst [vmem:[#allocation2 + $0x18] sm:$0xff] %v644
      %677 = vst [vmem:[#allocation2 + $0x20] sm:$0xff] %v645
      %678 = vst [vmem:[#allocation2 + $0x28] sm:$0xff] %v646
      %679 = vst [vmem:[#allocation2 + $0x30] sm:$0xff] %v647
      %680 = vst [vmem:[#allocation2 + $0x38] sm:$0xff] %v648
      %681 = vst [vmem:[#allocation2 + $0x40] sm:$0xff] %v649
      %682 = vst [vmem:[#allocation2 + $0x48] sm:$0xff] %v650
      %683 = vst [vmem:[#allocation2 + $0x50] sm:$0xff] %v651
      %684 = vst [vmem:[#allocation2 + $0x58] sm:$0xff] %v652
      %685 = vst [vmem:[#allocation2 + $0x60] sm:$0xff] %v653
      %686 = vst [vmem:[#allocation2 + $0x68] sm:$0xff] %v654
      %687 = vst [vmem:[#allocation2 + $0x70] sm:$0xff] %v655
      %688 = vst [vmem:[#allocation2 + $0x78] sm:$0xff] %v656
      %689 = vst [vmem:[#allocation2 + $0x80] sm:$0xff] %v657
      %690 = vst [vmem:[#allocation2 + $0x88] sm:$0xff] %v658
      %691 = vst [vmem:[#allocation2 + $0x90] sm:$0xff] %v659
      %692 = vst [vmem:[#allocation2 + $0x98] sm:$0xff] %v660
      %693 = vst [vmem:[#allocation2 + $0xa0] sm:$0xff] %v661
      %694 = vst [vmem:[#allocation2 + $0xa8] sm:$0xff] %v662
      %695 = vst [vmem:[#allocation2 + $0xb0] sm:$0xff] %v663
      %696 = vst [vmem:[#allocation2 + $0xb8] sm:$0xff] %v664
      %697 = vst [vmem:[#allocation2 + $0xc0] sm:$0xff] %v665
      %698 = vst [vmem:[#allocation2 + $0xc8] sm:$0xff] %v666
      %699 = vst [vmem:[#allocation2 + $0xd0] sm:$0xff] %v667
      %700 = vst [vmem:[#allocation2 + $0xd8] sm:$0xff] %v668
      %701 = vst [vmem:[#allocation2 + $0xe0] sm:$0xff] %v669
      %702 = vst [vmem:[#allocation2 + $0xe8] sm:$0xff] %v670
      %703 = vst [vmem:[#allocation2 + $0xf0] sm:$0xff] %v671
      %704 = vst [vmem:[#allocation2 + $0xf8] sm:$0xff] %v672
      // Predicated region
      $region37: #{patchgan_forward.8} parent=31 // pred_check
        %p705 = pneg %p220
      $region38: #{patchgan_forward.8} parent=31 // pred_check_branch
        %707 = sbr.rel (%p705) target = $region40
      $region39: #{patchgan_forward.8} parent=31 // pred_region
        %v708 = vld [vmem:[#allocation2] sm:$0xff]
        %v709 = vld [vmem:[#allocation2 + $0x8] sm:$0xff]
        %v710 = vld [vmem:[#allocation2 + $0x10] sm:$0xff]
        %v711 = vld [vmem:[#allocation2 + $0x18] sm:$0xff]
        %v712 = vld [vmem:[#allocation2 + $0x20] sm:$0xff]
        %v713 = vld [vmem:[#allocation2 + $0x28] sm:$0xff]
        %v714 = vld [vmem:[#allocation2 + $0x30] sm:$0xff]
        %v715 = vld [vmem:[#allocation2 + $0x38] sm:$0xff]
        %v716 = vld [vmem:[#allocation2 + $0x40] sm:$0xff]
        %v717 = vld [vmem:[#allocation2 + $0x48] sm:$0xff]
        %v718 = vld [vmem:[#allocation2 + $0x50] sm:$0xff]
        %v719 = vld [vmem:[#allocation2 + $0x58] sm:$0xff]
        %v720 = vld [vmem:[#allocation2 + $0x60] sm:$0xff]
        %v721 = vld [vmem:[#allocation2 + $0x68] sm:$0xff]
        %v722 = vld [vmem:[#allocation2 + $0x70] sm:$0xff]
        %v723 = vld [vmem:[#allocation2 + $0x78] sm:$0xff]
        %v724 = vld [vmem:[#allocation2 + $0x80] sm:$0xff]
        %v725 = vld [vmem:[#allocation2 + $0x88] sm:$0xff]
        %v726 = vld [vmem:[#allocation2 + $0x90] sm:$0xff]
        %v727 = vld [vmem:[#allocation2 + $0x98] sm:$0xff]
        %v728 = vld [vmem:[#allocation2 + $0xa0] sm:$0xff]
        %v729 = vld [vmem:[#allocation2 + $0xa8] sm:$0xff]
        %v730 = vld [vmem:[#allocation2 + $0xb0] sm:$0xff]
        %v731 = vld [vmem:[#allocation2 + $0xb8] sm:$0xff]
        %v732 = vld [vmem:[#allocation2 + $0xc0] sm:$0xff]
        %v733 = vld [vmem:[#allocation2 + $0xc8] sm:$0xff]
        %v734 = vld [vmem:[#allocation2 + $0xd0] sm:$0xff]
        %v735 = vld [vmem:[#allocation2 + $0xd8] sm:$0xff]
        %v736 = vld [vmem:[#allocation2 + $0xe0] sm:$0xff]
        %v737 = vld [vmem:[#allocation2 + $0xe8] sm:$0xff]
        %v738 = vld [vmem:[#allocation2 + $0xf0] sm:$0xff]
        %v739 = vld [vmem:[#allocation2 + $0xf8] sm:$0xff]
        %v740 = vld [vmem:[%s2] sm:$0x1]
        %v742 = vlaneseq
        %v743 = vshrl.u32 %v742, 7
        %v744 = vsub.s32 0, %v743
        %v745 = vrot.slane %v740, %v744
        %v747 = vadd.f32 %v708, %v745
        %v748 = vadd.f32 %v709, %v745
        %v749 = vadd.f32 %v710, %v745
        %v750 = vadd.f32 %v711, %v745
        %v751 = vadd.f32 %v712, %v745
        %v752 = vadd.f32 %v713, %v745
        %v753 = vadd.f32 %v714, %v745
        %v754 = vadd.f32 %v715, %v745
        %v755 = vadd.f32 %v716, %v745
        %v756 = vadd.f32 %v717, %v745
        %v757 = vadd.f32 %v718, %v745
        %v758 = vadd.f32 %v719, %v745
        %v759 = vadd.f32 %v720, %v745
        %v760 = vadd.f32 %v721, %v745
        %v761 = vadd.f32 %v722, %v745
        %v762 = vadd.f32 %v723, %v745
        %v763 = vadd.f32 %v724, %v745
        %v764 = vadd.f32 %v725, %v745
        %v765 = vadd.f32 %v726, %v745
        %v766 = vadd.f32 %v727, %v745
        %v767 = vadd.f32 %v728, %v745
        %v768 = vadd.f32 %v729, %v745
        %v769 = vadd.f32 %v730, %v745
        %v770 = vadd.f32 %v731, %v745
        %v771 = vadd.f32 %v732, %v745
        %v772 = vadd.f32 %v733, %v745
        %v773 = vadd.f32 %v734, %v745
        %v774 = vadd.f32 %v735, %v745
        %v775 = vadd.f32 %v736, %v745
        %v776 = vadd.f32 %v737, %v745
        %v777 = vadd.f32 %v738, %v745
        %v778 = vadd.f32 %v739, %v745
        %vm779 = vcmp.ge.f32.partialorder %v747, 0.0
        %vm780 = vcmp.ge.f32.partialorder %v748, 0.0
        %vm781 = vcmp.ge.f32.partialorder %v749, 0.0
        %vm782 = vcmp.ge.f32.partialorder %v750, 0.0
        %vm783 = vcmp.ge.f32.partialorder %v751, 0.0
        %vm784 = vcmp.ge.f32.partialorder %v752, 0.0
        %vm785 = vcmp.ge.f32.partialorder %v753, 0.0
        %vm786 = vcmp.ge.f32.partialorder %v754, 0.0
        %vm787 = vcmp.ge.f32.partialorder %v755, 0.0
        %vm788 = vcmp.ge.f32.partialorder %v756, 0.0
        %vm789 = vcmp.ge.f32.partialorder %v757, 0.0
        %vm790 = vcmp.ge.f32.partialorder %v758, 0.0
        %vm791 = vcmp.ge.f32.partialorder %v759, 0.0
        %vm792 = vcmp.ge.f32.partialorder %v760, 0.0
        %vm793 = vcmp.ge.f32.partialorder %v761, 0.0
        %vm794 = vcmp.ge.f32.partialorder %v762, 0.0
        %vm795 = vcmp.ge.f32.partialorder %v763, 0.0
        %vm796 = vcmp.ge.f32.partialorder %v764, 0.0
        %vm797 = vcmp.ge.f32.partialorder %v765, 0.0
        %vm798 = vcmp.ge.f32.partialorder %v766, 0.0
        %vm799 = vcmp.ge.f32.partialorder %v767, 0.0
        %vm800 = vcmp.ge.f32.partialorder %v768, 0.0
        %vm801 = vcmp.ge.f32.partialorder %v769, 0.0
        %vm802 = vcmp.ge.f32.partialorder %v770, 0.0
        %vm803 = vcmp.ge.f32.partialorder %v771, 0.0
        %vm804 = vcmp.ge.f32.partialorder %v772, 0.0
        %vm805 = vcmp.ge.f32.partialorder %v773, 0.0
        %vm806 = vcmp.ge.f32.partialorder %v774, 0.0
        %vm807 = vcmp.ge.f32.partialorder %v775, 0.0
        %vm808 = vcmp.ge.f32.partialorder %v776, 0.0
        %vm809 = vcmp.ge.f32.partialorder %v777, 0.0
        %vm810 = vcmp.ge.f32.partialorder %v778, 0.0
        %v811 = vmul.f32 %v747, 0.2
        %v812 = vmul.f32 %v748, 0.2
        %v813 = vmul.f32 %v749, 0.2
        %v814 = vmul.f32 %v750, 0.2
        %v815 = vmul.f32 %v751, 0.2
        %v816 = vmul.f32 %v752, 0.2
        %v817 = vmul.f32 %v753, 0.2
        %v818 = vmul.f32 %v754, 0.2
        %v819 = vmul.f32 %v755, 0.2
        %v820 = vmul.f32 %v756, 0.2
        %v821 = vmul.f32 %v757, 0.2
        %v822 = vmul.f32 %v758, 0.2
        %v823 = vmul.f32 %v759, 0.2
        %v824 = vmul.f32 %v760, 0.2
        %v825 = vmul.f32 %v761, 0.2
        %v826 = vmul.f32 %v762, 0.2
        %v827 = vmul.f32 %v763, 0.2
        %v828 = vmul.f32 %v764, 0.2
        %v829 = vmul.f32 %v765, 0.2
        %v830 = vmul.f32 %v766, 0.2
        %v831 = vmul.f32 %v767, 0.2
        %v832 = vmul.f32 %v768, 0.2
        %v833 = vmul.f32 %v769, 0.2
        %v834 = vmul.f32 %v770, 0.2
        %v835 = vmul.f32 %v771, 0.2
        %v836 = vmul.f32 %v772, 0.2
        %v837 = vmul.f32 %v773, 0.2
        %v838 = vmul.f32 %v774, 0.2
        %v839 = vmul.f32 %v775, 0.2
        %v840 = vmul.f32 %v776, 0.2
        %v841 = vmul.f32 %v777, 0.2
        %v842 = vmul.f32 %v778, 0.2
        %v843 = vsel %vm779, %v747, %v811
        %v844 = vsel %vm780, %v748, %v812
        %v845 = vsel %vm781, %v749, %v813
        %v846 = vsel %vm782, %v750, %v814
        %v847 = vsel %vm783, %v751, %v815
        %v848 = vsel %vm784, %v752, %v816
        %v849 = vsel %vm785, %v753, %v817
        %v850 = vsel %vm786, %v754, %v818
        %v851 = vsel %vm787, %v755, %v819
        %v852 = vsel %vm788, %v756, %v820
        %v853 = vsel %vm789, %v757, %v821
        %v854 = vsel %vm790, %v758, %v822
        %v855 = vsel %vm791, %v759, %v823
        %v856 = vsel %vm792, %v760, %v824
        %v857 = vsel %vm793, %v761, %v825
        %v858 = vsel %vm794, %v762, %v826
        %v859 = vsel %vm795, %v763, %v827
        %v860 = vsel %vm796, %v764, %v828
        %v861 = vsel %vm797, %v765, %v829
        %v862 = vsel %vm798, %v766, %v830
        %v863 = vsel %vm799, %v767, %v831
        %v864 = vsel %vm800, %v768, %v832
        %v865 = vsel %vm801, %v769, %v833
        %v866 = vsel %vm802, %v770, %v834
        %v867 = vsel %vm803, %v771, %v835
        %v868 = vsel %vm804, %v772, %v836
        %v869 = vsel %vm805, %v773, %v837
        %v870 = vsel %vm806, %v774, %v838
        %v871 = vsel %vm807, %v775, %v839
        %v872 = vsel %vm808, %v776, %v840
        %v873 = vsel %vm809, %v777, %v841
        %v874 = vsel %vm810, %v778, %v842
        %v875 = vpack.c.bf16 %v844, %v843
        %v876 = vpack.c.bf16 %v846, %v845
        %v877 = vpack.c.bf16 %v848, %v847
        %v878 = vpack.c.bf16 %v850, %v849
        %v879 = vpack.c.bf16 %v852, %v851
        %v880 = vpack.c.bf16 %v854, %v853
        %v881 = vpack.c.bf16 %v856, %v855
        %v882 = vpack.c.bf16 %v858, %v857
        %v883 = vpack.c.bf16 %v860, %v859
        %v884 = vpack.c.bf16 %v862, %v861
        %v885 = vpack.c.bf16 %v864, %v863
        %v886 = vpack.c.bf16 %v866, %v865
        %v887 = vpack.c.bf16 %v868, %v867
        %v888 = vpack.c.bf16 %v870, %v869
        %v889 = vpack.c.bf16 %v872, %v871
        %v890 = vpack.c.bf16 %v874, %v873
        %v907 = vunpack.c.l.b16 %v875
        %v908 = vunpack.c.h.b16 %v875
        %v909 = vunpack.c.l.b16 %v876
        %v910 = vunpack.c.h.b16 %v876
        %v911 = vunpack.c.l.b16 %v877
        %v912 = vunpack.c.h.b16 %v877
        %v913 = vunpack.c.l.b16 %v878
        %v914 = vunpack.c.h.b16 %v878
        %v915 = vunpack.c.l.b16 %v879
        %v916 = vunpack.c.h.b16 %v879
        %v917 = vunpack.c.l.b16 %v880
        %v918 = vunpack.c.h.b16 %v880
        %v919 = vunpack.c.l.b16 %v881
        %v920 = vunpack.c.h.b16 %v881
        %v921 = vunpack.c.l.b16 %v882
        %v922 = vunpack.c.h.b16 %v882
        %v923 = vunpack.c.l.b16 %v883
        %v924 = vunpack.c.h.b16 %v883
        %v925 = vunpack.c.l.b16 %v884
        %v926 = vunpack.c.h.b16 %v884
        %v927 = vunpack.c.l.b16 %v885
        %v928 = vunpack.c.h.b16 %v885
        %v929 = vunpack.c.l.b16 %v886
        %v930 = vunpack.c.h.b16 %v886
        %v931 = vunpack.c.l.b16 %v887
        %v932 = vunpack.c.h.b16 %v887
        %v933 = vunpack.c.l.b16 %v888
        %v934 = vunpack.c.h.b16 %v888
        %v935 = vunpack.c.l.b16 %v889
        %v936 = vunpack.c.h.b16 %v889
        %v937 = vunpack.c.l.b16 %v890
        %v938 = vunpack.c.h.b16 %v890
        %v939 = vpack.c.b16 %v907, %v907
        %v940 = vpack.c.b16 %v908, %v908
        %v941 = vpack.c.b16 %v909, %v909
        %v942 = vpack.c.b16 %v910, %v910
        %v943 = vpack.c.b16 %v911, %v911
        %v944 = vpack.c.b16 %v912, %v912
        %v945 = vpack.c.b16 %v913, %v913
        %v946 = vpack.c.b16 %v914, %v914
        %v947 = vpack.c.b16 %v915, %v915
        %v948 = vpack.c.b16 %v916, %v916
        %v949 = vpack.c.b16 %v917, %v917
        %v950 = vpack.c.b16 %v918, %v918
        %v951 = vpack.c.b16 %v919, %v919
        %v952 = vpack.c.b16 %v920, %v920
        %v953 = vpack.c.b16 %v921, %v921
        %v954 = vpack.c.b16 %v922, %v922
        %v955 = vpack.c.b16 %v923, %v923
        %v956 = vpack.c.b16 %v924, %v924
        %v957 = vpack.c.b16 %v925, %v925
        %v958 = vpack.c.b16 %v926, %v926
        %v959 = vpack.c.b16 %v927, %v927
        %v960 = vpack.c.b16 %v928, %v928
        %v961 = vpack.c.b16 %v929, %v929
        %v962 = vpack.c.b16 %v930, %v930
        %v963 = vpack.c.b16 %v931, %v931
        %v964 = vpack.c.b16 %v932, %v932
        %v965 = vpack.c.b16 %v933, %v933
        %v966 = vpack.c.b16 %v934, %v934
        %v967 = vpack.c.b16 %v935, %v935
        %v968 = vpack.c.b16 %v936, %v936
        %v969 = vpack.c.b16 %v937, %v937
        %v970 = vpack.c.b16 %v938, %v938
        %1003 = vst [vmem:[%s217] sm:$0xf] %v939
        %1004 = vst [vmem:[%s217 + $0x4] sm:$0xf] %v940
        %1005 = vst [vmem:[%s217 + $0x8] sm:$0xf] %v941
        %1006 = vst [vmem:[%s217 + $0xc] sm:$0xf] %v942
        %1007 = vst [vmem:[%s217 + $0x10] sm:$0xf] %v943
        %1008 = vst [vmem:[%s217 + $0x14] sm:$0xf] %v944
        %1009 = vst [vmem:[%s217 + $0x18] sm:$0xf] %v945
        %1010 = vst [vmem:[%s217 + $0x1c] sm:$0xf] %v946
        %1011 = vst [vmem:[%s217 + $0x20] sm:$0xf] %v947
        %1012 = vst [vmem:[%s217 + $0x24] sm:$0xf] %v948
        %1013 = vst [vmem:[%s217 + $0x28] sm:$0xf] %v949
        %1014 = vst [vmem:[%s217 + $0x2c] sm:$0xf] %v950
        %1015 = vst [vmem:[%s217 + $0x30] sm:$0xf] %v951
        %1016 = vst [vmem:[%s217 + $0x34] sm:$0xf] %v952
        %1017 = vst [vmem:[%s217 + $0x38] sm:$0xf] %v953
        %1018 = vst [vmem:[%s217 + $0x3c] sm:$0xf] %v954
        %1019 = vst [vmem:[%s217 + $0x40] sm:$0xf] %v955
        %1020 = vst [vmem:[%s217 + $0x44] sm:$0xf] %v956
        %1021 = vst [vmem:[%s217 + $0x48] sm:$0xf] %v957
        %1022 = vst [vmem:[%s217 + $0x4c] sm:$0xf] %v958
        %1023 = vst [vmem:[%s217 + $0x50] sm:$0xf] %v959
        %1024 = vst [vmem:[%s217 + $0x54] sm:$0xf] %v960
        %1025 = vst [vmem:[%s217 + $0x58] sm:$0xf] %v961
        %1026 = vst [vmem:[%s217 + $0x5c] sm:$0xf] %v962
        %1027 = vst [vmem:[%s217 + $0x60] sm:$0xf] %v963
        %1028 = vst [vmem:[%s217 + $0x64] sm:$0xf] %v964
        %1029 = vst [vmem:[%s217 + $0x68] sm:$0xf] %v965
        %1030 = vst [vmem:[%s217 + $0x6c] sm:$0xf] %v966
        %1031 = vst [vmem:[%s217 + $0x70] sm:$0xf] %v967
        %1032 = vst [vmem:[%s217 + $0x74] sm:$0xf] %v968
        %1033 = vst [vmem:[%s217 + $0x78] sm:$0xf] %v969
        %1034 = vst [vmem:[%s217 + $0x7c] sm:$0xf] %v970
      $region40: #{patchgan_forward.8} parent=31 // pred_fallthru
        _
      %s1035 = smul.u32 32, %s18
      %p1036 = scmp.lt.s32.totalorder %s1035, 63
      %s1037 = scalar_select %p1036, %s1035, 63
      %s1038 = smul.addr %s1037, 4
      %s1039 = scalar_lea.vmem %s3, %s1038
      // Predicated region
      $region41: #{patchgan_forward.8} parent=31 // pred_check
        %p1040 = pneg %p119
      $region42: #{patchgan_forward.8} parent=31 // pred_check_branch
        %1042 = sbr.rel (%p1040) target = $region44
      $region43: #{patchgan_forward.8} parent=31 // pred_region
        %s1043 = smul.u32 32, %s18
      $region44: #{patchgan_forward.8} parent=31 // pred_fallthru
        _
    $region32: #{patchgan_forward.8} parent=5 // pred_fallthru
      _
    %p1044 = scmp.le.s32.totalorder 2, %s9
    // Predicated region
    $region45: #{patchgan_forward.8} parent=5 // pred_check
      %p1045 = pneg %p1044
    $region46: #{patchgan_forward.8} parent=5 // pred_check_branch
      %1047 = sbr.rel (%p1045) target = $region48
    $region47: #{patchgan_forward.8} parent=5 // pred_region
      %s1048 = ssub.s32 %s9, 2
      // Predicated region
      $region49: #{patchgan_forward.8} parent=47 // pred_check
        %p1049 = pneg %p125
      $region50: #{patchgan_forward.8} parent=47 // pred_check_branch
        %1051 = sbr.rel (%p1049) target = $region52
      $region51: #{patchgan_forward.8} parent=47 // pred_region
        %s1052 = smul.u32 32, %s20
        %p1053 = scmp.lt.s32.totalorder %s1052, 63
        %s1054 = scalar_select %p1053, %s1052, 63
        %s1055 = smul.addr %s1054, 4
        %s1056 = scalar_lea.vmem %s3, %s1055
      $region52: #{patchgan_forward.8} parent=47 // pred_fallthru
        _
    $region48: #{patchgan_forward.8} parent=5 // pred_fallthru
      _
  $region6: #{patchgan_forward.8} parent=0 // loop_footer
    %s13 = sadd.s32 1, %s9
  $region7: #{patchgan_forward.8} parent=0 // loop_footer_branch
    %8 = sbr.rel target = $region3
  $region8: #{patchgan_forward.8} parent=0 // loop_exit
    _

// kernel: patchgan_forward.9
$region0: #{patchgan_forward.9}
  #allocation0 [shape = 'u32[]', space=smem, size = 0x4, offset = 0x4, fixed_abs, tag = 'smem constant byte address 0x4 - core index']
  #allocation1 [shape = 'u32[144,128]{1,0:T(1,128)}', space=vmem, size = 0x12000, scoped, tag = 'internal scratch']
  #allocation2 [shape = 'f32[128,128]{1,0:T(8,128)}', space=vmem, size = 0x10000, scoped, tag = 'scratch operand']
  %s0 = inlined_call_operand.vmem [shape: bf16[128,512], index: 0, kind: input, shape index: {}]
  %s1 = inlined_call_operand.vmem [shape: bf16[512,128], index: 1, kind: input, shape index: {}]
  %s2 = inlined_call_operand.vmem [shape: f32[128,128], index: 2, kind: output, shape index: {0}]
  %s3 = inlined_call_operand.vmem [shape: f32[8,128], index: 3, kind: output, shape index: {1}]
  %4 = xla_tuple %s2, %s3
  %s5 = sld [smem:[#allocation0]]
  $region34: #{patchgan_forward.9} parent=0
    _
  %s7 = ssub.s32 1, %s5
  %s8 = scalar_select 0, %s7, %s5
  // Predicated region
  $region2: #{patchgan_forward.9} parent=0 // pred_check
    _
  $region3: #{patchgan_forward.9} parent=0 // pred_check_branch
    %10 = sbr.rel (0) target = $region5
  $region4: #{patchgan_forward.9} parent=0 // pred_region
    _
  $region5: #{patchgan_forward.9} parent=0 // pred_fallthru
    _
  // Predicated region
  $region6: #{patchgan_forward.9} parent=0 // pred_check
    _
  $region7: #{patchgan_forward.9} parent=0 // pred_check_branch
    %12 = sbr.rel (0) target = $region9
  $region8: #{patchgan_forward.9} parent=0 // pred_region
    _
  $region9: #{patchgan_forward.9} parent=0 // pred_fallthru
    _
  %p14 = scmp.eq.s32.totalorder 0, 0
  // Predicated region
  $region10: #{patchgan_forward.9} parent=0 // pred_check
    %p15 = pneg %p14
  $region11: #{patchgan_forward.9} parent=0 // pred_check_branch
    %17 = sbr.rel (%p15) target = $region13
  $region12: #{patchgan_forward.9} parent=0 // pred_region
    %18 = vst [vmem:[#allocation2] sm:$0xff] 0.0
    %19 = vst [vmem:[#allocation2 + $0x8] sm:$0xff] 0.0
    %20 = vst [vmem:[#allocation2 + $0x10] sm:$0xff] 0.0
    %21 = vst [vmem:[#allocation2 + $0x18] sm:$0xff] 0.0
    %22 = vst [vmem:[#allocation2 + $0x20] sm:$0xff] 0.0
    %23 = vst [vmem:[#allocation2 + $0x28] sm:$0xff] 0.0
    %24 = vst [vmem:[#allocation2 + $0x30] sm:$0xff] 0.0
    %25 = vst [vmem:[#allocation2 + $0x38] sm:$0xff] 0.0
    %26 = vst [vmem:[#allocation2 + $0x40] sm:$0xff] 0.0
    %27 = vst [vmem:[#allocation2 + $0x48] sm:$0xff] 0.0
    %28 = vst [vmem:[#allocation2 + $0x50] sm:$0xff] 0.0
    %29 = vst [vmem:[#allocation2 + $0x58] sm:$0xff] 0.0
    %30 = vst [vmem:[#allocation2 + $0x60] sm:$0xff] 0.0
    %31 = vst [vmem:[#allocation2 + $0x68] sm:$0xff] 0.0
    %32 = vst [vmem:[#allocation2 + $0x70] sm:$0xff] 0.0
    %33 = vst [vmem:[#allocation2 + $0x78] sm:$0xff] 0.0
  $region13: #{patchgan_forward.9} parent=0 // pred_fallthru
    _
  %v34 = vld [vmem:[#allocation2] sm:$0xff]
  %v35 = vld [vmem:[#allocation2 + $0x8] sm:$0xff]
  %v36 = vld [vmem:[#allocation2 + $0x10] sm:$0xff]
  %v37 = vld [vmem:[#allocation2 + $0x18] sm:$0xff]
  %v38 = vld [vmem:[#allocation2 + $0x20] sm:$0xff]
  %v39 = vld [vmem:[#allocation2 + $0x28] sm:$0xff]
  %v40 = vld [vmem:[#allocation2 + $0x30] sm:$0xff]
  %v41 = vld [vmem:[#allocation2 + $0x38] sm:$0xff]
  %v42 = vld [vmem:[#allocation2 + $0x40] sm:$0xff]
  %v43 = vld [vmem:[#allocation2 + $0x48] sm:$0xff]
  %v44 = vld [vmem:[#allocation2 + $0x50] sm:$0xff]
  %v45 = vld [vmem:[#allocation2 + $0x58] sm:$0xff]
  %v46 = vld [vmem:[#allocation2 + $0x60] sm:$0xff]
  %v47 = vld [vmem:[#allocation2 + $0x68] sm:$0xff]
  %v48 = vld [vmem:[#allocation2 + $0x70] sm:$0xff]
  %v49 = vld [vmem:[#allocation2 + $0x78] sm:$0xff]
  %v50 = vld [vmem:[%s0] sm:$0xff]
  %v51 = vld [vmem:[%s0 + $0x8] sm:$0xff]
  %v52 = vld [vmem:[%s0 + $0x10] sm:$0xff]
  %v53 = vld [vmem:[%s0 + $0x18] sm:$0xff]
  %v54 = vld [vmem:[%s0 + $0x20] sm:$0xff]
  %v55 = vld [vmem:[%s0 + $0x28] sm:$0xff]
  %v56 = vld [vmem:[%s0 + $0x30] sm:$0xff]
  %v57 = vld [vmem:[%s0 + $0x38] sm:$0xff]
  %v58 = vld [vmem:[%s0 + $0x40] sm:$0xff]
  %v59 = vld [vmem:[%s0 + $0x48] sm:$0xff]
  %v60 = vld [vmem:[%s0 + $0x50] sm:$0xff]
  %v61 = vld [vmem:[%s0 + $0x58] sm:$0xff]
  %v62 = vld [vmem:[%s0 + $0x60] sm:$0xff]
  %v63 = vld [vmem:[%s0 + $0x68] sm:$0xff]
  %v64 = vld [vmem:[%s0 + $0x70] sm:$0xff]
  %v65 = vld [vmem:[%s0 + $0x78] sm:$0xff]
  %v66 = vld [vmem:[%s0 + $0x80] sm:$0xff]
  %v67 = vld [vmem:[%s0 + $0x88] sm:$0xff]
  %v68 = vld [vmem:[%s0 + $0x90] sm:$0xff]
  %v69 = vld [vmem:[%s0 + $0x98] sm:$0xff]
  %v70 = vld [vmem:[%s0 + $0xa0] sm:$0xff]
  %v71 = vld [vmem:[%s0 + $0xa8] sm:$0xff]
  %v72 = vld [vmem:[%s0 + $0xb0] sm:$0xff]
  %v73 = vld [vmem:[%s0 + $0xb8] sm:$0xff]
  %v74 = vld [vmem:[%s0 + $0xc0] sm:$0xff]
  %v75 = vld [vmem:[%s0 + $0xc8] sm:$0xff]
  %v76 = vld [vmem:[%s0 + $0xd0] sm:$0xff]
  %v77 = vld [vmem:[%s0 + $0xd8] sm:$0xff]
  %v78 = vld [vmem:[%s0 + $0xe0] sm:$0xff]
  %v79 = vld [vmem:[%s0 + $0xe8] sm:$0xff]
  %v80 = vld [vmem:[%s0 + $0xf0] sm:$0xff]
  %v81 = vld [vmem:[%s0 + $0xf8] sm:$0xff]
  %v82 = vld [vmem:[%s1] sm:$0xf]
  %v83 = vld [vmem:[%s1 + $0x4] sm:$0xf]
  %v84 = vld [vmem:[%s1 + $0x8] sm:$0xf]
  %v85 = vld [vmem:[%s1 + $0xc] sm:$0xf]
  %v86 = vld [vmem:[%s1 + $0x10] sm:$0xf]
  %v87 = vld [vmem:[%s1 + $0x14] sm:$0xf]
  %v88 = vld [vmem:[%s1 + $0x18] sm:$0xf]
  %v89 = vld [vmem:[%s1 + $0x1c] sm:$0xf]
  %v90 = vld [vmem:[%s1 + $0x20] sm:$0xf]
  %v91 = vld [vmem:[%s1 + $0x24] sm:$0xf]
  %v92 = vld [vmem:[%s1 + $0x28] sm:$0xf]
  %v93 = vld [vmem:[%s1 + $0x2c] sm:$0xf]
  %v94 = vld [vmem:[%s1 + $0x30] sm:$0xf]
  %v95 = vld [vmem:[%s1 + $0x34] sm:$0xf]
  %v96 = vld [vmem:[%s1 + $0x38] sm:$0xf]
  %v97 = vld [vmem:[%s1 + $0x3c] sm:$0xf]
  %v98 = vld [vmem:[%s1 + $0x40] sm:$0xf]
  %v99 = vld [vmem:[%s1 + $0x44] sm:$0xf]
  %v100 = vld [vmem:[%s1 + $0x48] sm:$0xf]
  %v101 = vld [vmem:[%s1 + $0x4c] sm:$0xf]
  %v102 = vld [vmem:[%s1 + $0x50] sm:$0xf]
  %v103 = vld [vmem:[%s1 + $0x54] sm:$0xf]
  %v104 = vld [vmem:[%s1 + $0x58] sm:$0xf]
  %v105 = vld [vmem:[%s1 + $0x5c] sm:$0xf]
  %v106 = vld [vmem:[%s1 + $0x60] sm:$0xf]
  %v107 = vld [vmem:[%s1 + $0x64] sm:$0xf]
  %v108 = vld [vmem:[%s1 + $0x68] sm:$0xf]
  %v109 = vld [vmem:[%s1 + $0x6c] sm:$0xf]
  %v110 = vld [vmem:[%s1 + $0x70] sm:$0xf]
  %v111 = vld [vmem:[%s1 + $0x74] sm:$0xf]
  %v112 = vld [vmem:[%s1 + $0x78] sm:$0xf]
  %v113 = vld [vmem:[%s1 + $0x7c] sm:$0xf]
  %v114 = vld [vmem:[%s1 + $0x80] sm:$0xf]
  %v115 = vld [vmem:[%s1 + $0x84] sm:$0xf]
  %v116 = vld [vmem:[%s1 + $0x88] sm:$0xf]
  %v117 = vld [vmem:[%s1 + $0x8c] sm:$0xf]
  %v118 = vld [vmem:[%s1 + $0x90] sm:$0xf]
  %v119 = vld [vmem:[%s1 + $0x94] sm:$0xf]
  %v120 = vld [vmem:[%s1 + $0x98] sm:$0xf]
  %v121 = vld [vmem:[%s1 + $0x9c] sm:$0xf]
  %v122 = vld [vmem:[%s1 + $0xa0] sm:$0xf]
  %v123 = vld [vmem:[%s1 + $0xa4] sm:$0xf]
  %v124 = vld [vmem:[%s1 + $0xa8] sm:$0xf]
  %v125 = vld [vmem:[%s1 + $0xac] sm:$0xf]
  %v126 = vld [vmem:[%s1 + $0xb0] sm:$0xf]
  %v127 = vld [vmem:[%s1 + $0xb4] sm:$0xf]
  %v128 = vld [vmem:[%s1 + $0xb8] sm:$0xf]
  %v129 = vld [vmem:[%s1 + $0xbc] sm:$0xf]
  %v130 = vld [vmem:[%s1 + $0xc0] sm:$0xf]
  %v131 = vld [vmem:[%s1 + $0xc4] sm:$0xf]
  %v132 = vld [vmem:[%s1 + $0xc8] sm:$0xf]
  %v133 = vld [vmem:[%s1 + $0xcc] sm:$0xf]
  %v134 = vld [vmem:[%s1 + $0xd0] sm:$0xf]
  %v135 = vld [vmem:[%s1 + $0xd4] sm:$0xf]
  %v136 = vld [vmem:[%s1 + $0xd8] sm:$0xf]
  %v137 = vld [vmem:[%s1 + $0xdc] sm:$0xf]
  %v138 = vld [vmem:[%s1 + $0xe0] sm:$0xf]
  %v139 = vld [vmem:[%s1 + $0xe4] sm:$0xf]
  %v140 = vld [vmem:[%s1 + $0xe8] sm:$0xf]
  %v141 = vld [vmem:[%s1 + $0xec] sm:$0xf]
  %v142 = vld [vmem:[%s1 + $0xf0] sm:$0xf]
  %v143 = vld [vmem:[%s1 + $0xf4] sm:$0xf]
  %v144 = vld [vmem:[%s1 + $0xf8] sm:$0xf]
  %v145 = vld [vmem:[%s1 + $0xfc] sm:$0xf]
  %v178 = vunpack.c.l.b16 %v50
  %v179 = vunpack.c.h.b16 %v50
  %v180 = vunpack.c.l.b16 %v51
  %v181 = vunpack.c.h.b16 %v51
  %v182 = vunpack.c.l.b16 %v52
  %v183 = vunpack.c.h.b16 %v52
  %v184 = vunpack.c.l.b16 %v53
  %v185 = vunpack.c.h.b16 %v53
  %v186 = vunpack.c.l.b16 %v54
  %v187 = vunpack.c.h.b16 %v54
  %v188 = vunpack.c.l.b16 %v55
  %v189 = vunpack.c.h.b16 %v55
  %v190 = vunpack.c.l.b16 %v56
  %v191 = vunpack.c.h.b16 %v56
  %v192 = vunpack.c.l.b16 %v57
  %v193 = vunpack.c.h.b16 %v57
  %v194 = vunpack.c.l.b16 %v58
  %v195 = vunpack.c.h.b16 %v58
  %v196 = vunpack.c.l.b16 %v59
  %v197 = vunpack.c.h.b16 %v59
  %v198 = vunpack.c.l.b16 %v60
  %v199 = vunpack.c.h.b16 %v60
  %v200 = vunpack.c.l.b16 %v61
  %v201 = vunpack.c.h.b16 %v61
  %v202 = vunpack.c.l.b16 %v62
  %v203 = vunpack.c.h.b16 %v62
  %v204 = vunpack.c.l.b16 %v63
  %v205 = vunpack.c.h.b16 %v63
  %v206 = vunpack.c.l.b16 %v64
  %v207 = vunpack.c.h.b16 %v64
  %v208 = vunpack.c.l.b16 %v65
  %v209 = vunpack.c.h.b16 %v65
  %v210 = vunpack.c.l.b16 %v66
  %v211 = vunpack.c.h.b16 %v66
  %v212 = vunpack.c.l.b16 %v67
  %v213 = vunpack.c.h.b16 %v67
  %v214 = vunpack.c.l.b16 %v68
  %v215 = vunpack.c.h.b16 %v68
  %v216 = vunpack.c.l.b16 %v69
  %v217 = vunpack.c.h.b16 %v69
  %v218 = vunpack.c.l.b16 %v70
  %v219 = vunpack.c.h.b16 %v70
  %v220 = vunpack.c.l.b16 %v71
  %v221 = vunpack.c.h.b16 %v71
  %v222 = vunpack.c.l.b16 %v72
  %v223 = vunpack.c.h.b16 %v72
  %v224 = vunpack.c.l.b16 %v73
  %v225 = vunpack.c.h.b16 %v73
  %v226 = vunpack.c.l.b16 %v74
  %v227 = vunpack.c.h.b16 %v74
  %v228 = vunpack.c.l.b16 %v75
  %v229 = vunpack.c.h.b16 %v75
  %v230 = vunpack.c.l.b16 %v76
  %v231 = vunpack.c.h.b16 %v76
  %v232 = vunpack.c.l.b16 %v77
  %v233 = vunpack.c.h.b16 %v77
  %v234 = vunpack.c.l.b16 %v78
  %v235 = vunpack.c.h.b16 %v78
  %v236 = vunpack.c.l.b16 %v79
  %v237 = vunpack.c.h.b16 %v79
  %v238 = vunpack.c.l.b16 %v80
  %v239 = vunpack.c.h.b16 %v80
  %v240 = vunpack.c.l.b16 %v81
  %v241 = vunpack.c.h.b16 %v81
  %v242 = vpack.c.b16 %v182, %v178
  %v243 = vpack.c.b16 %v183, %v179
  %v244 = vpack.c.b16 %v184, %v180
  %v245 = vpack.c.b16 %v185, %v181
  %v246 = vpack.c.b16 %v190, %v186
  %v247 = vpack.c.b16 %v191, %v187
  %v248 = vpack.c.b16 %v192, %v188
  %v249 = vpack.c.b16 %v193, %v189
  %v250 = vpack.c.b16 %v198, %v194
  %v251 = vpack.c.b16 %v199, %v195
  %v252 = vpack.c.b16 %v200, %v196
  %v253 = vpack.c.b16 %v201, %v197
  %v254 = vpack.c.b16 %v206, %v202
  %v255 = vpack.c.b16 %v207, %v203
  %v256 = vpack.c.b16 %v208, %v204
  %v257 = vpack.c.b16 %v209, %v205
  %v258 = vpack.c.b16 %v214, %v210
  %v259 = vpack.c.b16 %v215, %v211
  %v260 = vpack.c.b16 %v216, %v212
  %v261 = vpack.c.b16 %v217, %v213
  %v262 = vpack.c.b16 %v222, %v218
  %v263 = vpack.c.b16 %v223, %v219
  %v264 = vpack.c.b16 %v224, %v220
  %v265 = vpack.c.b16 %v225, %v221
  %v266 = vpack.c.b16 %v230, %v226
  %v267 = vpack.c.b16 %v231, %v227
  %v268 = vpack.c.b16 %v232, %v228
  %v269 = vpack.c.b16 %v233, %v229
  %v270 = vpack.c.b16 %v238, %v234
  %v271 = vpack.c.b16 %v239, %v235
  %v272 = vpack.c.b16 %v240, %v236
  %v273 = vpack.c.b16 %v241, %v237
  %v370 = vunpack.c.l.b16 %v82
  %v371 = vunpack.c.l.b16 %v83
  %v372 = vunpack.c.l.b16 %v84
  %v373 = vunpack.c.l.b16 %v85
  %v374 = vunpack.c.l.b16 %v86
  %v375 = vunpack.c.l.b16 %v87
  %v376 = vunpack.c.l.b16 %v88
  %v377 = vunpack.c.l.b16 %v89
  %v378 = vunpack.c.l.b16 %v90
  %v379 = vunpack.c.l.b16 %v91
  %v380 = vunpack.c.l.b16 %v92
  %v381 = vunpack.c.l.b16 %v93
  %v382 = vunpack.c.l.b16 %v94
  %v383 = vunpack.c.l.b16 %v95
  %v384 = vunpack.c.l.b16 %v96
  %v385 = vunpack.c.l.b16 %v97
  %v386 = vunpack.c.l.b16 %v98
  %v387 = vunpack.c.l.b16 %v99
  %v388 = vunpack.c.l.b16 %v100
  %v389 = vunpack.c.l.b16 %v101
  %v390 = vunpack.c.l.b16 %v102
  %v391 = vunpack.c.l.b16 %v103
  %v392 = vunpack.c.l.b16 %v104
  %v393 = vunpack.c.l.b16 %v105
  %v394 = vunpack.c.l.b16 %v106
  %v395 = vunpack.c.l.b16 %v107
  %v396 = vunpack.c.l.b16 %v108
  %v397 = vunpack.c.l.b16 %v109
  %v398 = vunpack.c.l.b16 %v110
  %v399 = vunpack.c.l.b16 %v111
  %v400 = vunpack.c.l.b16 %v112
  %v401 = vunpack.c.l.b16 %v113
  %v402 = vunpack.c.l.b16 %v114
  %v403 = vunpack.c.l.b16 %v115
  %v404 = vunpack.c.l.b16 %v116
  %v405 = vunpack.c.l.b16 %v117
  %v406 = vunpack.c.l.b16 %v118
  %v407 = vunpack.c.l.b16 %v119
  %v408 = vunpack.c.l.b16 %v120
  %v409 = vunpack.c.l.b16 %v121
  %v410 = vunpack.c.l.b16 %v122
  %v411 = vunpack.c.l.b16 %v123
  %v412 = vunpack.c.l.b16 %v124
  %v413 = vunpack.c.l.b16 %v125
  %v414 = vunpack.c.l.b16 %v126
  %v415 = vunpack.c.l.b16 %v127
  %v416 = vunpack.c.l.b16 %v128
  %v417 = vunpack.c.l.b16 %v129
  %v418 = vunpack.c.l.b16 %v130
  %v419 = vunpack.c.l.b16 %v131
  %v420 = vunpack.c.l.b16 %v132
  %v421 = vunpack.c.l.b16 %v133
  %v422 = vunpack.c.l.b16 %v134
  %v423 = vunpack.c.l.b16 %v135
  %v424 = vunpack.c.l.b16 %v136
  %v425 = vunpack.c.l.b16 %v137
  %v426 = vunpack.c.l.b16 %v138
  %v427 = vunpack.c.l.b16 %v139
  %v428 = vunpack.c.l.b16 %v140
  %v429 = vunpack.c.l.b16 %v141
  %v430 = vunpack.c.l.b16 %v142
  %v431 = vunpack.c.l.b16 %v143
  %v432 = vunpack.c.l.b16 %v144
  %v433 = vunpack.c.l.b16 %v145
  %v434 = vpack.c.b16 %v371, %v370
  %v435 = vpack.c.b16 %v373, %v372
  %v436 = vpack.c.b16 %v375, %v374
  %v437 = vpack.c.b16 %v377, %v376
  %v438 = vpack.c.b16 %v379, %v378
  %v439 = vpack.c.b16 %v381, %v380
  %v440 = vpack.c.b16 %v383, %v382
  %v441 = vpack.c.b16 %v385, %v384
  %v442 = vpack.c.b16 %v387, %v386
  %v443 = vpack.c.b16 %v389, %v388
  %v444 = vpack.c.b16 %v391, %v390
  %v445 = vpack.c.b16 %v393, %v392
  %v446 = vpack.c.b16 %v395, %v394
  %v447 = vpack.c.b16 %v397, %v396
  %v448 = vpack.c.b16 %v399, %v398
  %v449 = vpack.c.b16 %v401, %v400
  %v450 = vpack.c.b16 %v403, %v402
  %v451 = vpack.c.b16 %v405, %v404
  %v452 = vpack.c.b16 %v407, %v406
  %v453 = vpack.c.b16 %v409, %v408
  %v454 = vpack.c.b16 %v411, %v410
  %v455 = vpack.c.b16 %v413, %v412
  %v456 = vpack.c.b16 %v415, %v414
  %v457 = vpack.c.b16 %v417, %v416
  %v458 = vpack.c.b16 %v419, %v418
  %v459 = vpack.c.b16 %v421, %v420
  %v460 = vpack.c.b16 %v423, %v422
  %v461 = vpack.c.b16 %v425, %v424
  %v462 = vpack.c.b16 %v427, %v426
  %v463 = vpack.c.b16 %v429, %v428
  %v464 = vpack.c.b16 %v431, %v430
  %v465 = vpack.c.b16 %v433, %v432
  %498 = vmatprep.subr.bf16.mxu0 0
  %499 = vmatpush1.bf16.msra.mxu0 %v434
  %500 = vmatprep.subr.bf16.mxu0 0
  %501 = vmatpush1.bf16.msra.mxu0 %v435
  %502 = vmatprep.subr.bf16.mxu0 0
  %503 = vmatpush1.bf16.msra.mxu0 %v436
  %504 = vmatprep.subr.bf16.mxu0 0
  %505 = vmatpush1.bf16.msra.mxu0 %v437
  %506 = vmatprep.subr.bf16.mxu0 0
  %507 = vmatpush1.bf16.msra.mxu0 %v438
  %508 = vmatprep.subr.bf16.mxu0 0
  %509 = vmatpush1.bf16.msra.mxu0 %v439
  %510 = vmatprep.subr.bf16.mxu0 0
  %511 = vmatpush1.bf16.msra.mxu0 %v440
  %512 = vmatprep.subr.bf16.mxu0 0
  %513 = vmatpush1.bf16.msra.mxu0 %v441
  %514 = vmatprep.subr.bf16.mxu0 0
  %515 = vmatpush1.bf16.msra.mxu0 %v442
  %516 = vmatprep.subr.bf16.mxu0 0
  %517 = vmatpush1.bf16.msra.mxu0 %v443
  %518 = vmatprep.subr.bf16.mxu0 0
  %519 = vmatpush1.bf16.msra.mxu0 %v444
  %520 = vmatprep.subr.bf16.mxu0 0
  %521 = vmatpush1.bf16.msra.mxu0 %v445
  %522 = vmatprep.subr.bf16.mxu0 0
  %523 = vmatpush1.bf16.msra.mxu0 %v446
  %524 = vmatprep.subr.bf16.mxu0 0
  %525 = vmatpush1.bf16.msra.mxu0 %v447
  %526 = vmatprep.subr.bf16.mxu0 0
  %527 = vmatpush1.bf16.msra.mxu0 %v448
  %528 = vmatprep.subr.bf16.mxu0 0
  %529 = vmatpush1.bf16.msra.mxu0 %v449
  %530 = vmatprep.mubr.bf16.mxu0 %v243
  %531 = vmatmul.mubr.bf16.gmra.mrb[0].mxu0 %v242
  %v532 = vpop.f32.mrb[0].mxu0
  %v533 = vadd.f32 0.0, %v532
  %v534 = vpop.f32.mrb[0].mxu0
  %v535 = vpop.f32.mrb[0].mxu0
  %v536 = vadd.f32 0.0, %v535
  %v537 = vpop.f32.mrb[0].mxu0
  %538 = vmatprep.mubr.bf16.mxu0 %v247
  %539 = vmatmul.mubr.bf16.gmra.mrb[0].mxu0 %v246
  %v540 = vpop.f32.mrb[0].mxu0
  %v541 = vadd.f32 0.0, %v540
  %v542 = vpop.f32.mrb[0].mxu0
  %v543 = vpop.f32.mrb[0].mxu0
  %v544 = vadd.f32 0.0, %v543
  %v545 = vpop.f32.mrb[0].mxu0
  %546 = vmatprep.mubr.bf16.mxu0 %v251
  %547 = vmatmul.mubr.bf16.gmra.mrb[0].mxu0 %v250
  %v548 = vpop.f32.mrb[0].mxu0
  %v549 = vadd.f32 0.0, %v548
  %v550 = vpop.f32.mrb[0].mxu0
  %v551 = vpop.f32.mrb[0].mxu0
  %v552 = vadd.f32 0.0, %v551
  %v553 = vpop.f32.mrb[0].mxu0
  %554 = vmatprep.mubr.bf16.mxu0 %v255
  %555 = vmatmul.mubr.bf16.gmra.mrb[0].mxu0 %v254
  %v556 = vpop.f32.mrb[0].mxu0
  %v557 = vadd.f32 0.0, %v556
  %v558 = vpop.f32.mrb[0].mxu0
  %v559 = vpop.f32.mrb[0].mxu0
  %v560 = vadd.f32 0.0, %v559
  %v561 = vpop.f32.mrb[0].mxu0
  %562 = vmatprep.mubr.bf16.mxu0 %v259
  %563 = vmatmul.mubr.bf16.gmra.mrb[0].mxu0 %v258
  %v564 = vpop.f32.mrb[0].mxu0
  %v565 = vadd.f32 0.0, %v564
  %v566 = vpop.f32.mrb[0].mxu0
  %v567 = vpop.f32.mrb[0].mxu0
  %v568 = vadd.f32 0.0, %v567
  %v569 = vpop.f32.mrb[0].mxu0
  %570 = vmatprep.mubr.bf16.mxu0 %v263
  %571 = vmatmul.mubr.bf16.gmra.mrb[0].mxu0 %v262
  %v572 = vpop.f32.mrb[0].mxu0
  %v573 = vadd.f32 0.0, %v572
  %v574 = vpop.f32.mrb[0].mxu0
  %v575 = vpop.f32.mrb[0].mxu0
  %v576 = vadd.f32 0.0, %v575
  %v577 = vpop.f32.mrb[0].mxu0
  %578 = vmatprep.mubr.bf16.mxu0 %v267
  %579 = vmatmul.mubr.bf16.gmra.mrb[0].mxu0 %v266
  %v580 = vpop.f32.mrb[0].mxu0
  %v581 = vadd.f32 0.0, %v580
  %v582 = vpop.f32.mrb[0].mxu0
  %v583 = vpop.f32.mrb[0].mxu0
  %v584 = vadd.f32 0.0, %v583
  %v585 = vpop.f32.mrb[0].mxu0
  %586 = vmatprep.mubr.bf16.mxu0 %v271
  %587 = vmatmul.mubr.bf16.gmra.mrb[0].mxu0 %v270
  %v588 = vpop.f32.mrb[0].mxu0
  %v589 = vadd.f32 0.0, %v588
  %v590 = vpop.f32.mrb[0].mxu0
  %v591 = vpop.f32.mrb[0].mxu0
  %v592 = vadd.f32 0.0, %v591
  %v593 = vpop.f32.mrb[0].mxu0
  %594 = vdwg.mxu0
  %595 = vmatprep.subr.bf16.mxu0 0
  %596 = vmatpush1.bf16.msra.mxu0 %v450
  %597 = vmatprep.subr.bf16.mxu0 0
  %598 = vmatpush1.bf16.msra.mxu0 %v451
  %599 = vmatprep.subr.bf16.mxu0 0
  %600 = vmatpush1.bf16.msra.mxu0 %v452
  %601 = vmatprep.subr.bf16.mxu0 0
  %602 = vmatpush1.bf16.msra.mxu0 %v453
  %603 = vmatprep.subr.bf16.mxu0 0
  %604 = vmatpush1.bf16.msra.mxu0 %v454
  %605 = vmatprep.subr.bf16.mxu0 0
  %606 = vmatpush1.bf16.msra.mxu0 %v455
  %607 = vmatprep.subr.bf16.mxu0 0
  %608 = vmatpush1.bf16.msra.mxu0 %v456
  %609 = vmatprep.subr.bf16.mxu0 0
  %610 = vmatpush1.bf16.msra.mxu0 %v457
  %611 = vmatprep.subr.bf16.mxu0 0
  %612 = vmatpush1.bf16.msra.mxu0 %v458
  %613 = vmatprep.subr.bf16.mxu0 0
  %614 = vmatpush1.bf16.msra.mxu0 %v459
  %615 = vmatprep.subr.bf16.mxu0 0
  %616 = vmatpush1.bf16.msra.mxu0 %v460
  %617 = vmatprep.subr.bf16.mxu0 0
  %618 = vmatpush1.bf16.msra.mxu0 %v461
  %619 = vmatprep.subr.bf16.mxu0 0
  %620 = vmatpush1.bf16.msra.mxu0 %v462
  %621 = vmatprep.subr.bf16.mxu0 0
  %622 = vmatpush1.bf16.msra.mxu0 %v463
  %623 = vmatprep.subr.bf16.mxu0 0
  %624 = vmatpush1.bf16.msra.mxu0 %v464
  %625 = vmatprep.subr.bf16.mxu0 0
  %626 = vmatpush1.bf16.msra.mxu0 %v465
  %627 = vmatprep.mubr.bf16.mxu0 %v245
  %628 = vmatmul.mubr.bf16.gmra.mrb[0].mxu0 %v244
  %v629 = vpop.f32.mrb[0].mxu0
  %v630 = vadd.f32 %v533, %v629
  %v631 = vpop.f32.mrb[0].mxu0
  %v632 = vpop.f32.mrb[0].mxu0
  %v633 = vadd.f32 %v536, %v632
  %v634 = vpop.f32.mrb[0].mxu0
  %635 = vmatprep.mubr.bf16.mxu0 %v249
  %636 = vmatmul.mubr.bf16.gmra.mrb[0].mxu0 %v248
  %v637 = vpop.f32.mrb[0].mxu0
  %v638 = vadd.f32 %v541, %v637
  %v639 = vpop.f32.mrb[0].mxu0
  %v640 = vpop.f32.mrb[0].mxu0
  %v641 = vadd.f32 %v544, %v640
  %v642 = vpop.f32.mrb[0].mxu0
  %643 = vmatprep.mubr.bf16.mxu0 %v253
  %644 = vmatmul.mubr.bf16.gmra.mrb[0].mxu0 %v252
  %v645 = vpop.f32.mrb[0].mxu0
  %v646 = vadd.f32 %v549, %v645
  %v647 = vpop.f32.mrb[0].mxu0
  %v648 = vpop.f32.mrb[0].mxu0
  %v649 = vadd.f32 %v552, %v648
  %v650 = vpop.f32.mrb[0].mxu0
  %651 = vmatprep.mubr.bf16.mxu0 %v257
  %652 = vmatmul.mubr.bf16.gmra.mrb[0].mxu0 %v256
  %v653 = vpop.f32.mrb[0].mxu0
  %v654 = vadd.f32 %v557, %v653
  %v655 = vpop.f32.mrb[0].mxu0
  %v656 = vpop.f32.mrb[0].mxu0
  %v657 = vadd.f32 %v560, %v656
  %v658 = vpop.f32.mrb[0].mxu0
  %659 = vmatprep.mubr.bf16.mxu0 %v261
  %660 = vmatmul.mubr.bf16.gmra.mrb[0].mxu0 %v260
  %v661 = vpop.f32.mrb[0].mxu0
  %v662 = vadd.f32 %v565, %v661
  %v663 = vpop.f32.mrb[0].mxu0
  %v664 = vpop.f32.mrb[0].mxu0
  %v665 = vadd.f32 %v568, %v664
  %v666 = vpop.f32.mrb[0].mxu0
  %667 = vmatprep.mubr.bf16.mxu0 %v265
  %668 = vmatmul.mubr.bf16.gmra.mrb[0].mxu0 %v264
  %v669 = vpop.f32.mrb[0].mxu0
  %v670 = vadd.f32 %v573, %v669
  %v671 = vpop.f32.mrb[0].mxu0
  %v672 = vpop.f32.mrb[0].mxu0
  %v673 = vadd.f32 %v576, %v672
  %v674 = vpop.f32.mrb[0].mxu0
  %675 = vmatprep.mubr.bf16.mxu0 %v269
  %676 = vmatmul.mubr.bf16.gmra.mrb[0].mxu0 %v268
  %v677 = vpop.f32.mrb[0].mxu0
  %v678 = vadd.f32 %v581, %v677
  %v679 = vpop.f32.mrb[0].mxu0
  %v680 = vpop.f32.mrb[0].mxu0
  %v681 = vadd.f32 %v584, %v680
  %v682 = vpop.f32.mrb[0].mxu0
  %683 = vmatprep.mubr.bf16.mxu0 %v273
  %684 = vmatmul.mubr.bf16.gmra.mrb[0].mxu0 %v272
  %v685 = vpop.f32.mrb[0].mxu0
  %v686 = vadd.f32 %v589, %v685
  %v687 = vpop.f32.mrb[0].mxu0
  %v688 = vpop.f32.mrb[0].mxu0
  %v689 = vadd.f32 %v592, %v688
  %v690 = vpop.f32.mrb[0].mxu0
  %691 = vdwg.mxu0
  %v692 = vadd.f32 %v34, %v630
  %v693 = vadd.f32 %v35, %v633
  %v694 = vadd.f32 %v36, %v638
  %v695 = vadd.f32 %v37, %v641
  %v696 = vadd.f32 %v38, %v646
  %v697 = vadd.f32 %v39, %v649
  %v698 = vadd.f32 %v40, %v654
  %v699 = vadd.f32 %v41, %v657
  %v700 = vadd.f32 %v42, %v662
  %v701 = vadd.f32 %v43, %v665
  %v702 = vadd.f32 %v44, %v670
  %v703 = vadd.f32 %v45, %v673
  %v704 = vadd.f32 %v46, %v678
  %v705 = vadd.f32 %v47, %v681
  %v706 = vadd.f32 %v48, %v686
  %v707 = vadd.f32 %v49, %v689
  %708 = vst [vmem:[#allocation2] sm:$0xff] %v692
  %709 = vst [vmem:[#allocation2 + $0x8] sm:$0xff] %v693
  %710 = vst [vmem:[#allocation2 + $0x10] sm:$0xff] %v694
  %711 = vst [vmem:[#allocation2 + $0x18] sm:$0xff] %v695
  %712 = vst [vmem:[#allocation2 + $0x20] sm:$0xff] %v696
  %713 = vst [vmem:[#allocation2 + $0x28] sm:$0xff] %v697
  %714 = vst [vmem:[#allocation2 + $0x30] sm:$0xff] %v698
  %715 = vst [vmem:[#allocation2 + $0x38] sm:$0xff] %v699
  %716 = vst [vmem:[#allocation2 + $0x40] sm:$0xff] %v700
  %717 = vst [vmem:[#allocation2 + $0x48] sm:$0xff] %v701
  %718 = vst [vmem:[#allocation2 + $0x50] sm:$0xff] %v702
  %719 = vst [vmem:[#allocation2 + $0x58] sm:$0xff] %v703
  %720 = vst [vmem:[#allocation2 + $0x60] sm:$0xff] %v704
  %721 = vst [vmem:[#allocation2 + $0x68] sm:$0xff] %v705
  %722 = vst [vmem:[#allocation2 + $0x70] sm:$0xff] %v706
  %723 = vst [vmem:[#allocation2 + $0x78] sm:$0xff] %v707
  // Predicated region
  $region14: #{patchgan_forward.9} parent=0 // pred_check
    %p724 = pneg %p14
  $region15: #{patchgan_forward.9} parent=0 // pred_check_branch
    %726 = sbr.rel (%p724) target = $region17
  $region16: #{patchgan_forward.9} parent=0 // pred_region
    %v727 = vld [vmem:[#allocation2] sm:$0xff]
    %v728 = vld [vmem:[#allocation2 + $0x8] sm:$0xff]
    %v729 = vld [vmem:[#allocation2 + $0x10] sm:$0xff]
    %v730 = vld [vmem:[#allocation2 + $0x18] sm:$0xff]
    %v731 = vld [vmem:[#allocation2 + $0x20] sm:$0xff]
    %v732 = vld [vmem:[#allocation2 + $0x28] sm:$0xff]
    %v733 = vld [vmem:[#allocation2 + $0x30] sm:$0xff]
    %v734 = vld [vmem:[#allocation2 + $0x38] sm:$0xff]
    %v735 = vld [vmem:[#allocation2 + $0x40] sm:$0xff]
    %v736 = vld [vmem:[#allocation2 + $0x48] sm:$0xff]
    %v737 = vld [vmem:[#allocation2 + $0x50] sm:$0xff]
    %v738 = vld [vmem:[#allocation2 + $0x58] sm:$0xff]
    %v739 = vld [vmem:[#allocation2 + $0x60] sm:$0xff]
    %v740 = vld [vmem:[#allocation2 + $0x68] sm:$0xff]
    %v741 = vld [vmem:[#allocation2 + $0x70] sm:$0xff]
    %v742 = vld [vmem:[#allocation2 + $0x78] sm:$0xff]
    %v743 = vadd.f32 %v727, %v728
    %v744 = vadd.f32 %v743, %v729
    %v745 = vadd.f32 %v744, %v730
    %v746 = vadd.f32 %v745, %v731
    %v747 = vadd.f32 %v746, %v732
    %v748 = vadd.f32 %v747, %v733
    %v749 = vadd.f32 %v748, %v734
    %v750 = vadd.f32 %v749, %v735
    %v751 = vadd.f32 %v750, %v736
    %v752 = vadd.f32 %v751, %v737
    %v753 = vadd.f32 %v752, %v738
    %v754 = vadd.f32 %v753, %v739
    %v755 = vadd.f32 %v754, %v740
    %v756 = vadd.f32 %v755, %v741
    %v757 = vadd.f32 %v756, %v742
    %v758 = vrot.slane %v757, 4
    %v759 = vadd.f32 %v757, %v758
    %v760 = vrot.slane %v759, 2
    %v761 = vadd.f32 %v759, %v760
    %v762 = vrot.slane %v761, 1
    %v763 = vadd.f32 %v761, %v762
    %v764 = vmul.f32 %v727, %v727
    %v765 = vmul.f32 %v728, %v728
    %v766 = vmul.f32 %v729, %v729
    %v767 = vmul.f32 %v730, %v730
    %v768 = vmul.f32 %v731, %v731
    %v769 = vmul.f32 %v732, %v732
    %v770 = vmul.f32 %v733, %v733
    %v771 = vmul.f32 %v734, %v734
    %v772 = vmul.f32 %v735, %v735
    %v773 = vmul.f32 %v736, %v736
    %v774 = vmul.f32 %v737, %v737
    %v775 = vmul.f32 %v738, %v738
    %v776 = vmul.f32 %v739, %v739
    %v777 = vmul.f32 %v740, %v740
    %v778 = vmul.f32 %v741, %v741
    %v779 = vmul.f32 %v742, %v742
    %v780 = vadd.f32 %v764, %v765
    %v781 = vadd.f32 %v780, %v766
    %v782 = vadd.f32 %v781, %v767
    %v783 = vadd.f32 %v782, %v768
    %v784 = vadd.f32 %v783, %v769
    %v785 = vadd.f32 %v784, %v770
    %v786 = vadd.f32 %v785, %v771
    %v787 = vadd.f32 %v786, %v772
    %v788 = vadd.f32 %v787, %v773
    %v789 = vadd.f32 %v788, %v774
    %v790 = vadd.f32 %v789, %v775
    %v791 = vadd.f32 %v790, %v776
    %v792 = vadd.f32 %v791, %v777
    %v793 = vadd.f32 %v792, %v778
    %v794 = vadd.f32 %v793, %v779
    %v795 = vrot.slane %v794, 4
    %v796 = vadd.f32 %v794, %v795
    %v797 = vrot.slane %v796, 2
    %v798 = vadd.f32 %v796, %v797
    %v799 = vrot.slane %v798, 1
    %v800 = vadd.f32 %v798, %v799
    %v801 = vlaneseq
    %v802 = vshrl.u32 %v801, 7
    %vm803 = vcmp.eq.s32.totalorder %v802, 0
    %vm804 = vcmp.eq.s32.totalorder %v802, 1
    %v805 = vsel %vm804, %v800, 0.0
    %v806 = vsel %vm803, %v763, %v805
    %807 = vst [vmem:[%s3] sm:$0xff] %v806
    %808 = vst [vmem:[%s2] sm:$0xff] %v727
    %809 = vst [vmem:[%s2 + $0x8] sm:$0xff] %v728
    %810 = vst [vmem:[%s2 + $0x10] sm:$0xff] %v729
    %811 = vst [vmem:[%s2 + $0x18] sm:$0xff] %v730
    %812 = vst [vmem:[%s2 + $0x20] sm:$0xff] %v731
    %813 = vst [vmem:[%s2 + $0x28] sm:$0xff] %v732
    %814 = vst [vmem:[%s2 + $0x30] sm:$0xff] %v733
    %815 = vst [vmem:[%s2 + $0x38] sm:$0xff] %v734
    %816 = vst [vmem:[%s2 + $0x40] sm:$0xff] %v735
    %817 = vst [vmem:[%s2 + $0x48] sm:$0xff] %v736
    %818 = vst [vmem:[%s2 + $0x50] sm:$0xff] %v737
    %819 = vst [vmem:[%s2 + $0x58] sm:$0xff] %v738
    %820 = vst [vmem:[%s2 + $0x60] sm:$0xff] %v739
    %821 = vst [vmem:[%s2 + $0x68] sm:$0xff] %v740
    %822 = vst [vmem:[%s2 + $0x70] sm:$0xff] %v741
    %823 = vst [vmem:[%s2 + $0x78] sm:$0xff] %v742
  $region17: #{patchgan_forward.9} parent=0 // pred_fallthru
    _
  // Predicated region
  $region18: #{patchgan_forward.9} parent=0 // pred_check
    _
  $region19: #{patchgan_forward.9} parent=0 // pred_check_branch
    %825 = sbr.rel (0) target = $region21
  $region20: #{patchgan_forward.9} parent=0 // pred_region
    _
  $region21: #{patchgan_forward.9} parent=0 // pred_fallthru
    _
  // Predicated region
  $region22: #{patchgan_forward.9} parent=0 // pred_check
    _
  $region23: #{patchgan_forward.9} parent=0 // pred_check_branch
    %827 = sbr.rel (0) target = $region25
  $region24: #{patchgan_forward.9} parent=0 // pred_region
    _
  $region25: #{patchgan_forward.9} parent=0 // pred_fallthru
    _
  // Predicated region
  $region26: #{patchgan_forward.9} parent=0 // pred_check
    _
  $region27: #{patchgan_forward.9} parent=0 // pred_check_branch
    %829 = sbr.rel (0) target = $region29
  $region28: #{patchgan_forward.9} parent=0 // pred_region
    _
  $region29: #{patchgan_forward.9} parent=0 // pred_fallthru
    _
  // Predicated region
  $region30: #{patchgan_forward.9} parent=0 // pred_check
    _
  $region31: #{patchgan_forward.9} parent=0 // pred_check_branch
    %831 = sbr.rel (0) target = $region33
  $region32: #{patchgan_forward.9} parent=0 // pred_region
    _
  $region33: #{patchgan_forward.9} parent=0 // pred_fallthru
    _

// kernel: patchgan_forward.10
$region0: #{patchgan_forward.10}
  #allocation0 [shape = 'u32[]', space=smem, size = 0x4, offset = 0x4, fixed_abs, tag = 'smem constant byte address 0x4 - core index']
  #allocation1 [shape = 'u32[144,128]{1,0:T(1,128)}', space=vmem, size = 0x12000, scoped, tag = 'internal scratch']
  %s0 = inlined_call_operand.vmem [shape: f32[128,128], index: 0, kind: input, shape index: {}]
  %s1 = inlined_call_operand.vmem [shape: f32[1,128], index: 1, kind: input, shape index: {}]
  %s2 = inlined_call_operand.vmem [shape: f32[1,128], index: 2, kind: input, shape index: {}]
  %s3 = inlined_call_operand.vmem [shape: bf16[128,128], index: 3, kind: output, shape index: {}]
  %s4 = sld [smem:[#allocation0]]
  $region22: #{patchgan_forward.10} parent=0
    _
  %s6 = ssub.s32 1, %s4
  %s7 = scalar_select 0, %s6, %s4
  // Predicated region
  $region2: #{patchgan_forward.10} parent=0 // pred_check
    _
  $region3: #{patchgan_forward.10} parent=0 // pred_check_branch
    %9 = sbr.rel (0) target = $region5
  $region4: #{patchgan_forward.10} parent=0 // pred_region
    _
  $region5: #{patchgan_forward.10} parent=0 // pred_fallthru
    _
  // Predicated region
  $region6: #{patchgan_forward.10} parent=0 // pred_check
    _
  $region7: #{patchgan_forward.10} parent=0 // pred_check_branch
    %11 = sbr.rel (0) target = $region9
  $region8: #{patchgan_forward.10} parent=0 // pred_region
    _
  $region9: #{patchgan_forward.10} parent=0 // pred_fallthru
    _
  // Predicated region
  $region10: #{patchgan_forward.10} parent=0 // pred_check
    _
  $region11: #{patchgan_forward.10} parent=0 // pred_check_branch
    %13 = sbr.rel (0) target = $region13
  $region12: #{patchgan_forward.10} parent=0 // pred_region
    _
  $region13: #{patchgan_forward.10} parent=0 // pred_fallthru
    _
  %v14 = vld [vmem:[%s0] sm:$0xff]
  %v15 = vld [vmem:[%s0 + $0x8] sm:$0xff]
  %v16 = vld [vmem:[%s0 + $0x10] sm:$0xff]
  %v17 = vld [vmem:[%s0 + $0x18] sm:$0xff]
  %v18 = vld [vmem:[%s0 + $0x20] sm:$0xff]
  %v19 = vld [vmem:[%s0 + $0x28] sm:$0xff]
  %v20 = vld [vmem:[%s0 + $0x30] sm:$0xff]
  %v21 = vld [vmem:[%s0 + $0x38] sm:$0xff]
  %v22 = vld [vmem:[%s0 + $0x40] sm:$0xff]
  %v23 = vld [vmem:[%s0 + $0x48] sm:$0xff]
  %v24 = vld [vmem:[%s0 + $0x50] sm:$0xff]
  %v25 = vld [vmem:[%s0 + $0x58] sm:$0xff]
  %v26 = vld [vmem:[%s0 + $0x60] sm:$0xff]
  %v27 = vld [vmem:[%s0 + $0x68] sm:$0xff]
  %v28 = vld [vmem:[%s0 + $0x70] sm:$0xff]
  %v29 = vld [vmem:[%s0 + $0x78] sm:$0xff]
  %v30 = vld [vmem:[%s1] sm:$0x1]
  %v32 = vlaneseq
  %v33 = vshrl.u32 %v32, 7
  %v34 = vsub.s32 0, %v33
  %v35 = vrot.slane %v30, %v34
  %v37 = vsub.f32 %v14, %v35
  %v38 = vsub.f32 %v15, %v35
  %v39 = vsub.f32 %v16, %v35
  %v40 = vsub.f32 %v17, %v35
  %v41 = vsub.f32 %v18, %v35
  %v42 = vsub.f32 %v19, %v35
  %v43 = vsub.f32 %v20, %v35
  %v44 = vsub.f32 %v21, %v35
  %v45 = vsub.f32 %v22, %v35
  %v46 = vsub.f32 %v23, %v35
  %v47 = vsub.f32 %v24, %v35
  %v48 = vsub.f32 %v25, %v35
  %v49 = vsub.f32 %v26, %v35
  %v50 = vsub.f32 %v27, %v35
  %v51 = vsub.f32 %v28, %v35
  %v52 = vsub.f32 %v29, %v35
  %v53 = vld [vmem:[%s2] sm:$0x1]
  %v55 = vlaneseq
  %v56 = vshrl.u32 %v55, 7
  %v57 = vsub.s32 0, %v56
  %v58 = vrot.slane %v53, %v57
  %v60 = vmul.f32 %v37, %v58
  %v61 = vmul.f32 %v38, %v58
  %v62 = vmul.f32 %v39, %v58
  %v63 = vmul.f32 %v40, %v58
  %v64 = vmul.f32 %v41, %v58
  %v65 = vmul.f32 %v42, %v58
  %v66 = vmul.f32 %v43, %v58
  %v67 = vmul.f32 %v44, %v58
  %v68 = vmul.f32 %v45, %v58
  %v69 = vmul.f32 %v46, %v58
  %v70 = vmul.f32 %v47, %v58
  %v71 = vmul.f32 %v48, %v58
  %v72 = vmul.f32 %v49, %v58
  %v73 = vmul.f32 %v50, %v58
  %v74 = vmul.f32 %v51, %v58
  %v75 = vmul.f32 %v52, %v58
  %vm76 = vcmp.ge.f32.partialorder %v60, 0.0
  %vm77 = vcmp.ge.f32.partialorder %v61, 0.0
  %vm78 = vcmp.ge.f32.partialorder %v62, 0.0
  %vm79 = vcmp.ge.f32.partialorder %v63, 0.0
  %vm80 = vcmp.ge.f32.partialorder %v64, 0.0
  %vm81 = vcmp.ge.f32.partialorder %v65, 0.0
  %vm82 = vcmp.ge.f32.partialorder %v66, 0.0
  %vm83 = vcmp.ge.f32.partialorder %v67, 0.0
  %vm84 = vcmp.ge.f32.partialorder %v68, 0.0
  %vm85 = vcmp.ge.f32.partialorder %v69, 0.0
  %vm86 = vcmp.ge.f32.partialorder %v70, 0.0
  %vm87 = vcmp.ge.f32.partialorder %v71, 0.0
  %vm88 = vcmp.ge.f32.partialorder %v72, 0.0
  %vm89 = vcmp.ge.f32.partialorder %v73, 0.0
  %vm90 = vcmp.ge.f32.partialorder %v74, 0.0
  %vm91 = vcmp.ge.f32.partialorder %v75, 0.0
  %v92 = vmul.f32 %v60, 0.2
  %v93 = vmul.f32 %v61, 0.2
  %v94 = vmul.f32 %v62, 0.2
  %v95 = vmul.f32 %v63, 0.2
  %v96 = vmul.f32 %v64, 0.2
  %v97 = vmul.f32 %v65, 0.2
  %v98 = vmul.f32 %v66, 0.2
  %v99 = vmul.f32 %v67, 0.2
  %v100 = vmul.f32 %v68, 0.2
  %v101 = vmul.f32 %v69, 0.2
  %v102 = vmul.f32 %v70, 0.2
  %v103 = vmul.f32 %v71, 0.2
  %v104 = vmul.f32 %v72, 0.2
  %v105 = vmul.f32 %v73, 0.2
  %v106 = vmul.f32 %v74, 0.2
  %v107 = vmul.f32 %v75, 0.2
  %v108 = vsel %vm76, %v60, %v92
  %v109 = vsel %vm77, %v61, %v93
  %v110 = vsel %vm78, %v62, %v94
  %v111 = vsel %vm79, %v63, %v95
  %v112 = vsel %vm80, %v64, %v96
  %v113 = vsel %vm81, %v65, %v97
  %v114 = vsel %vm82, %v66, %v98
  %v115 = vsel %vm83, %v67, %v99
  %v116 = vsel %vm84, %v68, %v100
  %v117 = vsel %vm85, %v69, %v101
  %v118 = vsel %vm86, %v70, %v102
  %v119 = vsel %vm87, %v71, %v103
  %v120 = vsel %vm88, %v72, %v104
  %v121 = vsel %vm89, %v73, %v105
  %v122 = vsel %vm90, %v74, %v106
  %v123 = vsel %vm91, %v75, %v107
  %v124 = vpack.c.bf16 %v109, %v108
  %v125 = vpack.c.bf16 %v111, %v110
  %v126 = vpack.c.bf16 %v113, %v112
  %v127 = vpack.c.bf16 %v115, %v114
  %v128 = vpack.c.bf16 %v117, %v116
  %v129 = vpack.c.bf16 %v119, %v118
  %v130 = vpack.c.bf16 %v121, %v120
  %v131 = vpack.c.bf16 %v123, %v122
  %v140 = vunpack.c.l.b16 %v124
  %v141 = vunpack.c.h.b16 %v124
  %v142 = vunpack.c.l.b16 %v125
  %v143 = vunpack.c.h.b16 %v125
  %v144 = vunpack.c.l.b16 %v126
  %v145 = vunpack.c.h.b16 %v126
  %v146 = vunpack.c.l.b16 %v127
  %v147 = vunpack.c.h.b16 %v127
  %v148 = vunpack.c.l.b16 %v128
  %v149 = vunpack.c.h.b16 %v128
  %v150 = vunpack.c.l.b16 %v129
  %v151 = vunpack.c.h.b16 %v129
  %v152 = vunpack.c.l.b16 %v130
  %v153 = vunpack.c.h.b16 %v130
  %v154 = vunpack.c.l.b16 %v131
  %v155 = vunpack.c.h.b16 %v131
  %v156 = vpack.c.b16 %v140, %v140
  %v157 = vpack.c.b16 %v141, %v141
  %v158 = vpack.c.b16 %v142, %v142
  %v159 = vpack.c.b16 %v143, %v143
  %v160 = vpack.c.b16 %v144, %v144
  %v161 = vpack.c.b16 %v145, %v145
  %v162 = vpack.c.b16 %v146, %v146
  %v163 = vpack.c.b16 %v147, %v147
  %v164 = vpack.c.b16 %v148, %v148
  %v165 = vpack.c.b16 %v149, %v149
  %v166 = vpack.c.b16 %v150, %v150
  %v167 = vpack.c.b16 %v151, %v151
  %v168 = vpack.c.b16 %v152, %v152
  %v169 = vpack.c.b16 %v153, %v153
  %v170 = vpack.c.b16 %v154, %v154
  %v171 = vpack.c.b16 %v155, %v155
  %188 = vst [vmem:[%s3] sm:$0xf] %v156
  %189 = vst [vmem:[%s3 + $0x4] sm:$0xf] %v157
  %190 = vst [vmem:[%s3 + $0x8] sm:$0xf] %v158
  %191 = vst [vmem:[%s3 + $0xc] sm:$0xf] %v159
  %192 = vst [vmem:[%s3 + $0x10] sm:$0xf] %v160
  %193 = vst [vmem:[%s3 + $0x14] sm:$0xf] %v161
  %194 = vst [vmem:[%s3 + $0x18] sm:$0xf] %v162
  %195 = vst [vmem:[%s3 + $0x1c] sm:$0xf] %v163
  %196 = vst [vmem:[%s3 + $0x20] sm:$0xf] %v164
  %197 = vst [vmem:[%s3 + $0x24] sm:$0xf] %v165
  %198 = vst [vmem:[%s3 + $0x28] sm:$0xf] %v166
  %199 = vst [vmem:[%s3 + $0x2c] sm:$0xf] %v167
  %200 = vst [vmem:[%s3 + $0x30] sm:$0xf] %v168
  %201 = vst [vmem:[%s3 + $0x34] sm:$0xf] %v169
  %202 = vst [vmem:[%s3 + $0x38] sm:$0xf] %v170
  %203 = vst [vmem:[%s3 + $0x3c] sm:$0xf] %v171
  // Predicated region
  $region14: #{patchgan_forward.10} parent=0 // pred_check
    _
  $region15: #{patchgan_forward.10} parent=0 // pred_check_branch
    %205 = sbr.rel (0) target = $region17
  $region16: #{patchgan_forward.10} parent=0 // pred_region
    _
  $region17: #{patchgan_forward.10} parent=0 // pred_fallthru
    _
  // Predicated region
  $region18: #{patchgan_forward.10} parent=0 // pred_check
    _
  $region19: #{patchgan_forward.10} parent=0 // pred_check_branch
    %207 = sbr.rel (0) target = $region21
  $region20: #{patchgan_forward.10} parent=0 // pred_region
    _
  $region21: #{patchgan_forward.10} parent=0 // pred_fallthru
    _

// kernel: patchgan_forward.12
$region0: #{patchgan_forward.12}
  #allocation0 [shape = 'u32[]', space=smem, size = 0x4, offset = 0x4, fixed_abs, tag = 'smem constant byte address 0x4 - core index']
  #allocation1 [shape = 'u32[144,128]{1,0:T(1,128)}', space=vmem, size = 0x12000, scoped, tag = 'internal scratch']
  %s0 = inlined_call_operand.vmem [shape: f32[32,128], index: 0, kind: input, shape index: {}]
  %s1 = inlined_call_operand.vmem [shape: f32[1,128], index: 1, kind: input, shape index: {}]
  %s2 = inlined_call_operand.vmem [shape: f32[1,128], index: 2, kind: input, shape index: {}]
  %s3 = inlined_call_operand.vmem [shape: bf16[32,128], index: 3, kind: output, shape index: {}]
  %s4 = sld [smem:[#allocation0]]
  $region22: #{patchgan_forward.12} parent=0
    _
  %s6 = ssub.s32 1, %s4
  %s7 = scalar_select 0, %s6, %s4
  // Predicated region
  $region2: #{patchgan_forward.12} parent=0 // pred_check
    _
  $region3: #{patchgan_forward.12} parent=0 // pred_check_branch
    %9 = sbr.rel (0) target = $region5
  $region4: #{patchgan_forward.12} parent=0 // pred_region
    _
  $region5: #{patchgan_forward.12} parent=0 // pred_fallthru
    _
  // Predicated region
  $region6: #{patchgan_forward.12} parent=0 // pred_check
    _
  $region7: #{patchgan_forward.12} parent=0 // pred_check_branch
    %11 = sbr.rel (0) target = $region9
  $region8: #{patchgan_forward.12} parent=0 // pred_region
    _
  $region9: #{patchgan_forward.12} parent=0 // pred_fallthru
    _
  // Predicated region
  $region10: #{patchgan_forward.12} parent=0 // pred_check
    _
  $region11: #{patchgan_forward.12} parent=0 // pred_check_branch
    %13 = sbr.rel (0) target = $region13
  $region12: #{patchgan_forward.12} parent=0 // pred_region
    _
  $region13: #{patchgan_forward.12} parent=0 // pred_fallthru
    _
  %v14 = vld [vmem:[%s0] sm:$0xff]
  %v15 = vld [vmem:[%s0 + $0x8] sm:$0xff]
  %v16 = vld [vmem:[%s0 + $0x10] sm:$0xff]
  %v17 = vld [vmem:[%s0 + $0x18] sm:$0xff]
  %v18 = vld [vmem:[%s1] sm:$0x1]
  %v20 = vlaneseq
  %v21 = vshrl.u32 %v20, 7
  %v22 = vsub.s32 0, %v21
  %v23 = vrot.slane %v18, %v22
  %v25 = vsub.f32 %v14, %v23
  %v26 = vsub.f32 %v15, %v23
  %v27 = vsub.f32 %v16, %v23
  %v28 = vsub.f32 %v17, %v23
  %v29 = vld [vmem:[%s2] sm:$0x1]
  %v31 = vlaneseq
  %v32 = vshrl.u32 %v31, 7
  %v33 = vsub.s32 0, %v32
  %v34 = vrot.slane %v29, %v33
  %v36 = vmul.f32 %v25, %v34
  %v37 = vmul.f32 %v26, %v34
  %v38 = vmul.f32 %v27, %v34
  %v39 = vmul.f32 %v28, %v34
  %vm40 = vcmp.ge.f32.partialorder %v36, 0.0
  %vm41 = vcmp.ge.f32.partialorder %v37, 0.0
  %vm42 = vcmp.ge.f32.partialorder %v38, 0.0
  %vm43 = vcmp.ge.f32.partialorder %v39, 0.0
  %v44 = vmul.f32 %v36, 0.2
  %v45 = vmul.f32 %v37, 0.2
  %v46 = vmul.f32 %v38, 0.2
  %v47 = vmul.f32 %v39, 0.2
  %v48 = vsel %vm40, %v36, %v44
  %v49 = vsel %vm41, %v37, %v45
  %v50 = vsel %vm42, %v38, %v46
  %v51 = vsel %vm43, %v39, %v47
  %v52 = vpack.c.bf16 %v49, %v48
  %v53 = vpack.c.bf16 %v51, %v50
  %v56 = vunpack.c.l.b16 %v52
  %v57 = vunpack.c.h.b16 %v52
  %v58 = vunpack.c.l.b16 %v53
  %v59 = vunpack.c.h.b16 %v53
  %v60 = vpack.c.b16 %v56, %v56
  %v61 = vpack.c.b16 %v57, %v57
  %v62 = vpack.c.b16 %v58, %v58
  %v63 = vpack.c.b16 %v59, %v59
  %68 = vst [vmem:[%s3] sm:$0xf] %v60
  %69 = vst [vmem:[%s3 + $0x4] sm:$0xf] %v61
  %70 = vst [vmem:[%s3 + $0x8] sm:$0xf] %v62
  %71 = vst [vmem:[%s3 + $0xc] sm:$0xf] %v63
  // Predicated region
  $region14: #{patchgan_forward.12} parent=0 // pred_check
    _
  $region15: #{patchgan_forward.12} parent=0 // pred_check_branch
    %73 = sbr.rel (0) target = $region17
  $region16: #{patchgan_forward.12} parent=0 // pred_region
    _
  $region17: #{patchgan_forward.12} parent=0 // pred_fallthru
    _
  // Predicated region
  $region18: #{patchgan_forward.12} parent=0 // pred_check
    _
  $region19: #{patchgan_forward.12} parent=0 // pred_check_branch
    %75 = sbr.rel (0) target = $region21
  $region20: #{patchgan_forward.12} parent=0 // pred_region
    _
  $region21: #{patchgan_forward.12} parent=0 // pred_fallthru
    _

// kernel: patchgan_forward.11
$region0: #{patchgan_forward.11}
  #allocation0 [shape = 'u32[]', space=smem, size = 0x4, offset = 0x4, fixed_abs, tag = 'smem constant byte address 0x4 - core index']
  #allocation1 [shape = 'u32[144,128]{1,0:T(1,128)}', space=vmem, size = 0x12000, scoped, tag = 'internal scratch']
  #allocation2 [shape = 'f32[32,128]{1,0:T(8,128)}', space=vmem, size = 0x4000, scoped, tag = 'scratch operand']
  %s0 = inlined_call_operand.vmem [shape: bf16[32,1024], index: 0, kind: input, shape index: {}]
  %s1 = inlined_call_operand.vmem [shape: bf16[1024,128], index: 1, kind: input, shape index: {}]
  %s2 = inlined_call_operand.vmem [shape: f32[32,128], index: 2, kind: output, shape index: {0}]
  %s3 = inlined_call_operand.vmem [shape: f32[8,128], index: 3, kind: output, shape index: {1}]
  %4 = xla_tuple %s2, %s3
  %s5 = sld [smem:[#allocation0]]
  $region80: #{patchgan_forward.11} parent=0
    _
  %s7 = ssub.s32 1, %s5
  %s8 = scalar_select 0, %s7, %s5
  $region1: #{patchgan_forward.11} parent=0
    #allocation3 [shape = 'u8[65536]{0}', space=vmem, size = 0x10000, scoped, tag = 'input window, operand 0']
    loop: start=0, step=1, limit=4
    $region2: #{patchgan_forward.11} parent=1 // loop_pre_header
      _
    $region3: #{patchgan_forward.11} parent=1 // loop_header
      %s10 = sphi 0, %s14
      %p11 = scmp.ge.s32.totalorder %s10, 4
      %s17 = sphi 0, %s29
      %s18 = sphi 0, %s25
      %s19 = sphi 0, %s17
      %s20 = sphi 0, %s18
      %s21 = sphi 0, %s19
      %s22 = sphi 0, %s20
      %s34 = sphi 0, %s36
      %s37 = sphi 0, %s34
      %s38 = sphi 0, %s37
      %s54 = sphi 0, %s38
      %s60 = sphi 0, %s62
      %s63 = sphi 0, %s60
      %s64 = sphi 0, %s63
      %s80 = sphi 0, %s64
      %s86 = sphi 0, %s88
      %s89 = sphi 0, %s86
      %s90 = sphi 0, %s89
      %s106 = sphi 0, %s90
      %s112 = sphi 0, %s114
      %s115 = sphi 0, %s112
      %s116 = sphi 0, %s115
      %s132 = sphi 0, %s116
    $region4: #{patchgan_forward.11} parent=1 // loop_header_branch
      %13 = sbr.rel (%p11) target = $region8
    $region5: #{patchgan_forward.11} parent=1 // loop_body
      %s15 = ssub.s32 %s10, 1
      %s16 = ssub.s32 %s10, 2
      %s23 = sadd.s32 1, %s18
      %p24 = scmp.ge.s32.totalorder %s23, 2
      %s25 = scalar_select %p24, 0, %s23
      %s26 = sadd.s32 1, %s17
      %s27 = scalar_select %p24, %s26, %s17
      %p28 = scmp.ge.s32.totalorder %s27, 1
      %s29 = scalar_select %p28, 0, %s27
      %s30 = ssub.s32 %s17, %s29
      %s31 = ssub.s32 %s18, %s25
      %s32 = sor.u32 %s30, %s31
      %p33 = scmp.eq.s32.totalorder %s32, 0
      %s35 = sadd.s32 %s34, 1
      %s36 = scalar_select %p33, %s34, %s35
      %p39 = pneg %p33
      %p40 = scmp.eq.s32.totalorder %s10, 1
      %p41 = por %p39, %p40
      %p42 = scmp.ne.s32.totalorder %s34, %s37
      %p43 = scmp.eq.s32.totalorder %s10, 0
      %p44 = por %p42, %p43
      %p45 = scmp.ne.s32.totalorder %s34, %s37
      %p46 = scmp.eq.s32.totalorder %s15, 1
      %p47 = por %p45, %p46
      %p48 = scmp.ne.s32.totalorder %s37, %s38
      %p49 = scmp.eq.s32.totalorder %s15, 0
      %p50 = por %p48, %p49
      %p51 = scmp.ne.s32.totalorder %s37, %s38
      %p52 = scmp.eq.s32.totalorder %s16, 1
      %p53 = por %p51, %p52
      %p55 = scmp.ne.s32.totalorder %s38, %s54
      %p56 = scmp.eq.s32.totalorder %s16, 0
      %p57 = por %p55, %p56
      %s58 = ssub.s32 %s18, %s25
      %p59 = scmp.eq.s32.totalorder %s58, 0
      %s61 = sadd.s32 %s60, 1
      %s62 = scalar_select %p59, %s60, %s61
      %p65 = pneg %p59
      %p66 = scmp.eq.s32.totalorder %s10, 1
      %p67 = por %p65, %p66
      %p68 = scmp.ne.s32.totalorder %s60, %s63
      %p69 = scmp.eq.s32.totalorder %s10, 0
      %p70 = por %p68, %p69
      %p71 = scmp.ne.s32.totalorder %s60, %s63
      %p72 = scmp.eq.s32.totalorder %s15, 1
      %p73 = por %p71, %p72
      %p74 = scmp.ne.s32.totalorder %s63, %s64
      %p75 = scmp.eq.s32.totalorder %s15, 0
      %p76 = por %p74, %p75
      %p77 = scmp.ne.s32.totalorder %s63, %s64
      %p78 = scmp.eq.s32.totalorder %s16, 1
      %p79 = por %p77, %p78
      %p81 = scmp.ne.s32.totalorder %s64, %s80
      %p82 = scmp.eq.s32.totalorder %s16, 0
      %p83 = por %p81, %p82
      %s84 = ssub.s32 %s17, %s29
      %p85 = scmp.eq.s32.totalorder %s84, 0
      %s87 = sadd.s32 %s86, 1
      %s88 = scalar_select %p85, %s86, %s87
      %p91 = pneg %p85
      %p92 = scmp.eq.s32.totalorder %s10, 1
      %p93 = por %p91, %p92
      %p94 = scmp.ne.s32.totalorder %s86, %s89
      %p95 = scmp.eq.s32.totalorder %s10, 0
      %p96 = por %p94, %p95
      %p97 = scmp.ne.s32.totalorder %s86, %s89
      %p98 = scmp.eq.s32.totalorder %s15, 1
      %p99 = por %p97, %p98
      %p100 = scmp.ne.s32.totalorder %s89, %s90
      %p101 = scmp.eq.s32.totalorder %s15, 0
      %p102 = por %p100, %p101
      %p103 = scmp.ne.s32.totalorder %s89, %s90
      %p104 = scmp.eq.s32.totalorder %s16, 1
      %p105 = por %p103, %p104
      %p107 = scmp.ne.s32.totalorder %s90, %s106
      %p108 = scmp.eq.s32.totalorder %s16, 0
      %p109 = por %p107, %p108
      %s110 = ssub.s32 %s17, %s29
      %p111 = scmp.eq.s32.totalorder %s110, 0
      %s113 = sadd.s32 %s112, 1
      %s114 = scalar_select %p111, %s112, %s113
      %p117 = pneg %p111
      %p118 = scmp.eq.s32.totalorder %s10, 1
      %p119 = por %p117, %p118
      %p120 = scmp.ne.s32.totalorder %s112, %s115
      %p121 = scmp.eq.s32.totalorder %s10, 0
      %p122 = por %p120, %p121
      %p123 = scmp.ne.s32.totalorder %s112, %s115
      %p124 = scmp.eq.s32.totalorder %s15, 1
      %p125 = por %p123, %p124
      %p126 = scmp.ne.s32.totalorder %s115, %s116
      %p127 = scmp.eq.s32.totalorder %s15, 0
      %p128 = por %p126, %p127
      %p129 = scmp.ne.s32.totalorder %s115, %s116
      %p130 = scmp.eq.s32.totalorder %s16, 1
      %p131 = por %p129, %p130
      %p133 = scmp.ne.s32.totalorder %s116, %s132
      %p134 = scmp.eq.s32.totalorder %s16, 0
      %p135 = por %p133, %p134
      %p136 = scmp.le.s32.totalorder 1, %s10
      %p137 = scmp.lt.s32.totalorder %s10, 3
      %p138 = pnand %p136, %p137
      %p139 = pneg %p138
      // Predicated region
      $region9: #{patchgan_forward.11} parent=5 // pred_check
        _
      $region10: #{patchgan_forward.11} parent=5 // pred_check_branch
        %141 = sbr.rel (%p138) target = $region12
      $region11: #{patchgan_forward.11} parent=5 // pred_region
        %s142 = ssub.s32 %s10, 1
      $region12: #{patchgan_forward.11} parent=5 // pred_fallthru
        _
      %p143 = scmp.lt.s32.totalorder %s10, 2
      // Predicated region
      $region13: #{patchgan_forward.11} parent=5 // pred_check
        %p144 = pneg %p143
      $region14: #{patchgan_forward.11} parent=5 // pred_check_branch
        %146 = sbr.rel (%p144) target = $region16
      $region15: #{patchgan_forward.11} parent=5 // pred_region
        // Predicated region
        $region17: #{patchgan_forward.11} parent=15 // pred_check
          %p147 = pneg %p44
        $region18: #{patchgan_forward.11} parent=15 // pred_check_branch
          %149 = sbr.rel (%p147) target = $region20
        $region19: #{patchgan_forward.11} parent=15 // pred_region
          %s150 = sand.u32 %s34, 1
          %s151 = sand.u32 %s34, 1
          %s152 = smul.addr %s151, 64
          %s153 = scalar_lea.vmem [#allocation3], %s152
          %s154 = smul.u32 4, %s17
          %s155 = smul.u32 4, %s18
          %s156 = smul.addr %s154, 8
          %s157 = sadd.s32 %s155, %s156
          %s158 = smul.addr %s157, 4
          %s159 = scalar_lea.vmem %s0, %s158
          // Predicated region
          $region21: #{patchgan_forward.11} parent=19 // pred_check
            _
          $region22: #{patchgan_forward.11} parent=19 // pred_check_branch
            %161 = sbr.rel (0) target = $region24
          $region23: #{patchgan_forward.11} parent=19 // pred_region
            // Predicated region
            $region25: #{patchgan_forward.11} parent=23 // pred_check
              _
            $region26: #{patchgan_forward.11} parent=23 // pred_check_branch
              %163 = sbr.rel (0) target = $region28
            $region27: #{patchgan_forward.11} parent=23 // pred_region
              loop: start=0, step=1, limit=1
              $region29: #{patchgan_forward.11} parent=27 // loop_pre_header
                _
              $region30: #{patchgan_forward.11} parent=27 // loop_header
                %s165 = sphi 0, %s169
                %p166 = scmp.ge.s32.totalorder %s165, 1
                %s170 = sphi %s159, %s159
                %s171 = sphi %s153, %s153
              $region31: #{patchgan_forward.11} parent=27 // loop_header_branch
                %168 = sbr.rel (%p166) target = $region35
              $region32: #{patchgan_forward.11} parent=27 // loop_body
                %v172 = vld [vmem:[%s170] sm:$0xff]
                %173 = vst [vmem:[%s171] sm:$0xff] %v172
                %v174 = vld [vmem:[%s170 + $0x8] sm:$0xff]
                %175 = vst [vmem:[%s171 + $0x8] sm:$0xff] %v174
                %v176 = vld [vmem:[%s170 + $0x20] sm:$0xff]
                %177 = vst [vmem:[%s171 + $0x10] sm:$0xff] %v176
                %v178 = vld [vmem:[%s170 + $0x28] sm:$0xff]
                %179 = vst [vmem:[%s171 + $0x18] sm:$0xff] %v178
                %v180 = vld [vmem:[%s170 + $0x40] sm:$0xff]
                %181 = vst [vmem:[%s171 + $0x20] sm:$0xff] %v180
                %v182 = vld [vmem:[%s170 + $0x48] sm:$0xff]
                %183 = vst [vmem:[%s171 + $0x28] sm:$0xff] %v182
                %v184 = vld [vmem:[%s170 + $0x60] sm:$0xff]
                %185 = vst [vmem:[%s171 + $0x30] sm:$0xff] %v184
                %v186 = vld [vmem:[%s170 + $0x68] sm:$0xff]
                %187 = vst [vmem:[%s171 + $0x38] sm:$0xff] %v186
              $region33: #{patchgan_forward.11} parent=27 // loop_footer
                %s169 = sadd.s32 1, %s165
              $region34: #{patchgan_forward.11} parent=27 // loop_footer_branch
                %164 = sbr.rel target = $region30
              $region35: #{patchgan_forward.11} parent=27 // loop_exit
                _
            $region28: #{patchgan_forward.11} parent=23 // pred_fallthru
              _
            // Predicated region
            $region36: #{patchgan_forward.11} parent=23 // pred_check
              _
            $region37: #{patchgan_forward.11} parent=23 // pred_check_branch
              %189 = sbr.rel target = $region39
            $region38: #{patchgan_forward.11} parent=23 // pred_region
              _
            $region39: #{patchgan_forward.11} parent=23 // pred_fallthru
              _
          $region24: #{patchgan_forward.11} parent=19 // pred_fallthru
            _
          %190 = vnop
        $region20: #{patchgan_forward.11} parent=15 // pred_fallthru
          _
        // Predicated region
        $region40: #{patchgan_forward.11} parent=15 // pred_check
          %p191 = pneg %p70
        $region41: #{patchgan_forward.11} parent=15 // pred_check_branch
          %193 = sbr.rel (%p191) target = $region43
        $region42: #{patchgan_forward.11} parent=15 // pred_region
          %s194 = smul.u32 64, %s18
          %p195 = scmp.lt.s32.totalorder %s194, 127
          %s196 = scalar_select %p195, %s194, 127
          %s197 = smul.addr %s196, 4
          %s198 = scalar_lea.vmem %s1, %s197
          %s199 = smul.u32 64, %s18
        $region43: #{patchgan_forward.11} parent=15 // pred_fallthru
          _
      $region16: #{patchgan_forward.11} parent=5 // pred_fallthru
        _
      %p200 = scmp.le.s32.totalorder 1, %s10
      %p201 = scmp.lt.s32.totalorder %s10, 3
      %p202 = pnand %p200, %p201
      %p203 = pneg %p202
      // Predicated region
      $region44: #{patchgan_forward.11} parent=5 // pred_check
        _
      $region45: #{patchgan_forward.11} parent=5 // pred_check_branch
        %205 = sbr.rel (%p202) target = $region47
      $region46: #{patchgan_forward.11} parent=5 // pred_region
        %s206 = ssub.s32 %s10, 1
        %s207 = sand.u32 %s37, 1
        %s208 = sand.u32 %s37, 1
        %s209 = smul.addr %s208, 64
        %s210 = scalar_lea.vmem [#allocation3], %s209
        // Predicated region
        $region48: #{patchgan_forward.11} parent=46 // pred_check
          %p211 = pneg %p50
        $region49: #{patchgan_forward.11} parent=46 // pred_check_branch
          %213 = sbr.rel (%p211) target = $region51
        $region50: #{patchgan_forward.11} parent=46 // pred_region
          _
        $region51: #{patchgan_forward.11} parent=46 // pred_fallthru
          _
        %s214 = sand.u32 %s37, 1
        %s215 = sand.u32 %s37, 1
        %s216 = smul.addr %s215, 64
        %s217 = scalar_lea.vmem [#allocation3], %s216
        %p218 = pneg %p50
        %p219 = pneg %p47
        %s220 = smul.u32 64, %s20
        %p221 = scmp.lt.s32.totalorder %s220, 127
        %s222 = scalar_select %p221, %s220, 127
        %s223 = smul.addr %s222, 4
        %s224 = scalar_lea.vmem %s1, %s223
        %p225 = pneg %p76
        %p226 = pneg %p73
        %p227 = pneg %p102
        %p228 = pneg %p99
        %s229 = smul.u32 4, %s19
        %p230 = scmp.lt.s32.totalorder %s229, 3
        %s231 = scalar_select %p230, %s229, 3
        %s232 = smul.addr %s231, 8
        %s233 = scalar_lea.vmem %s2, %s232
        %p234 = pneg %p128
        %p235 = pneg %p125
        %p236 = scmp.lt.s32.totalorder %s19, 0
        %s237 = scalar_select %p236, %s19, 0
        %s238 = smul.addr %s237, 8
        %s239 = scalar_lea.vmem %s3, %s238
        %s240 = smul.u32 4, %s19
        %s241 = smul.u32 4, %s20
        %s242 = smul.u32 64, %s20
        %p243 = scmp.lt.s32.totalorder %s242, 127
        %s244 = scalar_select %p243, %s242, 127
        %s245 = smul.addr %s244, 4
        %s246 = scalar_lea.vmem %s1, %s245
        %s247 = smul.u32 64, %s20
        %s248 = smul.u32 4, %s19
        %p249 = scmp.lt.s32.totalorder %s248, 3
        %s250 = scalar_select %p249, %s248, 3
        %s251 = smul.addr %s250, 8
        %s252 = scalar_lea.vmem %s2, %s251
        %s253 = smul.u32 4, %s19
        %p254 = scmp.lt.s32.totalorder %s19, 0
        %s255 = scalar_select %p254, %s19, 0
        %s256 = smul.addr %s255, 8
        %s257 = scalar_lea.vmem %s3, %s256
        %p259 = scmp.eq.s32.totalorder %s20, 0
        // Predicated region
        $region52: #{patchgan_forward.11} parent=46 // pred_check
          %p260 = pneg %p259
        $region53: #{patchgan_forward.11} parent=46 // pred_check_branch
          %262 = sbr.rel (%p260) target = $region55
        $region54: #{patchgan_forward.11} parent=46 // pred_region
          %263 = vst [vmem:[#allocation2] sm:$0xff] 0.0
          %264 = vst [vmem:[#allocation2 + $0x8] sm:$0xff] 0.0
          %265 = vst [vmem:[#allocation2 + $0x10] sm:$0xff] 0.0
          %266 = vst [vmem:[#allocation2 + $0x18] sm:$0xff] 0.0
        $region55: #{patchgan_forward.11} parent=46 // pred_fallthru
          _
        %v267 = vld [vmem:[#allocation2] sm:$0xff]
        %v268 = vld [vmem:[#allocation2 + $0x8] sm:$0xff]
        %v269 = vld [vmem:[#allocation2 + $0x10] sm:$0xff]
        %v270 = vld [vmem:[#allocation2 + $0x18] sm:$0xff]
        %v271 = vld [vmem:[%s210] sm:$0xff]
        %v272 = vld [vmem:[%s210 + $0x8] sm:$0xff]
        %v273 = vld [vmem:[%s210 + $0x10] sm:$0xff]
        %v274 = vld [vmem:[%s210 + $0x18] sm:$0xff]
        %v275 = vld [vmem:[%s210 + $0x20] sm:$0xff]
        %v276 = vld [vmem:[%s210 + $0x28] sm:$0xff]
        %v277 = vld [vmem:[%s210 + $0x30] sm:$0xff]
        %v278 = vld [vmem:[%s210 + $0x38] sm:$0xff]
        %v279 = vld [vmem:[%s246] sm:$0xf]
        %v280 = vld [vmem:[%s246 + $0x4] sm:$0xf]
        %v281 = vld [vmem:[%s246 + $0x8] sm:$0xf]
        %v282 = vld [vmem:[%s246 + $0xc] sm:$0xf]
        %v283 = vld [vmem:[%s246 + $0x10] sm:$0xf]
        %v284 = vld [vmem:[%s246 + $0x14] sm:$0xf]
        %v285 = vld [vmem:[%s246 + $0x18] sm:$0xf]
        %v286 = vld [vmem:[%s246 + $0x1c] sm:$0xf]
        %v287 = vld [vmem:[%s246 + $0x20] sm:$0xf]
        %v288 = vld [vmem:[%s246 + $0x24] sm:$0xf]
        %v289 = vld [vmem:[%s246 + $0x28] sm:$0xf]
        %v290 = vld [vmem:[%s246 + $0x2c] sm:$0xf]
        %v291 = vld [vmem:[%s246 + $0x30] sm:$0xf]
        %v292 = vld [vmem:[%s246 + $0x34] sm:$0xf]
        %v293 = vld [vmem:[%s246 + $0x38] sm:$0xf]
        %v294 = vld [vmem:[%s246 + $0x3c] sm:$0xf]
        %v295 = vld [vmem:[%s246 + $0x40] sm:$0xf]
        %v296 = vld [vmem:[%s246 + $0x44] sm:$0xf]
        %v297 = vld [vmem:[%s246 + $0x48] sm:$0xf]
        %v298 = vld [vmem:[%s246 + $0x4c] sm:$0xf]
        %v299 = vld [vmem:[%s246 + $0x50] sm:$0xf]
        %v300 = vld [vmem:[%s246 + $0x54] sm:$0xf]
        %v301 = vld [vmem:[%s246 + $0x58] sm:$0xf]
        %v302 = vld [vmem:[%s246 + $0x5c] sm:$0xf]
        %v303 = vld [vmem:[%s246 + $0x60] sm:$0xf]
        %v304 = vld [vmem:[%s246 + $0x64] sm:$0xf]
        %v305 = vld [vmem:[%s246 + $0x68] sm:$0xf]
        %v306 = vld [vmem:[%s246 + $0x6c] sm:$0xf]
        %v307 = vld [vmem:[%s246 + $0x70] sm:$0xf]
        %v308 = vld [vmem:[%s246 + $0x74] sm:$0xf]
        %v309 = vld [vmem:[%s246 + $0x78] sm:$0xf]
        %v310 = vld [vmem:[%s246 + $0x7c] sm:$0xf]
        %v311 = vld [vmem:[%s246 + $0x80] sm:$0xf]
        %v312 = vld [vmem:[%s246 + $0x84] sm:$0xf]
        %v313 = vld [vmem:[%s246 + $0x88] sm:$0xf]
        %v314 = vld [vmem:[%s246 + $0x8c] sm:$0xf]
        %v315 = vld [vmem:[%s246 + $0x90] sm:$0xf]
        %v316 = vld [vmem:[%s246 + $0x94] sm:$0xf]
        %v317 = vld [vmem:[%s246 + $0x98] sm:$0xf]
        %v318 = vld [vmem:[%s246 + $0x9c] sm:$0xf]
        %v319 = vld [vmem:[%s246 + $0xa0] sm:$0xf]
        %v320 = vld [vmem:[%s246 + $0xa4] sm:$0xf]
        %v321 = vld [vmem:[%s246 + $0xa8] sm:$0xf]
        %v322 = vld [vmem:[%s246 + $0xac] sm:$0xf]
        %v323 = vld [vmem:[%s246 + $0xb0] sm:$0xf]
        %v324 = vld [vmem:[%s246 + $0xb4] sm:$0xf]
        %v325 = vld [vmem:[%s246 + $0xb8] sm:$0xf]
        %v326 = vld [vmem:[%s246 + $0xbc] sm:$0xf]
        %v327 = vld [vmem:[%s246 + $0xc0] sm:$0xf]
        %v328 = vld [vmem:[%s246 + $0xc4] sm:$0xf]
        %v329 = vld [vmem:[%s246 + $0xc8] sm:$0xf]
        %v330 = vld [vmem:[%s246 + $0xcc] sm:$0xf]
        %v331 = vld [vmem:[%s246 + $0xd0] sm:$0xf]
        %v332 = vld [vmem:[%s246 + $0xd4] sm:$0xf]
        %v333 = vld [vmem:[%s246 + $0xd8] sm:$0xf]
        %v334 = vld [vmem:[%s246 + $0xdc] sm:$0xf]
        %v335 = vld [vmem:[%s246 + $0xe0] sm:$0xf]
        %v336 = vld [vmem:[%s246 + $0xe4] sm:$0xf]
        %v337 = vld [vmem:[%s246 + $0xe8] sm:$0xf]
        %v338 = vld [vmem:[%s246 + $0xec] sm:$0xf]
        %v339 = vld [vmem:[%s246 + $0xf0] sm:$0xf]
        %v340 = vld [vmem:[%s246 + $0xf4] sm:$0xf]
        %v341 = vld [vmem:[%s246 + $0xf8] sm:$0xf]
        %v342 = vld [vmem:[%s246 + $0xfc] sm:$0xf]
        %v351 = vunpack.c.l.b16 %v271
        %v352 = vunpack.c.h.b16 %v271
        %v353 = vunpack.c.l.b16 %v272
        %v354 = vunpack.c.h.b16 %v272
        %v355 = vunpack.c.l.b16 %v273
        %v356 = vunpack.c.h.b16 %v273
        %v357 = vunpack.c.l.b16 %v274
        %v358 = vunpack.c.h.b16 %v274
        %v359 = vunpack.c.l.b16 %v275
        %v360 = vunpack.c.h.b16 %v275
        %v361 = vunpack.c.l.b16 %v276
        %v362 = vunpack.c.h.b16 %v276
        %v363 = vunpack.c.l.b16 %v277
        %v364 = vunpack.c.h.b16 %v277
        %v365 = vunpack.c.l.b16 %v278
        %v366 = vunpack.c.h.b16 %v278
        %v367 = vpack.c.b16 %v355, %v351
        %v368 = vpack.c.b16 %v356, %v352
        %v369 = vpack.c.b16 %v357, %v353
        %v370 = vpack.c.b16 %v358, %v354
        %v371 = vpack.c.b16 %v363, %v359
        %v372 = vpack.c.b16 %v364, %v360
        %v373 = vpack.c.b16 %v365, %v361
        %v374 = vpack.c.b16 %v366, %v362
        %v447 = vunpack.c.l.b16 %v279
        %v448 = vunpack.c.l.b16 %v280
        %v449 = vunpack.c.l.b16 %v281
        %v450 = vunpack.c.l.b16 %v282
        %v451 = vunpack.c.l.b16 %v283
        %v452 = vunpack.c.l.b16 %v284
        %v453 = vunpack.c.l.b16 %v285
        %v454 = vunpack.c.l.b16 %v286
        %v455 = vunpack.c.l.b16 %v287
        %v456 = vunpack.c.l.b16 %v288
        %v457 = vunpack.c.l.b16 %v289
        %v458 = vunpack.c.l.b16 %v290
        %v459 = vunpack.c.l.b16 %v291
        %v460 = vunpack.c.l.b16 %v292
        %v461 = vunpack.c.l.b16 %v293
        %v462 = vunpack.c.l.b16 %v294
        %v463 = vunpack.c.l.b16 %v295
        %v464 = vunpack.c.l.b16 %v296
        %v465 = vunpack.c.l.b16 %v297
        %v466 = vunpack.c.l.b16 %v298
        %v467 = vunpack.c.l.b16 %v299
        %v468 = vunpack.c.l.b16 %v300
        %v469 = vunpack.c.l.b16 %v301
        %v470 = vunpack.c.l.b16 %v302
        %v471 = vunpack.c.l.b16 %v303
        %v472 = vunpack.c.l.b16 %v304
        %v473 = vunpack.c.l.b16 %v305
        %v474 = vunpack.c.l.b16 %v306
        %v475 = vunpack.c.l.b16 %v307
        %v476 = vunpack.c.l.b16 %v308
        %v477 = vunpack.c.l.b16 %v309
        %v478 = vunpack.c.l.b16 %v310
        %v479 = vunpack.c.l.b16 %v311
        %v480 = vunpack.c.l.b16 %v312
        %v481 = vunpack.c.l.b16 %v313
        %v482 = vunpack.c.l.b16 %v314
        %v483 = vunpack.c.l.b16 %v315
        %v484 = vunpack.c.l.b16 %v316
        %v485 = vunpack.c.l.b16 %v317
        %v486 = vunpack.c.l.b16 %v318
        %v487 = vunpack.c.l.b16 %v319
        %v488 = vunpack.c.l.b16 %v320
        %v489 = vunpack.c.l.b16 %v321
        %v490 = vunpack.c.l.b16 %v322
        %v491 = vunpack.c.l.b16 %v323
        %v492 = vunpack.c.l.b16 %v324
        %v493 = vunpack.c.l.b16 %v325
        %v494 = vunpack.c.l.b16 %v326
        %v495 = vunpack.c.l.b16 %v327
        %v496 = vunpack.c.l.b16 %v328
        %v497 = vunpack.c.l.b16 %v329
        %v498 = vunpack.c.l.b16 %v330
        %v499 = vunpack.c.l.b16 %v331
        %v500 = vunpack.c.l.b16 %v332
        %v501 = vunpack.c.l.b16 %v333
        %v502 = vunpack.c.l.b16 %v334
        %v503 = vunpack.c.l.b16 %v335
        %v504 = vunpack.c.l.b16 %v336
        %v505 = vunpack.c.l.b16 %v337
        %v506 = vunpack.c.l.b16 %v338
        %v507 = vunpack.c.l.b16 %v339
        %v508 = vunpack.c.l.b16 %v340
        %v509 = vunpack.c.l.b16 %v341
        %v510 = vunpack.c.l.b16 %v342
        %v511 = vpack.c.b16 %v448, %v447
        %v512 = vpack.c.b16 %v450, %v449
        %v513 = vpack.c.b16 %v452, %v451
        %v514 = vpack.c.b16 %v454, %v453
        %v515 = vpack.c.b16 %v456, %v455
        %v516 = vpack.c.b16 %v458, %v457
        %v517 = vpack.c.b16 %v460, %v459
        %v518 = vpack.c.b16 %v462, %v461
        %v519 = vpack.c.b16 %v464, %v463
        %v520 = vpack.c.b16 %v466, %v465
        %v521 = vpack.c.b16 %v468, %v467
        %v522 = vpack.c.b16 %v470, %v469
        %v523 = vpack.c.b16 %v472, %v471
        %v524 = vpack.c.b16 %v474, %v473
        %v525 = vpack.c.b16 %v476, %v475
        %v526 = vpack.c.b16 %v478, %v477
        %v527 = vpack.c.b16 %v480, %v479
        %v528 = vpack.c.b16 %v482, %v481
        %v529 = vpack.c.b16 %v484, %v483
        %v530 = vpack.c.b16 %v486, %v485
        %v531 = vpack.c.b16 %v488, %v487
        %v532 = vpack.c.b16 %v490, %v489
        %v533 = vpack.c.b16 %v492, %v491
        %v534 = vpack.c.b16 %v494, %v493
        %v535 = vpack.c.b16 %v496, %v495
        %v536 = vpack.c.b16 %v498, %v497
        %v537 = vpack.c.b16 %v500, %v499
        %v538 = vpack.c.b16 %v502, %v501
        %v539 = vpack.c.b16 %v504, %v503
        %v540 = vpack.c.b16 %v506, %v505
        %v541 = vpack.c.b16 %v508, %v507
        %v542 = vpack.c.b16 %v510, %v509
        %575 = vmatprep.subr.bf16.mxu0 0
        %576 = vmatpush1.bf16.msra.mxu0 %v511
        %577 = vmatprep.subr.bf16.mxu0 0
        %578 = vmatpush1.bf16.msra.mxu0 %v512
        %579 = vmatprep.subr.bf16.mxu0 0
        %580 = vmatpush1.bf16.msra.mxu0 %v513
        %581 = vmatprep.subr.bf16.mxu0 0
        %582 = vmatpush1.bf16.msra.mxu0 %v514
        %583 = vmatprep.subr.bf16.mxu0 0
        %584 = vmatpush1.bf16.msra.mxu0 %v515
        %585 = vmatprep.subr.bf16.mxu0 0
        %586 = vmatpush1.bf16.msra.mxu0 %v516
        %587 = vmatprep.subr.bf16.mxu0 0
        %588 = vmatpush1.bf16.msra.mxu0 %v517
        %589 = vmatprep.subr.bf16.mxu0 0
        %590 = vmatpush1.bf16.msra.mxu0 %v518
        %591 = vmatprep.subr.bf16.mxu0 0
        %592 = vmatpush1.bf16.msra.mxu0 %v519
        %593 = vmatprep.subr.bf16.mxu0 0
        %594 = vmatpush1.bf16.msra.mxu0 %v520
        %595 = vmatprep.subr.bf16.mxu0 0
        %596 = vmatpush1.bf16.msra.mxu0 %v521
        %597 = vmatprep.subr.bf16.mxu0 0
        %598 = vmatpush1.bf16.msra.mxu0 %v522
        %599 = vmatprep.subr.bf16.mxu0 0
        %600 = vmatpush1.bf16.msra.mxu0 %v523
        %601 = vmatprep.subr.bf16.mxu0 0
        %602 = vmatpush1.bf16.msra.mxu0 %v524
        %603 = vmatprep.subr.bf16.mxu0 0
        %604 = vmatpush1.bf16.msra.mxu0 %v525
        %605 = vmatprep.subr.bf16.mxu0 0
        %606 = vmatpush1.bf16.msra.mxu0 %v526
        %607 = vmatprep.mubr.bf16.mxu0 %v368
        %608 = vmatmul.mubr.bf16.gmra.mrb[0].mxu0 %v367
        %v609 = vpop.f32.mrb[0].mxu0
        %v610 = vadd.f32 0.0, %v609
        %v611 = vpop.f32.mrb[0].mxu0
        %v612 = vpop.f32.mrb[0].mxu0
        %v613 = vadd.f32 0.0, %v612
        %v614 = vpop.f32.mrb[0].mxu0
        %615 = vmatprep.mubr.bf16.mxu0 %v372
        %616 = vmatmul.mubr.bf16.gmra.mrb[0].mxu0 %v371
        %v617 = vpop.f32.mrb[0].mxu0
        %v618 = vadd.f32 0.0, %v617
        %v619 = vpop.f32.mrb[0].mxu0
        %v620 = vpop.f32.mrb[0].mxu0
        %v621 = vadd.f32 0.0, %v620
        %v622 = vpop.f32.mrb[0].mxu0
        %623 = vdwg.mxu0
        %624 = vmatprep.subr.bf16.mxu0 0
        %625 = vmatpush1.bf16.msra.mxu0 %v527
        %626 = vmatprep.subr.bf16.mxu0 0
        %627 = vmatpush1.bf16.msra.mxu0 %v528
        %628 = vmatprep.subr.bf16.mxu0 0
        %629 = vmatpush1.bf16.msra.mxu0 %v529
        %630 = vmatprep.subr.bf16.mxu0 0
        %631 = vmatpush1.bf16.msra.mxu0 %v530
        %632 = vmatprep.subr.bf16.mxu0 0
        %633 = vmatpush1.bf16.msra.mxu0 %v531
        %634 = vmatprep.subr.bf16.mxu0 0
        %635 = vmatpush1.bf16.msra.mxu0 %v532
        %636 = vmatprep.subr.bf16.mxu0 0
        %637 = vmatpush1.bf16.msra.mxu0 %v533
        %638 = vmatprep.subr.bf16.mxu0 0
        %639 = vmatpush1.bf16.msra.mxu0 %v534
        %640 = vmatprep.subr.bf16.mxu0 0
        %641 = vmatpush1.bf16.msra.mxu0 %v535
        %642 = vmatprep.subr.bf16.mxu0 0
        %643 = vmatpush1.bf16.msra.mxu0 %v536
        %644 = vmatprep.subr.bf16.mxu0 0
        %645 = vmatpush1.bf16.msra.mxu0 %v537
        %646 = vmatprep.subr.bf16.mxu0 0
        %647 = vmatpush1.bf16.msra.mxu0 %v538
        %648 = vmatprep.subr.bf16.mxu0 0
        %649 = vmatpush1.bf16.msra.mxu0 %v539
        %650 = vmatprep.subr.bf16.mxu0 0
        %651 = vmatpush1.bf16.msra.mxu0 %v540
        %652 = vmatprep.subr.bf16.mxu0 0
        %653 = vmatpush1.bf16.msra.mxu0 %v541
        %654 = vmatprep.subr.bf16.mxu0 0
        %655 = vmatpush1.bf16.msra.mxu0 %v542
        %656 = vmatprep.mubr.bf16.mxu0 %v370
        %657 = vmatmul.mubr.bf16.gmra.mrb[0].mxu0 %v369
        %v658 = vpop.f32.mrb[0].mxu0
        %v659 = vadd.f32 %v610, %v658
        %v660 = vpop.f32.mrb[0].mxu0
        %v661 = vpop.f32.mrb[0].mxu0
        %v662 = vadd.f32 %v613, %v661
        %v663 = vpop.f32.mrb[0].mxu0
        %664 = vmatprep.mubr.bf16.mxu0 %v374
        %665 = vmatmul.mubr.bf16.gmra.mrb[0].mxu0 %v373
        %v666 = vpop.f32.mrb[0].mxu0
        %v667 = vadd.f32 %v618, %v666
        %v668 = vpop.f32.mrb[0].mxu0
        %v669 = vpop.f32.mrb[0].mxu0
        %v670 = vadd.f32 %v621, %v669
        %v671 = vpop.f32.mrb[0].mxu0
        %672 = vdwg.mxu0
        %v673 = vadd.f32 %v267, %v659
        %v674 = vadd.f32 %v268, %v662
        %v675 = vadd.f32 %v269, %v667
        %v676 = vadd.f32 %v270, %v670
        %677 = vst [vmem:[#allocation2] sm:$0xff] %v673
        %678 = vst [vmem:[#allocation2 + $0x8] sm:$0xff] %v674
        %679 = vst [vmem:[#allocation2 + $0x10] sm:$0xff] %v675
        %680 = vst [vmem:[#allocation2 + $0x18] sm:$0xff] %v676
        %p681 = scmp.eq.s32.totalorder %s20, 1
        // Predicated region
        $region56: #{patchgan_forward.11} parent=46 // pred_check
          %p682 = pneg %p681
        $region57: #{patchgan_forward.11} parent=46 // pred_check_branch
          %684 = sbr.rel (%p682) target = $region59
        $region58: #{patchgan_forward.11} parent=46 // pred_region
          %v685 = vld [vmem:[#allocation2] sm:$0xff]
          %v686 = vld [vmem:[#allocation2 + $0x8] sm:$0xff]
          %v687 = vld [vmem:[#allocation2 + $0x10] sm:$0xff]
          %v688 = vld [vmem:[#allocation2 + $0x18] sm:$0xff]
          %v689 = vadd.f32 %v685, %v686
          %v690 = vadd.f32 %v689, %v687
          %v691 = vadd.f32 %v690, %v688
          %v692 = vrot.slane %v691, 4
          %v693 = vadd.f32 %v691, %v692
          %v694 = vrot.slane %v693, 2
          %v695 = vadd.f32 %v693, %v694
          %v696 = vrot.slane %v695, 1
          %v697 = vadd.f32 %v695, %v696
          %v698 = vmul.f32 %v685, %v685
          %v699 = vmul.f32 %v686, %v686
          %v700 = vmul.f32 %v687, %v687
          %v701 = vmul.f32 %v688, %v688
          %v702 = vadd.f32 %v698, %v699
          %v703 = vadd.f32 %v702, %v700
          %v704 = vadd.f32 %v703, %v701
          %v705 = vrot.slane %v704, 4
          %v706 = vadd.f32 %v704, %v705
          %v707 = vrot.slane %v706, 2
          %v708 = vadd.f32 %v706, %v707
          %v709 = vrot.slane %v708, 1
          %v710 = vadd.f32 %v708, %v709
          %v711 = vlaneseq
          %v712 = vshrl.u32 %v711, 7
          %vm713 = vcmp.eq.s32.totalorder %v712, 0
          %vm714 = vcmp.eq.s32.totalorder %v712, 1
          %v715 = vsel %vm714, %v710, 0.0
          %v716 = vsel %vm713, %v697, %v715
          %717 = vst [vmem:[%s257] sm:$0xff] %v716
          %718 = vst [vmem:[%s252] sm:$0xff] %v685
          %719 = vst [vmem:[%s252 + $0x8] sm:$0xff] %v686
          %720 = vst [vmem:[%s252 + $0x10] sm:$0xff] %v687
          %721 = vst [vmem:[%s252 + $0x18] sm:$0xff] %v688
        $region59: #{patchgan_forward.11} parent=46 // pred_fallthru
          _
        %s722 = smul.u32 4, %s19
        %p723 = scmp.lt.s32.totalorder %s722, 3
        %s724 = scalar_select %p723, %s722, 3
        %s725 = smul.addr %s724, 8
        %s726 = scalar_lea.vmem %s2, %s725
        %p727 = scmp.lt.s32.totalorder %s19, 0
        %s728 = scalar_select %p727, %s19, 0
        %s729 = smul.addr %s728, 8
        %s730 = scalar_lea.vmem %s3, %s729
        // Predicated region
        $region60: #{patchgan_forward.11} parent=46 // pred_check
          %p731 = pneg %p99
        $region61: #{patchgan_forward.11} parent=46 // pred_check_branch
          %733 = sbr.rel (%p731) target = $region63
        $region62: #{patchgan_forward.11} parent=46 // pred_region
          %s734 = smul.u32 4, %s19
        $region63: #{patchgan_forward.11} parent=46 // pred_fallthru
          _
        // Predicated region
        $region64: #{patchgan_forward.11} parent=46 // pred_check
          %p735 = pneg %p125
        $region65: #{patchgan_forward.11} parent=46 // pred_check_branch
          %737 = sbr.rel (%p735) target = $region67
        $region66: #{patchgan_forward.11} parent=46 // pred_region
          _
        $region67: #{patchgan_forward.11} parent=46 // pred_fallthru
          _
        // Predicated region
        $region68: #{patchgan_forward.11} parent=46 // pred_check
          %p738 = pneg %p99
        $region69: #{patchgan_forward.11} parent=46 // pred_check_branch
          %740 = sbr.rel (%p738) target = $region71
        $region70: #{patchgan_forward.11} parent=46 // pred_region
          %s741 = smul.u32 4, %s19
          %p742 = scmp.lt.s32.totalorder %s741, 3
          %s743 = scalar_select %p742, %s741, 3
          %s744 = smul.addr %s743, 8
          %s745 = scalar_lea.vmem %s2, %s744
        $region71: #{patchgan_forward.11} parent=46 // pred_fallthru
          _
        // Predicated region
        $region72: #{patchgan_forward.11} parent=46 // pred_check
          %p746 = pneg %p125
        $region73: #{patchgan_forward.11} parent=46 // pred_check_branch
          %748 = sbr.rel (%p746) target = $region75
        $region74: #{patchgan_forward.11} parent=46 // pred_region
          %p749 = scmp.lt.s32.totalorder %s19, 0
          %s750 = scalar_select %p749, %s19, 0
          %s751 = smul.addr %s750, 8
          %s752 = scalar_lea.vmem %s3, %s751
        $region75: #{patchgan_forward.11} parent=46 // pred_fallthru
          _
      $region47: #{patchgan_forward.11} parent=5 // pred_fallthru
        _
      %p753 = scmp.le.s32.totalorder 2, %s10
      // Predicated region
      $region76: #{patchgan_forward.11} parent=5 // pred_check
        %p754 = pneg %p753
      $region77: #{patchgan_forward.11} parent=5 // pred_check_branch
        %756 = sbr.rel (%p754) target = $region79
      $region78: #{patchgan_forward.11} parent=5 // pred_region
        %s757 = ssub.s32 %s10, 2
      $region79: #{patchgan_forward.11} parent=5 // pred_fallthru
        _
    $region6: #{patchgan_forward.11} parent=1 // loop_footer
      %s14 = sadd.s32 1, %s10
    $region7: #{patchgan_forward.11} parent=1 // loop_footer_branch
      %9 = sbr.rel target = $region3
    $region8: #{patchgan_forward.11} parent=1 // loop_exit
      _

// kernel: patchgan_forward.14
$region0: #{patchgan_forward.14}
  #allocation0 [shape = 'u32[]', space=smem, size = 0x4, offset = 0x4, fixed_abs, tag = 'smem constant byte address 0x4 - core index']
  #allocation1 [shape = 'u32[144,128]{1,0:T(1,128)}', space=vmem, size = 0x12000, scoped, tag = 'internal scratch']
  %s0 = inlined_call_operand.vmem [shape: f32[24,256], index: 0, kind: input, shape index: {}]
  %s1 = inlined_call_operand.vmem [shape: f32[1,256], index: 1, kind: input, shape index: {}]
  %s2 = inlined_call_operand.vmem [shape: f32[1,256], index: 2, kind: input, shape index: {}]
  %s3 = inlined_call_operand.vmem [shape: bf16[24,256], index: 3, kind: output, shape index: {}]
  %s4 = sld [smem:[#allocation0]]
  $region22: #{patchgan_forward.14} parent=0
    _
  %s6 = ssub.s32 1, %s4
  %s7 = scalar_select 0, %s6, %s4
  // Predicated region
  $region2: #{patchgan_forward.14} parent=0 // pred_check
    _
  $region3: #{patchgan_forward.14} parent=0 // pred_check_branch
    %9 = sbr.rel (0) target = $region5
  $region4: #{patchgan_forward.14} parent=0 // pred_region
    _
  $region5: #{patchgan_forward.14} parent=0 // pred_fallthru
    _
  // Predicated region
  $region6: #{patchgan_forward.14} parent=0 // pred_check
    _
  $region7: #{patchgan_forward.14} parent=0 // pred_check_branch
    %11 = sbr.rel (0) target = $region9
  $region8: #{patchgan_forward.14} parent=0 // pred_region
    _
  $region9: #{patchgan_forward.14} parent=0 // pred_fallthru
    _
  // Predicated region
  $region10: #{patchgan_forward.14} parent=0 // pred_check
    _
  $region11: #{patchgan_forward.14} parent=0 // pred_check_branch
    %13 = sbr.rel (0) target = $region13
  $region12: #{patchgan_forward.14} parent=0 // pred_region
    _
  $region13: #{patchgan_forward.14} parent=0 // pred_fallthru
    _
  %v14 = vld [vmem:[%s0] sm:$0xff]
  %v15 = vld [vmem:[%s0 + $0x8] sm:$0xff]
  %v16 = vld [vmem:[%s0 + $0x10] sm:$0xff]
  %v17 = vld [vmem:[%s0 + $0x18] sm:$0xff]
  %v18 = vld [vmem:[%s0 + $0x20] sm:$0xff]
  %v19 = vld [vmem:[%s0 + $0x28] sm:$0xff]
  %v20 = vld [vmem:[%s1] sm:$0x3]
  %v22 = vlaneseq
  %v23 = vshrl.u32 %v22, 7
  %v24 = vsub.s32 0, %v23
  %v25 = vrot.slane %v20, %v24
  %v26 = vlaneseq
  %v27 = vshrl.u32 %v26, 7
  %v28 = vsub.s32 1, %v27
  %v29 = vrot.slane %v20, %v28
  %v32 = vsub.f32 %v14, %v25
  %v33 = vsub.f32 %v15, %v29
  %v34 = vsub.f32 %v16, %v25
  %v35 = vsub.f32 %v17, %v29
  %v36 = vsub.f32 %v18, %v25
  %v37 = vsub.f32 %v19, %v29
  %v38 = vld [vmem:[%s2] sm:$0x3]
  %v40 = vlaneseq
  %v41 = vshrl.u32 %v40, 7
  %v42 = vsub.s32 0, %v41
  %v43 = vrot.slane %v38, %v42
  %v44 = vlaneseq
  %v45 = vshrl.u32 %v44, 7
  %v46 = vsub.s32 1, %v45
  %v47 = vrot.slane %v38, %v46
  %v50 = vmul.f32 %v32, %v43
  %v51 = vmul.f32 %v33, %v47
  %v52 = vmul.f32 %v34, %v43
  %v53 = vmul.f32 %v35, %v47
  %v54 = vmul.f32 %v36, %v43
  %v55 = vmul.f32 %v37, %v47
  %vm56 = vcmp.ge.f32.partialorder %v50, 0.0
  %vm57 = vcmp.ge.f32.partialorder %v51, 0.0
  %vm58 = vcmp.ge.f32.partialorder %v52, 0.0
  %vm59 = vcmp.ge.f32.partialorder %v53, 0.0
  %vm60 = vcmp.ge.f32.partialorder %v54, 0.0
  %vm61 = vcmp.ge.f32.partialorder %v55, 0.0
  %v62 = vmul.f32 %v50, 0.2
  %v63 = vmul.f32 %v51, 0.2
  %v64 = vmul.f32 %v52, 0.2
  %v65 = vmul.f32 %v53, 0.2
  %v66 = vmul.f32 %v54, 0.2
  %v67 = vmul.f32 %v55, 0.2
  %v68 = vsel %vm56, %v50, %v62
  %v69 = vsel %vm57, %v51, %v63
  %v70 = vsel %vm58, %v52, %v64
  %v71 = vsel %vm59, %v53, %v65
  %v72 = vsel %vm60, %v54, %v66
  %v73 = vsel %vm61, %v55, %v67
  %v74 = vpack.c.bf16 %v70, %v68
  %v75 = vpack.c.bf16 %v71, %v69
  %v76 = vpack.c.bf16 %v72, %v72
  %v77 = vpack.c.bf16 %v73, %v73
  %v82 = vunpack.c.l.b16 %v74
  %v83 = vunpack.c.l.b16 %v75
  %v84 = vunpack.c.h.b16 %v74
  %v85 = vunpack.c.h.b16 %v75
  %v86 = vunpack.c.l.b16 %v76
  %v87 = vunpack.c.l.b16 %v77
  %v88 = vpack.c.b16 %v83, %v82
  %v89 = vpack.c.b16 %v85, %v84
  %v90 = vpack.c.b16 %v87, %v86
  %94 = vst [vmem:[%s3] sm:$0xff] %v88
  %95 = vst [vmem:[%s3 + $0x8] sm:$0xff] %v89
  %96 = vst [vmem:[%s3 + $0x10] sm:$0xff] %v90
  // Predicated region
  $region14: #{patchgan_forward.14} parent=0 // pred_check
    _
  $region15: #{patchgan_forward.14} parent=0 // pred_check_branch
    %98 = sbr.rel (0) target = $region17
  $region16: #{patchgan_forward.14} parent=0 // pred_region
    _
  $region17: #{patchgan_forward.14} parent=0 // pred_fallthru
    _
  // Predicated region
  $region18: #{patchgan_forward.14} parent=0 // pred_check
    _
  $region19: #{patchgan_forward.14} parent=0 // pred_check_branch
    %100 = sbr.rel (0) target = $region21
  $region20: #{patchgan_forward.14} parent=0 // pred_region
    _
  $region21: #{patchgan_forward.14} parent=0 // pred_fallthru
    _

// kernel: patchgan_forward.13
$region0: #{patchgan_forward.13}
  #allocation0 [shape = 'u32[]', space=smem, size = 0x4, offset = 0x4, fixed_abs, tag = 'smem constant byte address 0x4 - core index']
  #allocation1 [shape = 'u32[144,128]{1,0:T(1,128)}', space=vmem, size = 0x12000, scoped, tag = 'internal scratch']
  #allocation2 [shape = 'f32[24,256]{1,0:T(8,128)}', space=vmem, size = 0x6000, scoped, tag = 'scratch operand']
  %s0 = inlined_call_operand.vmem [shape: bf16[24,2048], index: 0, kind: input, shape index: {}]
  %s1 = inlined_call_operand.vmem [shape: bf16[2048,256], index: 1, kind: input, shape index: {}]
  %s2 = inlined_call_operand.vmem [shape: f32[24,256], index: 2, kind: output, shape index: {0}]
  %s3 = inlined_call_operand.vmem [shape: f32[8,256], index: 3, kind: output, shape index: {1}]
  %4 = xla_tuple %s2, %s3
  %s5 = sld [smem:[#allocation0]]
  $region80: #{patchgan_forward.13} parent=0
    _
  %s7 = ssub.s32 1, %s5
  %s8 = scalar_select 0, %s7, %s5
  $region1: #{patchgan_forward.13} parent=0
    #allocation3 [shape = 'u8[49152]{0}', space=vmem, size = 0xc000, scoped, tag = 'input window, operand 0']
    loop: start=0, step=1, limit=6
    $region2: #{patchgan_forward.13} parent=1 // loop_pre_header
      _
    $region3: #{patchgan_forward.13} parent=1 // loop_header
      %s10 = sphi 0, %s14
      %p11 = scmp.ge.s32.totalorder %s10, 6
      %s17 = sphi 0, %s29
      %s18 = sphi 0, %s25
      %s19 = sphi 0, %s17
      %s20 = sphi 0, %s18
      %s21 = sphi 0, %s19
      %s22 = sphi 0, %s20
      %s34 = sphi 0, %s36
      %s37 = sphi 0, %s34
      %s38 = sphi 0, %s37
      %s54 = sphi 0, %s38
      %s60 = sphi 0, %s62
      %s63 = sphi 0, %s60
      %s64 = sphi 0, %s63
      %s80 = sphi 0, %s64
      %s86 = sphi 0, %s88
      %s89 = sphi 0, %s86
      %s90 = sphi 0, %s89
      %s106 = sphi 0, %s90
      %s112 = sphi 0, %s114
      %s115 = sphi 0, %s112
      %s116 = sphi 0, %s115
      %s132 = sphi 0, %s116
    $region4: #{patchgan_forward.13} parent=1 // loop_header_branch
      %13 = sbr.rel (%p11) target = $region8
    $region5: #{patchgan_forward.13} parent=1 // loop_body
      %s15 = ssub.s32 %s10, 1
      %s16 = ssub.s32 %s10, 2
      %s23 = sadd.s32 1, %s18
      %p24 = scmp.ge.s32.totalorder %s23, 4
      %s25 = scalar_select %p24, 0, %s23
      %s26 = sadd.s32 1, %s17
      %s27 = scalar_select %p24, %s26, %s17
      %p28 = scmp.ge.s32.totalorder %s27, 1
      %s29 = scalar_select %p28, 0, %s27
      %s30 = ssub.s32 %s17, %s29
      %s31 = ssub.s32 %s18, %s25
      %s32 = sor.u32 %s30, %s31
      %p33 = scmp.eq.s32.totalorder %s32, 0
      %s35 = sadd.s32 %s34, 1
      %s36 = scalar_select %p33, %s34, %s35
      %p39 = pneg %p33
      %p40 = scmp.eq.s32.totalorder %s10, 3
      %p41 = por %p39, %p40
      %p42 = scmp.ne.s32.totalorder %s34, %s37
      %p43 = scmp.eq.s32.totalorder %s10, 0
      %p44 = por %p42, %p43
      %p45 = scmp.ne.s32.totalorder %s34, %s37
      %p46 = scmp.eq.s32.totalorder %s15, 3
      %p47 = por %p45, %p46
      %p48 = scmp.ne.s32.totalorder %s37, %s38
      %p49 = scmp.eq.s32.totalorder %s15, 0
      %p50 = por %p48, %p49
      %p51 = scmp.ne.s32.totalorder %s37, %s38
      %p52 = scmp.eq.s32.totalorder %s16, 3
      %p53 = por %p51, %p52
      %p55 = scmp.ne.s32.totalorder %s38, %s54
      %p56 = scmp.eq.s32.totalorder %s16, 0
      %p57 = por %p55, %p56
      %s58 = ssub.s32 %s18, %s25
      %p59 = scmp.eq.s32.totalorder %s58, 0
      %s61 = sadd.s32 %s60, 1
      %s62 = scalar_select %p59, %s60, %s61
      %p65 = pneg %p59
      %p66 = scmp.eq.s32.totalorder %s10, 3
      %p67 = por %p65, %p66
      %p68 = scmp.ne.s32.totalorder %s60, %s63
      %p69 = scmp.eq.s32.totalorder %s10, 0
      %p70 = por %p68, %p69
      %p71 = scmp.ne.s32.totalorder %s60, %s63
      %p72 = scmp.eq.s32.totalorder %s15, 3
      %p73 = por %p71, %p72
      %p74 = scmp.ne.s32.totalorder %s63, %s64
      %p75 = scmp.eq.s32.totalorder %s15, 0
      %p76 = por %p74, %p75
      %p77 = scmp.ne.s32.totalorder %s63, %s64
      %p78 = scmp.eq.s32.totalorder %s16, 3
      %p79 = por %p77, %p78
      %p81 = scmp.ne.s32.totalorder %s64, %s80
      %p82 = scmp.eq.s32.totalorder %s16, 0
      %p83 = por %p81, %p82
      %s84 = ssub.s32 %s17, %s29
      %p85 = scmp.eq.s32.totalorder %s84, 0
      %s87 = sadd.s32 %s86, 1
      %s88 = scalar_select %p85, %s86, %s87
      %p91 = pneg %p85
      %p92 = scmp.eq.s32.totalorder %s10, 3
      %p93 = por %p91, %p92
      %p94 = scmp.ne.s32.totalorder %s86, %s89
      %p95 = scmp.eq.s32.totalorder %s10, 0
      %p96 = por %p94, %p95
      %p97 = scmp.ne.s32.totalorder %s86, %s89
      %p98 = scmp.eq.s32.totalorder %s15, 3
      %p99 = por %p97, %p98
      %p100 = scmp.ne.s32.totalorder %s89, %s90
      %p101 = scmp.eq.s32.totalorder %s15, 0
      %p102 = por %p100, %p101
      %p103 = scmp.ne.s32.totalorder %s89, %s90
      %p104 = scmp.eq.s32.totalorder %s16, 3
      %p105 = por %p103, %p104
      %p107 = scmp.ne.s32.totalorder %s90, %s106
      %p108 = scmp.eq.s32.totalorder %s16, 0
      %p109 = por %p107, %p108
      %s110 = ssub.s32 %s17, %s29
      %p111 = scmp.eq.s32.totalorder %s110, 0
      %s113 = sadd.s32 %s112, 1
      %s114 = scalar_select %p111, %s112, %s113
      %p117 = pneg %p111
      %p118 = scmp.eq.s32.totalorder %s10, 3
      %p119 = por %p117, %p118
      %p120 = scmp.ne.s32.totalorder %s112, %s115
      %p121 = scmp.eq.s32.totalorder %s10, 0
      %p122 = por %p120, %p121
      %p123 = scmp.ne.s32.totalorder %s112, %s115
      %p124 = scmp.eq.s32.totalorder %s15, 3
      %p125 = por %p123, %p124
      %p126 = scmp.ne.s32.totalorder %s115, %s116
      %p127 = scmp.eq.s32.totalorder %s15, 0
      %p128 = por %p126, %p127
      %p129 = scmp.ne.s32.totalorder %s115, %s116
      %p130 = scmp.eq.s32.totalorder %s16, 3
      %p131 = por %p129, %p130
      %p133 = scmp.ne.s32.totalorder %s116, %s132
      %p134 = scmp.eq.s32.totalorder %s16, 0
      %p135 = por %p133, %p134
      %p136 = scmp.le.s32.totalorder 1, %s10
      %p137 = scmp.lt.s32.totalorder %s10, 5
      %p138 = pnand %p136, %p137
      %p139 = pneg %p138
      // Predicated region
      $region9: #{patchgan_forward.13} parent=5 // pred_check
        _
      $region10: #{patchgan_forward.13} parent=5 // pred_check_branch
        %141 = sbr.rel (%p138) target = $region12
      $region11: #{patchgan_forward.13} parent=5 // pred_region
        %s142 = ssub.s32 %s10, 1
      $region12: #{patchgan_forward.13} parent=5 // pred_fallthru
        _
      %p143 = scmp.lt.s32.totalorder %s10, 4
      // Predicated region
      $region13: #{patchgan_forward.13} parent=5 // pred_check
        %p144 = pneg %p143
      $region14: #{patchgan_forward.13} parent=5 // pred_check_branch
        %146 = sbr.rel (%p144) target = $region16
      $region15: #{patchgan_forward.13} parent=5 // pred_region
        // Predicated region
        $region17: #{patchgan_forward.13} parent=15 // pred_check
          %p147 = pneg %p44
        $region18: #{patchgan_forward.13} parent=15 // pred_check_branch
          %149 = sbr.rel (%p147) target = $region20
        $region19: #{patchgan_forward.13} parent=15 // pred_region
          %s150 = sand.u32 %s34, 1
          %s151 = sand.u32 %s34, 1
          %s152 = smul.addr %s151, 48
          %s153 = scalar_lea.vmem [#allocation3], %s152
          %s154 = smul.u32 3, %s17
          %s155 = smul.u32 4, %s18
          %s156 = smul.addr %s154, 16
          %s157 = sadd.s32 %s155, %s156
          %s158 = smul.addr %s157, 4
          %s159 = scalar_lea.vmem %s0, %s158
          // Predicated region
          $region21: #{patchgan_forward.13} parent=19 // pred_check
            _
          $region22: #{patchgan_forward.13} parent=19 // pred_check_branch
            %161 = sbr.rel (0) target = $region24
          $region23: #{patchgan_forward.13} parent=19 // pred_region
            // Predicated region
            $region25: #{patchgan_forward.13} parent=23 // pred_check
              _
            $region26: #{patchgan_forward.13} parent=23 // pred_check_branch
              %163 = sbr.rel (0) target = $region28
            $region27: #{patchgan_forward.13} parent=23 // pred_region
              loop: start=0, step=1, limit=1
              $region29: #{patchgan_forward.13} parent=27 // loop_pre_header
                _
              $region30: #{patchgan_forward.13} parent=27 // loop_header
                %s165 = sphi 0, %s169
                %p166 = scmp.ge.s32.totalorder %s165, 1
                %s170 = sphi %s159, %s159
                %s171 = sphi %s153, %s153
              $region31: #{patchgan_forward.13} parent=27 // loop_header_branch
                %168 = sbr.rel (%p166) target = $region35
              $region32: #{patchgan_forward.13} parent=27 // loop_body
                %v172 = vld [vmem:[%s170] sm:$0xff]
                %173 = vst [vmem:[%s171] sm:$0xff] %v172
                %v174 = vld [vmem:[%s170 + $0x8] sm:$0xff]
                %175 = vst [vmem:[%s171 + $0x8] sm:$0xff] %v174
                %v176 = vld [vmem:[%s170 + $0x40] sm:$0xff]
                %177 = vst [vmem:[%s171 + $0x10] sm:$0xff] %v176
                %v178 = vld [vmem:[%s170 + $0x48] sm:$0xff]
                %179 = vst [vmem:[%s171 + $0x18] sm:$0xff] %v178
                %v180 = vld [vmem:[%s170 + $0x80] sm:$0xff]
                %181 = vst [vmem:[%s171 + $0x20] sm:$0xff] %v180
                %v182 = vld [vmem:[%s170 + $0x88] sm:$0xff]
                %183 = vst [vmem:[%s171 + $0x28] sm:$0xff] %v182
              $region33: #{patchgan_forward.13} parent=27 // loop_footer
                %s169 = sadd.s32 1, %s165
              $region34: #{patchgan_forward.13} parent=27 // loop_footer_branch
                %164 = sbr.rel target = $region30
              $region35: #{patchgan_forward.13} parent=27 // loop_exit
                _
            $region28: #{patchgan_forward.13} parent=23 // pred_fallthru
              _
            // Predicated region
            $region36: #{patchgan_forward.13} parent=23 // pred_check
              _
            $region37: #{patchgan_forward.13} parent=23 // pred_check_branch
              %185 = sbr.rel target = $region39
            $region38: #{patchgan_forward.13} parent=23 // pred_region
              _
            $region39: #{patchgan_forward.13} parent=23 // pred_fallthru
              _
          $region24: #{patchgan_forward.13} parent=19 // pred_fallthru
            _
          %186 = vnop
        $region20: #{patchgan_forward.13} parent=15 // pred_fallthru
          _
        // Predicated region
        $region40: #{patchgan_forward.13} parent=15 // pred_check
          %p187 = pneg %p70
        $region41: #{patchgan_forward.13} parent=15 // pred_check_branch
          %189 = sbr.rel (%p187) target = $region43
        $region42: #{patchgan_forward.13} parent=15 // pred_region
          %s190 = smul.u32 64, %s18
          %p191 = scmp.lt.s32.totalorder %s190, 255
          %s192 = scalar_select %p191, %s190, 255
          %s193 = smul.addr %s192, 2
          %s194 = smul.addr %s193, 4
          %s195 = scalar_lea.vmem %s1, %s194
          %s196 = smul.u32 64, %s18
        $region43: #{patchgan_forward.13} parent=15 // pred_fallthru
          _
      $region16: #{patchgan_forward.13} parent=5 // pred_fallthru
        _
      %p197 = scmp.le.s32.totalorder 1, %s10
      %p198 = scmp.lt.s32.totalorder %s10, 5
      %p199 = pnand %p197, %p198
      %p200 = pneg %p199
      // Predicated region
      $region44: #{patchgan_forward.13} parent=5 // pred_check
        _
      $region45: #{patchgan_forward.13} parent=5 // pred_check_branch
        %202 = sbr.rel (%p199) target = $region47
      $region46: #{patchgan_forward.13} parent=5 // pred_region
        %s203 = ssub.s32 %s10, 1
        %s204 = sand.u32 %s37, 1
        %s205 = sand.u32 %s37, 1
        %s206 = smul.addr %s205, 48
        %s207 = scalar_lea.vmem [#allocation3], %s206
        // Predicated region
        $region48: #{patchgan_forward.13} parent=46 // pred_check
          %p208 = pneg %p50
        $region49: #{patchgan_forward.13} parent=46 // pred_check_branch
          %210 = sbr.rel (%p208) target = $region51
        $region50: #{patchgan_forward.13} parent=46 // pred_region
          _
        $region51: #{patchgan_forward.13} parent=46 // pred_fallthru
          _
        %s211 = sand.u32 %s37, 1
        %s212 = sand.u32 %s37, 1
        %s213 = smul.addr %s212, 48
        %s214 = scalar_lea.vmem [#allocation3], %s213
        %p215 = pneg %p50
        %p216 = pneg %p47
        %s217 = smul.u32 64, %s20
        %p218 = scmp.lt.s32.totalorder %s217, 255
        %s219 = scalar_select %p218, %s217, 255
        %s220 = smul.addr %s219, 2
        %s221 = smul.addr %s220, 4
        %s222 = scalar_lea.vmem %s1, %s221
        %p223 = pneg %p76
        %p224 = pneg %p73
        %p225 = pneg %p102
        %p226 = pneg %p99
        %s227 = smul.u32 3, %s19
        %p228 = scmp.lt.s32.totalorder %s227, 2
        %s229 = scalar_select %p228, %s227, 2
        %s230 = smul.addr %s229, 2
        %s231 = smul.addr %s230, 8
        %s232 = scalar_lea.vmem %s2, %s231
        %p233 = pneg %p128
        %p234 = pneg %p125
        %p235 = scmp.lt.s32.totalorder %s19, 0
        %s236 = scalar_select %p235, %s19, 0
        %s237 = smul.addr %s236, 2
        %s238 = smul.addr %s237, 8
        %s239 = scalar_lea.vmem %s3, %s238
        %s240 = smul.u32 3, %s19
        %s241 = smul.u32 4, %s20
        %s242 = smul.u32 64, %s20
        %p243 = scmp.lt.s32.totalorder %s242, 255
        %s244 = scalar_select %p243, %s242, 255
        %s245 = smul.addr %s244, 2
        %s246 = smul.addr %s245, 4
        %s247 = scalar_lea.vmem %s1, %s246
        %s248 = smul.u32 64, %s20
        %s249 = smul.u32 3, %s19
        %p250 = scmp.lt.s32.totalorder %s249, 2
        %s251 = scalar_select %p250, %s249, 2
        %s252 = smul.addr %s251, 2
        %s253 = smul.addr %s252, 8
        %s254 = scalar_lea.vmem %s2, %s253
        %s255 = smul.u32 3, %s19
        %p256 = scmp.lt.s32.totalorder %s19, 0
        %s257 = scalar_select %p256, %s19, 0
        %s258 = smul.addr %s257, 2
        %s259 = smul.addr %s258, 8
        %s260 = scalar_lea.vmem %s3, %s259
        %p261 = scmp.eq.s32.totalorder %s20, 0
        // Predicated region
        $region52: #{patchgan_forward.13} parent=46 // pred_check
          %p262 = pneg %p261
        $region53: #{patchgan_forward.13} parent=46 // pred_check_branch
          %264 = sbr.rel (%p262) target = $region55
        $region54: #{patchgan_forward.13} parent=46 // pred_region
          %265 = vst [vmem:[#allocation2] sm:$0xff] 0.0
          %266 = vst [vmem:[#allocation2 + $0x8] sm:$0xff] 0.0
          %267 = vst [vmem:[#allocation2 + $0x10] sm:$0xff] 0.0
          %268 = vst [vmem:[#allocation2 + $0x18] sm:$0xff] 0.0
          %269 = vst [vmem:[#allocation2 + $0x20] sm:$0xff] 0.0
          %270 = vst [vmem:[#allocation2 + $0x28] sm:$0xff] 0.0
        $region55: #{patchgan_forward.13} parent=46 // pred_fallthru
          _
        %v271 = vld [vmem:[#allocation2] sm:$0xff]
        %v272 = vld [vmem:[#allocation2 + $0x8] sm:$0xff]
        %v273 = vld [vmem:[#allocation2 + $0x10] sm:$0xff]
        %v274 = vld [vmem:[#allocation2 + $0x18] sm:$0xff]
        %v275 = vld [vmem:[#allocation2 + $0x20] sm:$0xff]
        %v276 = vld [vmem:[#allocation2 + $0x28] sm:$0xff]
        %v277 = vld [vmem:[%s207] sm:$0xff]
        %v278 = vld [vmem:[%s207 + $0x8] sm:$0xff]
        %v279 = vld [vmem:[%s207 + $0x10] sm:$0xff]
        %v280 = vld [vmem:[%s207 + $0x18] sm:$0xff]
        %v281 = vld [vmem:[%s207 + $0x20] sm:$0xff]
        %v282 = vld [vmem:[%s207 + $0x28] sm:$0xff]
        %v283 = vld [vmem:[%s247] sm:$0xff]
        %v284 = vld [vmem:[%s247 + $0x8] sm:$0xff]
        %v285 = vld [vmem:[%s247 + $0x10] sm:$0xff]
        %v286 = vld [vmem:[%s247 + $0x18] sm:$0xff]
        %v287 = vld [vmem:[%s247 + $0x20] sm:$0xff]
        %v288 = vld [vmem:[%s247 + $0x28] sm:$0xff]
        %v289 = vld [vmem:[%s247 + $0x30] sm:$0xff]
        %v290 = vld [vmem:[%s247 + $0x38] sm:$0xff]
        %v291 = vld [vmem:[%s247 + $0x40] sm:$0xff]
        %v292 = vld [vmem:[%s247 + $0x48] sm:$0xff]
        %v293 = vld [vmem:[%s247 + $0x50] sm:$0xff]
        %v294 = vld [vmem:[%s247 + $0x58] sm:$0xff]
        %v295 = vld [vmem:[%s247 + $0x60] sm:$0xff]
        %v296 = vld [vmem:[%s247 + $0x68] sm:$0xff]
        %v297 = vld [vmem:[%s247 + $0x70] sm:$0xff]
        %v298 = vld [vmem:[%s247 + $0x78] sm:$0xff]
        %v299 = vld [vmem:[%s247 + $0x80] sm:$0xff]
        %v300 = vld [vmem:[%s247 + $0x88] sm:$0xff]
        %v301 = vld [vmem:[%s247 + $0x90] sm:$0xff]
        %v302 = vld [vmem:[%s247 + $0x98] sm:$0xff]
        %v303 = vld [vmem:[%s247 + $0xa0] sm:$0xff]
        %v304 = vld [vmem:[%s247 + $0xa8] sm:$0xff]
        %v305 = vld [vmem:[%s247 + $0xb0] sm:$0xff]
        %v306 = vld [vmem:[%s247 + $0xb8] sm:$0xff]
        %v307 = vld [vmem:[%s247 + $0xc0] sm:$0xff]
        %v308 = vld [vmem:[%s247 + $0xc8] sm:$0xff]
        %v309 = vld [vmem:[%s247 + $0xd0] sm:$0xff]
        %v310 = vld [vmem:[%s247 + $0xd8] sm:$0xff]
        %v311 = vld [vmem:[%s247 + $0xe0] sm:$0xff]
        %v312 = vld [vmem:[%s247 + $0xe8] sm:$0xff]
        %v313 = vld [vmem:[%s247 + $0xf0] sm:$0xff]
        %v314 = vld [vmem:[%s247 + $0xf8] sm:$0xff]
        %v315 = vld [vmem:[%s247 + $0x100] sm:$0xff]
        %v316 = vld [vmem:[%s247 + $0x108] sm:$0xff]
        %v317 = vld [vmem:[%s247 + $0x110] sm:$0xff]
        %v318 = vld [vmem:[%s247 + $0x118] sm:$0xff]
        %v319 = vld [vmem:[%s247 + $0x120] sm:$0xff]
        %v320 = vld [vmem:[%s247 + $0x128] sm:$0xff]
        %v321 = vld [vmem:[%s247 + $0x130] sm:$0xff]
        %v322 = vld [vmem:[%s247 + $0x138] sm:$0xff]
        %v323 = vld [vmem:[%s247 + $0x140] sm:$0xff]
        %v324 = vld [vmem:[%s247 + $0x148] sm:$0xff]
        %v325 = vld [vmem:[%s247 + $0x150] sm:$0xff]
        %v326 = vld [vmem:[%s247 + $0x158] sm:$0xff]
        %v327 = vld [vmem:[%s247 + $0x160] sm:$0xff]
        %v328 = vld [vmem:[%s247 + $0x168] sm:$0xff]
        %v329 = vld [vmem:[%s247 + $0x170] sm:$0xff]
        %v330 = vld [vmem:[%s247 + $0x178] sm:$0xff]
        %v331 = vld [vmem:[%s247 + $0x180] sm:$0xff]
        %v332 = vld [vmem:[%s247 + $0x188] sm:$0xff]
        %v333 = vld [vmem:[%s247 + $0x190] sm:$0xff]
        %v334 = vld [vmem:[%s247 + $0x198] sm:$0xff]
        %v335 = vld [vmem:[%s247 + $0x1a0] sm:$0xff]
        %v336 = vld [vmem:[%s247 + $0x1a8] sm:$0xff]
        %v337 = vld [vmem:[%s247 + $0x1b0] sm:$0xff]
        %v338 = vld [vmem:[%s247 + $0x1b8] sm:$0xff]
        %v339 = vld [vmem:[%s247 + $0x1c0] sm:$0xff]
        %v340 = vld [vmem:[%s247 + $0x1c8] sm:$0xff]
        %v341 = vld [vmem:[%s247 + $0x1d0] sm:$0xff]
        %v342 = vld [vmem:[%s247 + $0x1d8] sm:$0xff]
        %v343 = vld [vmem:[%s247 + $0x1e0] sm:$0xff]
        %v344 = vld [vmem:[%s247 + $0x1e8] sm:$0xff]
        %v345 = vld [vmem:[%s247 + $0x1f0] sm:$0xff]
        %v346 = vld [vmem:[%s247 + $0x1f8] sm:$0xff]
        %v353 = vunpack.c.l.b16 %v277
        %v354 = vunpack.c.h.b16 %v277
        %v355 = vunpack.c.l.b16 %v278
        %v356 = vunpack.c.h.b16 %v278
        %v357 = vunpack.c.l.b16 %v279
        %v358 = vunpack.c.h.b16 %v279
        %v359 = vunpack.c.l.b16 %v280
        %v360 = vunpack.c.h.b16 %v280
        %v361 = vunpack.c.l.b16 %v281
        %v362 = vunpack.c.h.b16 %v281
        %v363 = vunpack.c.l.b16 %v282
        %v364 = vunpack.c.h.b16 %v282
        %v365 = vpack.c.b16 %v357, %v353
        %v366 = vpack.c.b16 %v358, %v354
        %v367 = vpack.c.b16 %v359, %v355
        %v368 = vpack.c.b16 %v360, %v356
        %v369 = vpack.c.b16 %v361, %v361
        %v370 = vpack.c.b16 %v362, %v362
        %v371 = vpack.c.b16 %v363, %v363
        %v372 = vpack.c.b16 %v364, %v364
        %v445 = vunpack.c.l.b16 %v283
        %v446 = vunpack.c.h.b16 %v283
        %v447 = vunpack.c.l.b16 %v284
        %v448 = vunpack.c.h.b16 %v284
        %v449 = vunpack.c.l.b16 %v285
        %v450 = vunpack.c.h.b16 %v285
        %v451 = vunpack.c.l.b16 %v286
        %v452 = vunpack.c.h.b16 %v286
        %v453 = vunpack.c.l.b16 %v287
        %v454 = vunpack.c.h.b16 %v287
        %v455 = vunpack.c.l.b16 %v288
        %v456 = vunpack.c.h.b16 %v288
        %v457 = vunpack.c.l.b16 %v289
        %v458 = vunpack.c.h.b16 %v289
        %v459 = vunpack.c.l.b16 %v290
        %v460 = vunpack.c.h.b16 %v290
        %v461 = vunpack.c.l.b16 %v291
        %v462 = vunpack.c.h.b16 %v291
        %v463 = vunpack.c.l.b16 %v292
        %v464 = vunpack.c.h.b16 %v292
        %v465 = vunpack.c.l.b16 %v293
        %v466 = vunpack.c.h.b16 %v293
        %v467 = vunpack.c.l.b16 %v294
        %v468 = vunpack.c.h.b16 %v294
        %v469 = vunpack.c.l.b16 %v295
        %v470 = vunpack.c.h.b16 %v295
        %v471 = vunpack.c.l.b16 %v296
        %v472 = vunpack.c.h.b16 %v296
        %v473 = vunpack.c.l.b16 %v297
        %v474 = vunpack.c.h.b16 %v297
        %v475 = vunpack.c.l.b16 %v298
        %v476 = vunpack.c.h.b16 %v298
        %v477 = vunpack.c.l.b16 %v299
        %v478 = vunpack.c.h.b16 %v299
        %v479 = vunpack.c.l.b16 %v300
        %v480 = vunpack.c.h.b16 %v300
        %v481 = vunpack.c.l.b16 %v301
        %v482 = vunpack.c.h.b16 %v301
        %v483 = vunpack.c.l.b16 %v302
        %v484 = vunpack.c.h.b16 %v302
        %v485 = vunpack.c.l.b16 %v303
        %v486 = vunpack.c.h.b16 %v303
        %v487 = vunpack.c.l.b16 %v304
        %v488 = vunpack.c.h.b16 %v304
        %v489 = vunpack.c.l.b16 %v305
        %v490 = vunpack.c.h.b16 %v305
        %v491 = vunpack.c.l.b16 %v306
        %v492 = vunpack.c.h.b16 %v306
        %v493 = vunpack.c.l.b16 %v307
        %v494 = vunpack.c.h.b16 %v307
        %v495 = vunpack.c.l.b16 %v308
        %v496 = vunpack.c.h.b16 %v308
        %v497 = vunpack.c.l.b16 %v309
        %v498 = vunpack.c.h.b16 %v309
        %v499 = vunpack.c.l.b16 %v310
        %v500 = vunpack.c.h.b16 %v310
        %v501 = vunpack.c.l.b16 %v311
        %v502 = vunpack.c.h.b16 %v311
        %v503 = vunpack.c.l.b16 %v312
        %v504 = vunpack.c.h.b16 %v312
        %v505 = vunpack.c.l.b16 %v313
        %v506 = vunpack.c.h.b16 %v313
        %v507 = vunpack.c.l.b16 %v314
        %v508 = vunpack.c.h.b16 %v314
        %v509 = vunpack.c.l.b16 %v315
        %v510 = vunpack.c.h.b16 %v315
        %v511 = vunpack.c.l.b16 %v316
        %v512 = vunpack.c.h.b16 %v316
        %v513 = vunpack.c.l.b16 %v317
        %v514 = vunpack.c.h.b16 %v317
        %v515 = vunpack.c.l.b16 %v318
        %v516 = vunpack.c.h.b16 %v318
        %v517 = vunpack.c.l.b16 %v319
        %v518 = vunpack.c.h.b16 %v319
        %v519 = vunpack.c.l.b16 %v320
        %v520 = vunpack.c.h.b16 %v320
        %v521 = vunpack.c.l.b16 %v321
        %v522 = vunpack.c.h.b16 %v321
        %v523 = vunpack.c.l.b16 %v322
        %v524 = vunpack.c.h.b16 %v322
        %v525 = vunpack.c.l.b16 %v323
        %v526 = vunpack.c.h.b16 %v323
        %v527 = vunpack.c.l.b16 %v324
        %v528 = vunpack.c.h.b16 %v324
        %v529 = vunpack.c.l.b16 %v325
        %v530 = vunpack.c.h.b16 %v325
        %v531 = vunpack.c.l.b16 %v326
        %v532 = vunpack.c.h.b16 %v326
        %v533 = vunpack.c.l.b16 %v327
        %v534 = vunpack.c.h.b16 %v327
        %v535 = vunpack.c.l.b16 %v328
        %v536 = vunpack.c.h.b16 %v328
        %v537 = vunpack.c.l.b16 %v329
        %v538 = vunpack.c.h.b16 %v329
        %v539 = vunpack.c.l.b16 %v330
        %v540 = vunpack.c.h.b16 %v330
        %v541 = vunpack.c.l.b16 %v331
        %v542 = vunpack.c.h.b16 %v331
        %v543 = vunpack.c.l.b16 %v332
        %v544 = vunpack.c.h.b16 %v332
        %v545 = vunpack.c.l.b16 %v333
        %v546 = vunpack.c.h.b16 %v333
        %v547 = vunpack.c.l.b16 %v334
        %v548 = vunpack.c.h.b16 %v334
        %v549 = vunpack.c.l.b16 %v335
        %v550 = vunpack.c.h.b16 %v335
        %v551 = vunpack.c.l.b16 %v336
        %v552 = vunpack.c.h.b16 %v336
        %v553 = vunpack.c.l.b16 %v337
        %v554 = vunpack.c.h.b16 %v337
        %v555 = vunpack.c.l.b16 %v338
        %v556 = vunpack.c.h.b16 %v338
        %v557 = vunpack.c.l.b16 %v339
        %v558 = vunpack.c.h.b16 %v339
        %v559 = vunpack.c.l.b16 %v340
        %v560 = vunpack.c.h.b16 %v340
        %v561 = vunpack.c.l.b16 %v341
        %v562 = vunpack.c.h.b16 %v341
        %v563 = vunpack.c.l.b16 %v342
        %v564 = vunpack.c.h.b16 %v342
        %v565 = vunpack.c.l.b16 %v343
        %v566 = vunpack.c.h.b16 %v343
        %v567 = vunpack.c.l.b16 %v344
        %v568 = vunpack.c.h.b16 %v344
        %v569 = vunpack.c.l.b16 %v345
        %v570 = vunpack.c.h.b16 %v345
        %v571 = vunpack.c.l.b16 %v346
        %v572 = vunpack.c.h.b16 %v346
        %v573 = vpack.c.b16 %v447, %v445
        %v574 = vpack.c.b16 %v448, %v446
        %v575 = vpack.c.b16 %v451, %v449
        %v576 = vpack.c.b16 %v452, %v450
        %v577 = vpack.c.b16 %v455, %v453
        %v578 = vpack.c.b16 %v456, %v454
        %v579 = vpack.c.b16 %v459, %v457
        %v580 = vpack.c.b16 %v460, %v458
        %v581 = vpack.c.b16 %v463, %v461
        %v582 = vpack.c.b16 %v464, %v462
        %v583 = vpack.c.b16 %v467, %v465
        %v584 = vpack.c.b16 %v468, %v466
        %v585 = vpack.c.b16 %v471, %v469
        %v586 = vpack.c.b16 %v472, %v470
        %v587 = vpack.c.b16 %v475, %v473
        %v588 = vpack.c.b16 %v476, %v474
        %v589 = vpack.c.b16 %v479, %v477
        %v590 = vpack.c.b16 %v480, %v478
        %v591 = vpack.c.b16 %v483, %v481
        %v592 = vpack.c.b16 %v484, %v482
        %v593 = vpack.c.b16 %v487, %v485
        %v594 = vpack.c.b16 %v488, %v486
        %v595 = vpack.c.b16 %v491, %v489
        %v596 = vpack.c.b16 %v492, %v490
        %v597 = vpack.c.b16 %v495, %v493
        %v598 = vpack.c.b16 %v496, %v494
        %v599 = vpack.c.b16 %v499, %v497
        %v600 = vpack.c.b16 %v500, %v498
        %v601 = vpack.c.b16 %v503, %v501
        %v602 = vpack.c.b16 %v504, %v502
        %v603 = vpack.c.b16 %v507, %v505
        %v604 = vpack.c.b16 %v508, %v506
        %v605 = vpack.c.b16 %v511, %v509
        %v606 = vpack.c.b16 %v512, %v510
        %v607 = vpack.c.b16 %v515, %v513
        %v608 = vpack.c.b16 %v516, %v514
        %v609 = vpack.c.b16 %v519, %v517
        %v610 = vpack.c.b16 %v520, %v518
        %v611 = vpack.c.b16 %v523, %v521
        %v612 = vpack.c.b16 %v524, %v522
        %v613 = vpack.c.b16 %v527, %v525
        %v614 = vpack.c.b16 %v528, %v526
        %v615 = vpack.c.b16 %v531, %v529
        %v616 = vpack.c.b16 %v532, %v530
        %v617 = vpack.c.b16 %v535, %v533
        %v618 = vpack.c.b16 %v536, %v534
        %v619 = vpack.c.b16 %v539, %v537
        %v620 = vpack.c.b16 %v540, %v538
        %v621 = vpack.c.b16 %v543, %v541
        %v622 = vpack.c.b16 %v544, %v542
        %v623 = vpack.c.b16 %v547, %v545
        %v624 = vpack.c.b16 %v548, %v546
        %v625 = vpack.c.b16 %v551, %v549
        %v626 = vpack.c.b16 %v552, %v550
        %v627 = vpack.c.b16 %v555, %v553
        %v628 = vpack.c.b16 %v556, %v554
        %v629 = vpack.c.b16 %v559, %v557
        %v630 = vpack.c.b16 %v560, %v558
        %v631 = vpack.c.b16 %v563, %v561
        %v632 = vpack.c.b16 %v564, %v562
        %v633 = vpack.c.b16 %v567, %v565
        %v634 = vpack.c.b16 %v568, %v566
        %v635 = vpack.c.b16 %v571, %v569
        %v636 = vpack.c.b16 %v572, %v570
        %701 = vmatprep.subr.bf16.mxu0 %v574
        %702 = vmatpush1.bf16.msra.mxu0 %v573
        %703 = vmatprep.subr.bf16.mxu0 %v576
        %704 = vmatpush1.bf16.msra.mxu0 %v575
        %705 = vmatprep.subr.bf16.mxu0 %v578
        %706 = vmatpush1.bf16.msra.mxu0 %v577
        %707 = vmatprep.subr.bf16.mxu0 %v580
        %708 = vmatpush1.bf16.msra.mxu0 %v579
        %709 = vmatprep.subr.bf16.mxu0 %v582
        %710 = vmatpush1.bf16.msra.mxu0 %v581
        %711 = vmatprep.subr.bf16.mxu0 %v584
        %712 = vmatpush1.bf16.msra.mxu0 %v583
        %713 = vmatprep.subr.bf16.mxu0 %v586
        %714 = vmatpush1.bf16.msra.mxu0 %v585
        %715 = vmatprep.subr.bf16.mxu0 %v588
        %716 = vmatpush1.bf16.msra.mxu0 %v587
        %717 = vmatprep.subr.bf16.mxu0 %v590
        %718 = vmatpush1.bf16.msra.mxu0 %v589
        %719 = vmatprep.subr.bf16.mxu0 %v592
        %720 = vmatpush1.bf16.msra.mxu0 %v591
        %721 = vmatprep.subr.bf16.mxu0 %v594
        %722 = vmatpush1.bf16.msra.mxu0 %v593
        %723 = vmatprep.subr.bf16.mxu0 %v596
        %724 = vmatpush1.bf16.msra.mxu0 %v595
        %725 = vmatprep.subr.bf16.mxu0 %v598
        %726 = vmatpush1.bf16.msra.mxu0 %v597
        %727 = vmatprep.subr.bf16.mxu0 %v600
        %728 = vmatpush1.bf16.msra.mxu0 %v599
        %729 = vmatprep.subr.bf16.mxu0 %v602
        %730 = vmatpush1.bf16.msra.mxu0 %v601
        %731 = vmatprep.subr.bf16.mxu0 %v604
        %732 = vmatpush1.bf16.msra.mxu0 %v603
        %733 = vmatprep.mubr.bf16.mxu0 %v366
        %734 = vmatmul.mubr.bf16.gmra.mrb[0].mxu0 %v365
        %v735 = vpop.f32.mrb[0].mxu0
        %v736 = vadd.f32 0.0, %v735
        %v737 = vpop.f32.mrb[0].mxu0
        %v738 = vadd.f32 0.0, %v737
        %v739 = vpop.f32.mrb[0].mxu0
        %v740 = vadd.f32 0.0, %v739
        %v741 = vpop.f32.mrb[0].mxu0
        %v742 = vadd.f32 0.0, %v741
        %743 = vmatprep.mubr.bf16.mxu0 %v370
        %744 = vmatmul.mubr.bf16.gmra.mrb[0].mxu0 %v369
        %v745 = vpop.f32.mrb[0].mxu0
        %v746 = vadd.f32 0.0, %v745
        %v747 = vpop.f32.mrb[0].mxu0
        %v748 = vadd.f32 0.0, %v747
        %v749 = vpop.f32.mrb[0].mxu0
        %v750 = vpop.f32.mrb[0].mxu0
        %751 = vdwg.mxu0
        %752 = vmatprep.subr.bf16.mxu0 %v606
        %753 = vmatpush1.bf16.msra.mxu0 %v605
        %754 = vmatprep.subr.bf16.mxu0 %v608
        %755 = vmatpush1.bf16.msra.mxu0 %v607
        %756 = vmatprep.subr.bf16.mxu0 %v610
        %757 = vmatpush1.bf16.msra.mxu0 %v609
        %758 = vmatprep.subr.bf16.mxu0 %v612
        %759 = vmatpush1.bf16.msra.mxu0 %v611
        %760 = vmatprep.subr.bf16.mxu0 %v614
        %761 = vmatpush1.bf16.msra.mxu0 %v613
        %762 = vmatprep.subr.bf16.mxu0 %v616
        %763 = vmatpush1.bf16.msra.mxu0 %v615
        %764 = vmatprep.subr.bf16.mxu0 %v618
        %765 = vmatpush1.bf16.msra.mxu0 %v617
        %766 = vmatprep.subr.bf16.mxu0 %v620
        %767 = vmatpush1.bf16.msra.mxu0 %v619
        %768 = vmatprep.subr.bf16.mxu0 %v622
        %769 = vmatpush1.bf16.msra.mxu0 %v621
        %770 = vmatprep.subr.bf16.mxu0 %v624
        %771 = vmatpush1.bf16.msra.mxu0 %v623
        %772 = vmatprep.subr.bf16.mxu0 %v626
        %773 = vmatpush1.bf16.msra.mxu0 %v625
        %774 = vmatprep.subr.bf16.mxu0 %v628
        %775 = vmatpush1.bf16.msra.mxu0 %v627
        %776 = vmatprep.subr.bf16.mxu0 %v630
        %777 = vmatpush1.bf16.msra.mxu0 %v629
        %778 = vmatprep.subr.bf16.mxu0 %v632
        %779 = vmatpush1.bf16.msra.mxu0 %v631
        %780 = vmatprep.subr.bf16.mxu0 %v634
        %781 = vmatpush1.bf16.msra.mxu0 %v633
        %782 = vmatprep.subr.bf16.mxu0 %v636
        %783 = vmatpush1.bf16.msra.mxu0 %v635
        %784 = vmatprep.mubr.bf16.mxu0 %v368
        %785 = vmatmul.mubr.bf16.gmra.mrb[0].mxu0 %v367
        %v786 = vpop.f32.mrb[0].mxu0
        %v787 = vadd.f32 %v736, %v786
        %v788 = vpop.f32.mrb[0].mxu0
        %v789 = vadd.f32 %v738, %v788
        %v790 = vpop.f32.mrb[0].mxu0
        %v791 = vadd.f32 %v740, %v790
        %v792 = vpop.f32.mrb[0].mxu0
        %v793 = vadd.f32 %v742, %v792
        %794 = vmatprep.mubr.bf16.mxu0 %v372
        %795 = vmatmul.mubr.bf16.gmra.mrb[0].mxu0 %v371
        %v796 = vpop.f32.mrb[0].mxu0
        %v797 = vadd.f32 %v746, %v796
        %v798 = vpop.f32.mrb[0].mxu0
        %v799 = vadd.f32 %v748, %v798
        %v800 = vpop.f32.mrb[0].mxu0
        %v801 = vpop.f32.mrb[0].mxu0
        %802 = vdwg.mxu0
        %v803 = vadd.f32 %v271, %v787
        %v804 = vadd.f32 %v272, %v789
        %v805 = vadd.f32 %v273, %v791
        %v806 = vadd.f32 %v274, %v793
        %v807 = vadd.f32 %v275, %v797
        %v808 = vadd.f32 %v276, %v799
        %809 = vst [vmem:[#allocation2] sm:$0xff] %v803
        %810 = vst [vmem:[#allocation2 + $0x8] sm:$0xff] %v804
        %811 = vst [vmem:[#allocation2 + $0x10] sm:$0xff] %v805
        %812 = vst [vmem:[#allocation2 + $0x18] sm:$0xff] %v806
        %813 = vst [vmem:[#allocation2 + $0x20] sm:$0xff] %v807
        %814 = vst [vmem:[#allocation2 + $0x28] sm:$0xff] %v808
        %p815 = scmp.eq.s32.totalorder %s20, 3
        // Predicated region
        $region56: #{patchgan_forward.13} parent=46 // pred_check
          %p816 = pneg %p815
        $region57: #{patchgan_forward.13} parent=46 // pred_check_branch
          %818 = sbr.rel (%p816) target = $region59
        $region58: #{patchgan_forward.13} parent=46 // pred_region
          %v819 = vld [vmem:[#allocation2] sm:$0xff]
          %v820 = vld [vmem:[#allocation2 + $0x8] sm:$0xff]
          %v821 = vld [vmem:[#allocation2 + $0x10] sm:$0xff]
          %v822 = vld [vmem:[#allocation2 + $0x18] sm:$0xff]
          %v823 = vld [vmem:[#allocation2 + $0x20] sm:$0xff]
          %v824 = vld [vmem:[#allocation2 + $0x28] sm:$0xff]
          %v825 = vadd.f32 %v819, %v821
          %v826 = vadd.f32 %v825, %v823
          %v827 = vrot.slane %v826, 4
          %v828 = vadd.f32 %v826, %v827
          %v829 = vrot.slane %v828, 2
          %v830 = vadd.f32 %v828, %v829
          %v831 = vrot.slane %v830, 1
          %v832 = vadd.f32 %v830, %v831
          %v833 = vadd.f32 %v820, %v822
          %v834 = vadd.f32 %v833, %v824
          %v835 = vrot.slane %v834, 4
          %v836 = vadd.f32 %v834, %v835
          %v837 = vrot.slane %v836, 2
          %v838 = vadd.f32 %v836, %v837
          %v839 = vrot.slane %v838, 1
          %v840 = vadd.f32 %v838, %v839
          %v841 = vmul.f32 %v819, %v819
          %v842 = vmul.f32 %v820, %v820
          %v843 = vmul.f32 %v821, %v821
          %v844 = vmul.f32 %v822, %v822
          %v845 = vmul.f32 %v823, %v823
          %v846 = vmul.f32 %v824, %v824
          %v847 = vadd.f32 %v841, %v843
          %v848 = vadd.f32 %v847, %v845
          %v849 = vrot.slane %v848, 4
          %v850 = vadd.f32 %v848, %v849
          %v851 = vrot.slane %v850, 2
          %v852 = vadd.f32 %v850, %v851
          %v853 = vrot.slane %v852, 1
          %v854 = vadd.f32 %v852, %v853
          %v855 = vadd.f32 %v842, %v844
          %v856 = vadd.f32 %v855, %v846
          %v857 = vrot.slane %v856, 4
          %v858 = vadd.f32 %v856, %v857
          %v859 = vrot.slane %v858, 2
          %v860 = vadd.f32 %v858, %v859
          %v861 = vrot.slane %v860, 1
          %v862 = vadd.f32 %v860, %v861
          %v863 = vlaneseq
          %v864 = vshrl.u32 %v863, 7
          %vm865 = vcmp.eq.s32.totalorder %v864, 0
          %vm866 = vcmp.eq.s32.totalorder %v864, 1
          %v867 = vsel %vm866, %v854, 0.0
          %v868 = vsel %vm866, %v862, 0.0
          %v869 = vsel %vm865, %v832, %v867
          %v870 = vsel %vm865, %v840, %v868
          %871 = vst [vmem:[%s260] sm:$0xff] %v869
          %872 = vst [vmem:[%s260 + $0x8] sm:$0xff] %v870
          %873 = vst [vmem:[%s254] sm:$0xff] %v819
          %874 = vst [vmem:[%s254 + $0x8] sm:$0xff] %v820
          %875 = vst [vmem:[%s254 + $0x10] sm:$0xff] %v821
          %876 = vst [vmem:[%s254 + $0x18] sm:$0xff] %v822
          %877 = vst [vmem:[%s254 + $0x20] sm:$0xff] %v823
          %878 = vst [vmem:[%s254 + $0x28] sm:$0xff] %v824
        $region59: #{patchgan_forward.13} parent=46 // pred_fallthru
          _
        %s879 = smul.u32 3, %s19
        %p880 = scmp.lt.s32.totalorder %s879, 2
        %s881 = scalar_select %p880, %s879, 2
        %s882 = smul.addr %s881, 2
        %s883 = smul.addr %s882, 8
        %s884 = scalar_lea.vmem %s2, %s883
        %p885 = scmp.lt.s32.totalorder %s19, 0
        %s886 = scalar_select %p885, %s19, 0
        %s887 = smul.addr %s886, 2
        %s888 = smul.addr %s887, 8
        %s889 = scalar_lea.vmem %s3, %s888
        // Predicated region
        $region60: #{patchgan_forward.13} parent=46 // pred_check
          %p890 = pneg %p99
        $region61: #{patchgan_forward.13} parent=46 // pred_check_branch
          %892 = sbr.rel (%p890) target = $region63
        $region62: #{patchgan_forward.13} parent=46 // pred_region
          %s893 = smul.u32 3, %s19
        $region63: #{patchgan_forward.13} parent=46 // pred_fallthru
          _
        // Predicated region
        $region64: #{patchgan_forward.13} parent=46 // pred_check
          %p894 = pneg %p125
        $region65: #{patchgan_forward.13} parent=46 // pred_check_branch
          %896 = sbr.rel (%p894) target = $region67
        $region66: #{patchgan_forward.13} parent=46 // pred_region
          _
        $region67: #{patchgan_forward.13} parent=46 // pred_fallthru
          _
        // Predicated region
        $region68: #{patchgan_forward.13} parent=46 // pred_check
          %p897 = pneg %p99
        $region69: #{patchgan_forward.13} parent=46 // pred_check_branch
          %899 = sbr.rel (%p897) target = $region71
        $region70: #{patchgan_forward.13} parent=46 // pred_region
          %s900 = smul.u32 3, %s19
          %p901 = scmp.lt.s32.totalorder %s900, 2
          %s902 = scalar_select %p901, %s900, 2
          %s903 = smul.addr %s902, 2
          %s904 = smul.addr %s903, 8
          %s905 = scalar_lea.vmem %s2, %s904
        $region71: #{patchgan_forward.13} parent=46 // pred_fallthru
          _
        // Predicated region
        $region72: #{patchgan_forward.13} parent=46 // pred_check
          %p906 = pneg %p125
        $region73: #{patchgan_forward.13} parent=46 // pred_check_branch
          %908 = sbr.rel (%p906) target = $region75
        $region74: #{patchgan_forward.13} parent=46 // pred_region
          %p909 = scmp.lt.s32.totalorder %s19, 0
          %s910 = scalar_select %p909, %s19, 0
          %s911 = smul.addr %s910, 2
          %s912 = smul.addr %s911, 8
          %s913 = scalar_lea.vmem %s3, %s912
        $region75: #{patchgan_forward.13} parent=46 // pred_fallthru
          _
      $region47: #{patchgan_forward.13} parent=5 // pred_fallthru
        _
      %p914 = scmp.le.s32.totalorder 2, %s10
      // Predicated region
      $region76: #{patchgan_forward.13} parent=5 // pred_check
        %p915 = pneg %p914
      $region77: #{patchgan_forward.13} parent=5 // pred_check_branch
        %917 = sbr.rel (%p915) target = $region79
      $region78: #{patchgan_forward.13} parent=5 // pred_region
        %s918 = ssub.s32 %s10, 2
      $region79: #{patchgan_forward.13} parent=5 // pred_fallthru
        _
    $region6: #{patchgan_forward.13} parent=1 // loop_footer
      %s14 = sadd.s32 1, %s10
    $region7: #{patchgan_forward.13} parent=1 // loop_footer_branch
      %9 = sbr.rel target = $region3
    $region8: #{patchgan_forward.13} parent=1 // loop_exit
      _

// kernel: patchgan_forward.15
$region0: #{patchgan_forward.15}
  #allocation0 [shape = 'u32[]', space=smem, size = 0x4, offset = 0x4, fixed_abs, tag = 'smem constant byte address 0x4 - core index']
  #allocation1 [shape = 'u32[144,128]{1,0:T(1,128)}', space=vmem, size = 0x12000, scoped, tag = 'internal scratch']
  #allocation2 [shape = 'f32[8,128]{1,0:T(8,128)}', space=vmem, size = 0x1000, scoped, tag = 'scratch operand']
  %s0 = inlined_call_operand.vmem [shape: bf16[8,4096], index: 0, kind: input, shape index: {}]
  %s1 = inlined_call_operand.vmem [shape: bf16[4096,128], index: 1, kind: input, shape index: {}]
  %s2 = inlined_call_operand.vmem [shape: f32[1,128], index: 2, kind: input, shape index: {}]
  %s3 = inlined_call_operand.vmem [shape: f32[8,128], index: 3, kind: output, shape index: {}]
  %s4 = sld [smem:[#allocation0]]
  $region53: #{patchgan_forward.15} parent=0
    _
  %s6 = ssub.s32 1, %s4
  %s7 = scalar_select 0, %s6, %s4
  loop: start=0, step=1, limit=10
  $region2: #{patchgan_forward.15} parent=0 // loop_pre_header
    _
  $region3: #{patchgan_forward.15} parent=0 // loop_header
    %s9 = sphi 0, %s13
    %p10 = scmp.ge.s32.totalorder %s9, 10
    %s16 = sphi 0, %s28
    %s17 = sphi 0, %s24
    %s18 = sphi 0, %s16
    %s19 = sphi 0, %s17
    %s20 = sphi 0, %s18
    %s21 = sphi 0, %s19
    %s33 = sphi 0, %s35
    %s36 = sphi 0, %s33
    %s37 = sphi 0, %s36
    %s53 = sphi 0, %s37
    %s59 = sphi 0, %s61
    %s62 = sphi 0, %s59
    %s63 = sphi 0, %s62
    %s79 = sphi 0, %s63
    %s83 = sphi 0, %s83
    %s85 = sphi 0, %s83
    %s86 = sphi 0, %s85
    %s100 = sphi 0, %s86
    %s106 = sphi 0, %s108
    %s109 = sphi 0, %s106
    %s110 = sphi 0, %s109
    %s126 = sphi 0, %s110
  $region4: #{patchgan_forward.15} parent=0 // loop_header_branch
    %12 = sbr.rel (%p10) target = $region8
  $region5: #{patchgan_forward.15} parent=0 // loop_body
    %s14 = ssub.s32 %s9, 1
    %s15 = ssub.s32 %s9, 2
    %s22 = sadd.s32 1, %s17
    %p23 = scmp.ge.s32.totalorder %s22, 8
    %s24 = scalar_select %p23, 0, %s22
    %s25 = sadd.s32 1, %s16
    %s26 = scalar_select %p23, %s25, %s16
    %p27 = scmp.ge.s32.totalorder %s26, 1
    %s28 = scalar_select %p27, 0, %s26
    %s29 = ssub.s32 %s16, %s28
    %s30 = ssub.s32 %s17, %s24
    %s31 = sor.u32 %s29, %s30
    %p32 = scmp.eq.s32.totalorder %s31, 0
    %s34 = sadd.s32 %s33, 1
    %s35 = scalar_select %p32, %s33, %s34
    %p38 = pneg %p32
    %p39 = scmp.eq.s32.totalorder %s9, 7
    %p40 = por %p38, %p39
    %p41 = scmp.ne.s32.totalorder %s33, %s36
    %p42 = scmp.eq.s32.totalorder %s9, 0
    %p43 = por %p41, %p42
    %p44 = scmp.ne.s32.totalorder %s33, %s36
    %p45 = scmp.eq.s32.totalorder %s14, 7
    %p46 = por %p44, %p45
    %p47 = scmp.ne.s32.totalorder %s36, %s37
    %p48 = scmp.eq.s32.totalorder %s14, 0
    %p49 = por %p47, %p48
    %p50 = scmp.ne.s32.totalorder %s36, %s37
    %p51 = scmp.eq.s32.totalorder %s15, 7
    %p52 = por %p50, %p51
    %p54 = scmp.ne.s32.totalorder %s37, %s53
    %p55 = scmp.eq.s32.totalorder %s15, 0
    %p56 = por %p54, %p55
    %s57 = ssub.s32 %s17, %s24
    %p58 = scmp.eq.s32.totalorder %s57, 0
    %s60 = sadd.s32 %s59, 1
    %s61 = scalar_select %p58, %s59, %s60
    %p64 = pneg %p58
    %p65 = scmp.eq.s32.totalorder %s9, 7
    %p66 = por %p64, %p65
    %p67 = scmp.ne.s32.totalorder %s59, %s62
    %p68 = scmp.eq.s32.totalorder %s9, 0
    %p69 = por %p67, %p68
    %p70 = scmp.ne.s32.totalorder %s59, %s62
    %p71 = scmp.eq.s32.totalorder %s14, 7
    %p72 = por %p70, %p71
    %p73 = scmp.ne.s32.totalorder %s62, %s63
    %p74 = scmp.eq.s32.totalorder %s14, 0
    %p75 = por %p73, %p74
    %p76 = scmp.ne.s32.totalorder %s62, %s63
    %p77 = scmp.eq.s32.totalorder %s15, 7
    %p78 = por %p76, %p77
    %p80 = scmp.ne.s32.totalorder %s63, %s79
    %p81 = scmp.eq.s32.totalorder %s15, 0
    %p82 = por %p80, %p81
    %s84 = sadd.s32 %s83, 1
    %p87 = scmp.eq.s32.totalorder %s9, 7
    %p88 = scmp.ne.s32.totalorder %s83, %s85
    %p89 = scmp.eq.s32.totalorder %s9, 0
    %p90 = por %p88, %p89
    %p91 = scmp.ne.s32.totalorder %s83, %s85
    %p92 = scmp.eq.s32.totalorder %s14, 7
    %p93 = por %p91, %p92
    %p94 = scmp.ne.s32.totalorder %s85, %s86
    %p95 = scmp.eq.s32.totalorder %s14, 0
    %p96 = por %p94, %p95
    %p97 = scmp.ne.s32.totalorder %s85, %s86
    %p98 = scmp.eq.s32.totalorder %s15, 7
    %p99 = por %p97, %p98
    %p101 = scmp.ne.s32.totalorder %s86, %s100
    %p102 = scmp.eq.s32.totalorder %s15, 0
    %p103 = por %p101, %p102
    %s104 = ssub.s32 %s16, %s28
    %p105 = scmp.eq.s32.totalorder %s104, 0
    %s107 = sadd.s32 %s106, 1
    %s108 = scalar_select %p105, %s106, %s107
    %p111 = pneg %p105
    %p112 = scmp.eq.s32.totalorder %s9, 7
    %p113 = por %p111, %p112
    %p114 = scmp.ne.s32.totalorder %s106, %s109
    %p115 = scmp.eq.s32.totalorder %s9, 0
    %p116 = por %p114, %p115
    %p117 = scmp.ne.s32.totalorder %s106, %s109
    %p118 = scmp.eq.s32.totalorder %s14, 7
    %p119 = por %p117, %p118
    %p120 = scmp.ne.s32.totalorder %s109, %s110
    %p121 = scmp.eq.s32.totalorder %s14, 0
    %p122 = por %p120, %p121
    %p123 = scmp.ne.s32.totalorder %s109, %s110
    %p124 = scmp.eq.s32.totalorder %s15, 7
    %p125 = por %p123, %p124
    %p127 = scmp.ne.s32.totalorder %s110, %s126
    %p128 = scmp.eq.s32.totalorder %s15, 0
    %p129 = por %p127, %p128
    %p130 = scmp.le.s32.totalorder 1, %s9
    %p131 = scmp.lt.s32.totalorder %s9, 9
    %p132 = pnand %p130, %p131
    %p133 = pneg %p132
    // Predicated region
    $region9: #{patchgan_forward.15} parent=5 // pred_check
      _
    $region10: #{patchgan_forward.15} parent=5 // pred_check_branch
      %135 = sbr.rel (%p132) target = $region12
    $region11: #{patchgan_forward.15} parent=5 // pred_region
      %s136 = ssub.s32 %s9, 1
      // Predicated region
      $region13: #{patchgan_forward.15} parent=11 // pred_check
        %p137 = pneg %p96
      $region14: #{patchgan_forward.15} parent=11 // pred_check_branch
        %139 = sbr.rel (%p137) target = $region16
      $region15: #{patchgan_forward.15} parent=11 // pred_region
        _
      $region16: #{patchgan_forward.15} parent=11 // pred_fallthru
        _
    $region12: #{patchgan_forward.15} parent=5 // pred_fallthru
      _
    %p140 = scmp.lt.s32.totalorder %s9, 8
    // Predicated region
    $region17: #{patchgan_forward.15} parent=5 // pred_check
      %p141 = pneg %p140
    $region18: #{patchgan_forward.15} parent=5 // pred_check_branch
      %143 = sbr.rel (%p141) target = $region20
    $region19: #{patchgan_forward.15} parent=5 // pred_region
      // Predicated region
      $region21: #{patchgan_forward.15} parent=19 // pred_check
        %p144 = pneg %p43
      $region22: #{patchgan_forward.15} parent=19 // pred_check_branch
        %146 = sbr.rel (%p144) target = $region24
      $region23: #{patchgan_forward.15} parent=19 // pred_region
        %s147 = smul.u32 4, %s17
        %p148 = scmp.lt.s32.totalorder %s16, 0
        %s149 = scalar_select %p148, %s16, 0
        %p150 = scmp.lt.s32.totalorder %s147, 31
        %s151 = scalar_select %p150, %s147, 31
        %s152 = smul.addr %s149, 32
        %s153 = sadd.s32 %s151, %s152
        %s154 = smul.addr %s153, 4
        %s155 = scalar_lea.vmem %s0, %s154
        %s156 = smul.u32 4, %s17
      $region24: #{patchgan_forward.15} parent=19 // pred_fallthru
        _
      // Predicated region
      $region25: #{patchgan_forward.15} parent=19 // pred_check
        %p157 = pneg %p69
      $region26: #{patchgan_forward.15} parent=19 // pred_check_branch
        %159 = sbr.rel (%p157) target = $region28
      $region27: #{patchgan_forward.15} parent=19 // pred_region
        %s160 = smul.u32 64, %s17
        %p161 = scmp.lt.s32.totalorder %s160, 511
        %s162 = scalar_select %p161, %s160, 511
        %s163 = smul.addr %s162, 4
        %s164 = scalar_lea.vmem %s1, %s163
        %s165 = smul.u32 64, %s17
      $region28: #{patchgan_forward.15} parent=19 // pred_fallthru
        _
    $region20: #{patchgan_forward.15} parent=5 // pred_fallthru
      _
    %p166 = scmp.le.s32.totalorder 1, %s9
    %p167 = scmp.lt.s32.totalorder %s9, 9
    %p168 = pnand %p166, %p167
    %p169 = pneg %p168
    // Predicated region
    $region29: #{patchgan_forward.15} parent=5 // pred_check
      _
    $region30: #{patchgan_forward.15} parent=5 // pred_check_branch
      %171 = sbr.rel (%p168) target = $region32
    $region31: #{patchgan_forward.15} parent=5 // pred_region
      %s172 = ssub.s32 %s9, 1
      %s173 = smul.u32 4, %s19
      %p174 = scmp.lt.s32.totalorder %s18, 0
      %s175 = scalar_select %p174, %s18, 0
      %p176 = scmp.lt.s32.totalorder %s173, 31
      %s177 = scalar_select %p176, %s173, 31
      %s178 = smul.addr %s175, 32
      %s179 = sadd.s32 %s177, %s178
      %s180 = smul.addr %s179, 4
      %s181 = scalar_lea.vmem %s0, %s180
      %p182 = pneg %p49
      %p183 = pneg %p46
      %s184 = smul.u32 64, %s19
      %p185 = scmp.lt.s32.totalorder %s184, 511
      %s186 = scalar_select %p185, %s184, 511
      %s187 = smul.addr %s186, 4
      %s188 = scalar_lea.vmem %s1, %s187
      %p189 = pneg %p75
      %p190 = pneg %p72
      %p191 = pneg %p96
      %p192 = pneg %p93
      %p193 = pneg %p122
      %p194 = pneg %p119
      %p195 = scmp.lt.s32.totalorder %s18, 0
      %s196 = scalar_select %p195, %s18, 0
      %s197 = smul.addr %s196, 8
      %s198 = scalar_lea.vmem %s3, %s197
      %s199 = smul.u32 4, %s19
      %p200 = scmp.lt.s32.totalorder %s18, 0
      %s201 = scalar_select %p200, %s18, 0
      %p202 = scmp.lt.s32.totalorder %s199, 31
      %s203 = scalar_select %p202, %s199, 31
      %s204 = smul.addr %s201, 32
      %s205 = sadd.s32 %s203, %s204
      %s206 = smul.addr %s205, 4
      %s207 = scalar_lea.vmem %s0, %s206
      %s208 = smul.u32 4, %s19
      %s209 = smul.u32 64, %s19
      %p210 = scmp.lt.s32.totalorder %s209, 511
      %s211 = scalar_select %p210, %s209, 511
      %s212 = smul.addr %s211, 4
      %s213 = scalar_lea.vmem %s1, %s212
      %s214 = smul.u32 64, %s19
      %p215 = scmp.lt.s32.totalorder %s18, 0
      %s216 = scalar_select %p215, %s18, 0
      %s217 = smul.addr %s216, 8
      %s218 = scalar_lea.vmem %s3, %s217
      %p220 = scmp.eq.s32.totalorder %s19, 0
      // Predicated region
      $region33: #{patchgan_forward.15} parent=31 // pred_check
        %p221 = pneg %p220
      $region34: #{patchgan_forward.15} parent=31 // pred_check_branch
        %223 = sbr.rel (%p221) target = $region36
      $region35: #{patchgan_forward.15} parent=31 // pred_region
        %224 = vst [vmem:[#allocation2] sm:$0xff] 0.0
      $region36: #{patchgan_forward.15} parent=31 // pred_fallthru
        _
      %v225 = vld [vmem:[#allocation2] sm:$0xff]
      %v226 = vld [vmem:[%s207] sm:$0xff]
      %v227 = vld [vmem:[%s207 + $0x8] sm:$0xff]
      %v228 = vld [vmem:[%s213] sm:$0xf]
      %v229 = vld [vmem:[%s213 + $0x4] sm:$0xf]
      %v230 = vld [vmem:[%s213 + $0x8] sm:$0xf]
      %v231 = vld [vmem:[%s213 + $0xc] sm:$0xf]
      %v232 = vld [vmem:[%s213 + $0x10] sm:$0xf]
      %v233 = vld [vmem:[%s213 + $0x14] sm:$0xf]
      %v234 = vld [vmem:[%s213 + $0x18] sm:$0xf]
      %v235 = vld [vmem:[%s213 + $0x1c] sm:$0xf]
      %v236 = vld [vmem:[%s213 + $0x20] sm:$0xf]
      %v237 = vld [vmem:[%s213 + $0x24] sm:$0xf]
      %v238 = vld [vmem:[%s213 + $0x28] sm:$0xf]
      %v239 = vld [vmem:[%s213 + $0x2c] sm:$0xf]
      %v240 = vld [vmem:[%s213 + $0x30] sm:$0xf]
      %v241 = vld [vmem:[%s213 + $0x34] sm:$0xf]
      %v242 = vld [vmem:[%s213 + $0x38] sm:$0xf]
      %v243 = vld [vmem:[%s213 + $0x3c] sm:$0xf]
      %v244 = vld [vmem:[%s213 + $0x40] sm:$0xf]
      %v245 = vld [vmem:[%s213 + $0x44] sm:$0xf]
      %v246 = vld [vmem:[%s213 + $0x48] sm:$0xf]
      %v247 = vld [vmem:[%s213 + $0x4c] sm:$0xf]
      %v248 = vld [vmem:[%s213 + $0x50] sm:$0xf]
      %v249 = vld [vmem:[%s213 + $0x54] sm:$0xf]
      %v250 = vld [vmem:[%s213 + $0x58] sm:$0xf]
      %v251 = vld [vmem:[%s213 + $0x5c] sm:$0xf]
      %v252 = vld [vmem:[%s213 + $0x60] sm:$0xf]
      %v253 = vld [vmem:[%s213 + $0x64] sm:$0xf]
      %v254 = vld [vmem:[%s213 + $0x68] sm:$0xf]
      %v255 = vld [vmem:[%s213 + $0x6c] sm:$0xf]
      %v256 = vld [vmem:[%s213 + $0x70] sm:$0xf]
      %v257 = vld [vmem:[%s213 + $0x74] sm:$0xf]
      %v258 = vld [vmem:[%s213 + $0x78] sm:$0xf]
      %v259 = vld [vmem:[%s213 + $0x7c] sm:$0xf]
      %v260 = vld [vmem:[%s213 + $0x80] sm:$0xf]
      %v261 = vld [vmem:[%s213 + $0x84] sm:$0xf]
      %v262 = vld [vmem:[%s213 + $0x88] sm:$0xf]
      %v263 = vld [vmem:[%s213 + $0x8c] sm:$0xf]
      %v264 = vld [vmem:[%s213 + $0x90] sm:$0xf]
      %v265 = vld [vmem:[%s213 + $0x94] sm:$0xf]
      %v266 = vld [vmem:[%s213 + $0x98] sm:$0xf]
      %v267 = vld [vmem:[%s213 + $0x9c] sm:$0xf]
      %v268 = vld [vmem:[%s213 + $0xa0] sm:$0xf]
      %v269 = vld [vmem:[%s213 + $0xa4] sm:$0xf]
      %v270 = vld [vmem:[%s213 + $0xa8] sm:$0xf]
      %v271 = vld [vmem:[%s213 + $0xac] sm:$0xf]
      %v272 = vld [vmem:[%s213 + $0xb0] sm:$0xf]
      %v273 = vld [vmem:[%s213 + $0xb4] sm:$0xf]
      %v274 = vld [vmem:[%s213 + $0xb8] sm:$0xf]
      %v275 = vld [vmem:[%s213 + $0xbc] sm:$0xf]
      %v276 = vld [vmem:[%s213 + $0xc0] sm:$0xf]
      %v277 = vld [vmem:[%s213 + $0xc4] sm:$0xf]
      %v278 = vld [vmem:[%s213 + $0xc8] sm:$0xf]
      %v279 = vld [vmem:[%s213 + $0xcc] sm:$0xf]
      %v280 = vld [vmem:[%s213 + $0xd0] sm:$0xf]
      %v281 = vld [vmem:[%s213 + $0xd4] sm:$0xf]
      %v282 = vld [vmem:[%s213 + $0xd8] sm:$0xf]
      %v283 = vld [vmem:[%s213 + $0xdc] sm:$0xf]
      %v284 = vld [vmem:[%s213 + $0xe0] sm:$0xf]
      %v285 = vld [vmem:[%s213 + $0xe4] sm:$0xf]
      %v286 = vld [vmem:[%s213 + $0xe8] sm:$0xf]
      %v287 = vld [vmem:[%s213 + $0xec] sm:$0xf]
      %v288 = vld [vmem:[%s213 + $0xf0] sm:$0xf]
      %v289 = vld [vmem:[%s213 + $0xf4] sm:$0xf]
      %v290 = vld [vmem:[%s213 + $0xf8] sm:$0xf]
      %v291 = vld [vmem:[%s213 + $0xfc] sm:$0xf]
      %v294 = vunpack.c.l.b16 %v226
      %v295 = vunpack.c.h.b16 %v226
      %v296 = vunpack.c.l.b16 %v227
      %v297 = vunpack.c.h.b16 %v227
      %v298 = vpack.c.b16 %v294, %v294
      %v299 = vpack.c.b16 %v295, %v295
      %v300 = vpack.c.b16 %v296, %v296
      %v301 = vpack.c.b16 %v297, %v297
      %v370 = vunpack.c.l.b16 %v228
      %v371 = vunpack.c.l.b16 %v229
      %v372 = vunpack.c.l.b16 %v230
      %v373 = vunpack.c.l.b16 %v231
      %v374 = vunpack.c.l.b16 %v232
      %v375 = vunpack.c.l.b16 %v233
      %v376 = vunpack.c.l.b16 %v234
      %v377 = vunpack.c.l.b16 %v235
      %v378 = vunpack.c.l.b16 %v236
      %v379 = vunpack.c.l.b16 %v237
      %v380 = vunpack.c.l.b16 %v238
      %v381 = vunpack.c.l.b16 %v239
      %v382 = vunpack.c.l.b16 %v240
      %v383 = vunpack.c.l.b16 %v241
      %v384 = vunpack.c.l.b16 %v242
      %v385 = vunpack.c.l.b16 %v243
      %v386 = vunpack.c.l.b16 %v244
      %v387 = vunpack.c.l.b16 %v245
      %v388 = vunpack.c.l.b16 %v246
      %v389 = vunpack.c.l.b16 %v247
      %v390 = vunpack.c.l.b16 %v248
      %v391 = vunpack.c.l.b16 %v249
      %v392 = vunpack.c.l.b16 %v250
      %v393 = vunpack.c.l.b16 %v251
      %v394 = vunpack.c.l.b16 %v252
      %v395 = vunpack.c.l.b16 %v253
      %v396 = vunpack.c.l.b16 %v254
      %v397 = vunpack.c.l.b16 %v255
      %v398 = vunpack.c.l.b16 %v256
      %v399 = vunpack.c.l.b16 %v257
      %v400 = vunpack.c.l.b16 %v258
      %v401 = vunpack.c.l.b16 %v259
      %v402 = vunpack.c.l.b16 %v260
      %v403 = vunpack.c.l.b16 %v261
      %v404 = vunpack.c.l.b16 %v262
      %v405 = vunpack.c.l.b16 %v263
      %v406 = vunpack.c.l.b16 %v264
      %v407 = vunpack.c.l.b16 %v265
      %v408 = vunpack.c.l.b16 %v266
      %v409 = vunpack.c.l.b16 %v267
      %v410 = vunpack.c.l.b16 %v268
      %v411 = vunpack.c.l.b16 %v269
      %v412 = vunpack.c.l.b16 %v270
      %v413 = vunpack.c.l.b16 %v271
      %v414 = vunpack.c.l.b16 %v272
      %v415 = vunpack.c.l.b16 %v273
      %v416 = vunpack.c.l.b16 %v274
      %v417 = vunpack.c.l.b16 %v275
      %v418 = vunpack.c.l.b16 %v276
      %v419 = vunpack.c.l.b16 %v277
      %v420 = vunpack.c.l.b16 %v278
      %v421 = vunpack.c.l.b16 %v279
      %v422 = vunpack.c.l.b16 %v280
      %v423 = vunpack.c.l.b16 %v281
      %v424 = vunpack.c.l.b16 %v282
      %v425 = vunpack.c.l.b16 %v283
      %v426 = vunpack.c.l.b16 %v284
      %v427 = vunpack.c.l.b16 %v285
      %v428 = vunpack.c.l.b16 %v286
      %v429 = vunpack.c.l.b16 %v287
      %v430 = vunpack.c.l.b16 %v288
      %v431 = vunpack.c.l.b16 %v289
      %v432 = vunpack.c.l.b16 %v290
      %v433 = vunpack.c.l.b16 %v291
      %v434 = vpack.c.b16 %v371, %v370
      %v435 = vpack.c.b16 %v373, %v372
      %v436 = vpack.c.b16 %v375, %v374
      %v437 = vpack.c.b16 %v377, %v376
      %v438 = vpack.c.b16 %v379, %v378
      %v439 = vpack.c.b16 %v381, %v380
      %v440 = vpack.c.b16 %v383, %v382
      %v441 = vpack.c.b16 %v385, %v384
      %v442 = vpack.c.b16 %v387, %v386
      %v443 = vpack.c.b16 %v389, %v388
      %v444 = vpack.c.b16 %v391, %v390
      %v445 = vpack.c.b16 %v393, %v392
      %v446 = vpack.c.b16 %v395, %v394
      %v447 = vpack.c.b16 %v397, %v396
      %v448 = vpack.c.b16 %v399, %v398
      %v449 = vpack.c.b16 %v401, %v400
      %v450 = vpack.c.b16 %v403, %v402
      %v451 = vpack.c.b16 %v405, %v404
      %v452 = vpack.c.b16 %v407, %v406
      %v453 = vpack.c.b16 %v409, %v408
      %v454 = vpack.c.b16 %v411, %v410
      %v455 = vpack.c.b16 %v413, %v412
      %v456 = vpack.c.b16 %v415, %v414
      %v457 = vpack.c.b16 %v417, %v416
      %v458 = vpack.c.b16 %v419, %v418
      %v459 = vpack.c.b16 %v421, %v420
      %v460 = vpack.c.b16 %v423, %v422
      %v461 = vpack.c.b16 %v425, %v424
      %v462 = vpack.c.b16 %v427, %v426
      %v463 = vpack.c.b16 %v429, %v428
      %v464 = vpack.c.b16 %v431, %v430
      %v465 = vpack.c.b16 %v433, %v432
      %498 = vmatprep.subr.bf16.mxu0 0
      %499 = vmatpush1.bf16.msra.mxu0 %v434
      %500 = vmatprep.subr.bf16.mxu0 0
      %501 = vmatpush1.bf16.msra.mxu0 %v435
      %502 = vmatprep.subr.bf16.mxu0 0
      %503 = vmatpush1.bf16.msra.mxu0 %v436
      %504 = vmatprep.subr.bf16.mxu0 0
      %505 = vmatpush1.bf16.msra.mxu0 %v437
      %506 = vmatprep.subr.bf16.mxu0 0
      %507 = vmatpush1.bf16.msra.mxu0 %v438
      %508 = vmatprep.subr.bf16.mxu0 0
      %509 = vmatpush1.bf16.msra.mxu0 %v439
      %510 = vmatprep.subr.bf16.mxu0 0
      %511 = vmatpush1.bf16.msra.mxu0 %v440
      %512 = vmatprep.subr.bf16.mxu0 0
      %513 = vmatpush1.bf16.msra.mxu0 %v441
      %514 = vmatprep.subr.bf16.mxu0 0
      %515 = vmatpush1.bf16.msra.mxu0 %v442
      %516 = vmatprep.subr.bf16.mxu0 0
      %517 = vmatpush1.bf16.msra.mxu0 %v443
      %518 = vmatprep.subr.bf16.mxu0 0
      %519 = vmatpush1.bf16.msra.mxu0 %v444
      %520 = vmatprep.subr.bf16.mxu0 0
      %521 = vmatpush1.bf16.msra.mxu0 %v445
      %522 = vmatprep.subr.bf16.mxu0 0
      %523 = vmatpush1.bf16.msra.mxu0 %v446
      %524 = vmatprep.subr.bf16.mxu0 0
      %525 = vmatpush1.bf16.msra.mxu0 %v447
      %526 = vmatprep.subr.bf16.mxu0 0
      %527 = vmatpush1.bf16.msra.mxu0 %v448
      %528 = vmatprep.subr.bf16.mxu0 0
      %529 = vmatpush1.bf16.msra.mxu0 %v449
      %530 = vmatprep.mubr.bf16.mxu0 %v299
      %531 = vmatmul.mubr.bf16.gmra.mrb[0].mxu0 %v298
      %v532 = vpop.f32.mrb[0].mxu0
      %v533 = vadd.f32 0.0, %v532
      %v534 = vpop.f32.mrb[0].mxu0
      %v535 = vpop.f32.mrb[0].mxu0
      %v536 = vpop.f32.mrb[0].mxu0
      %537 = vdwg.mxu0
      %538 = vmatprep.subr.bf16.mxu0 0
      %539 = vmatpush1.bf16.msra.mxu0 %v450
      %540 = vmatprep.subr.bf16.mxu0 0
      %541 = vmatpush1.bf16.msra.mxu0 %v451
      %542 = vmatprep.subr.bf16.mxu0 0
      %543 = vmatpush1.bf16.msra.mxu0 %v452
      %544 = vmatprep.subr.bf16.mxu0 0
      %545 = vmatpush1.bf16.msra.mxu0 %v453
      %546 = vmatprep.subr.bf16.mxu0 0
      %547 = vmatpush1.bf16.msra.mxu0 %v454
      %548 = vmatprep.subr.bf16.mxu0 0
      %549 = vmatpush1.bf16.msra.mxu0 %v455
      %550 = vmatprep.subr.bf16.mxu0 0
      %551 = vmatpush1.bf16.msra.mxu0 %v456
      %552 = vmatprep.subr.bf16.mxu0 0
      %553 = vmatpush1.bf16.msra.mxu0 %v457
      %554 = vmatprep.subr.bf16.mxu0 0
      %555 = vmatpush1.bf16.msra.mxu0 %v458
      %556 = vmatprep.subr.bf16.mxu0 0
      %557 = vmatpush1.bf16.msra.mxu0 %v459
      %558 = vmatprep.subr.bf16.mxu0 0
      %559 = vmatpush1.bf16.msra.mxu0 %v460
      %560 = vmatprep.subr.bf16.mxu0 0
      %561 = vmatpush1.bf16.msra.mxu0 %v461
      %562 = vmatprep.subr.bf16.mxu0 0
      %563 = vmatpush1.bf16.msra.mxu0 %v462
      %564 = vmatprep.subr.bf16.mxu0 0
      %565 = vmatpush1.bf16.msra.mxu0 %v463
      %566 = vmatprep.subr.bf16.mxu0 0
      %567 = vmatpush1.bf16.msra.mxu0 %v464
      %568 = vmatprep.subr.bf16.mxu0 0
      %569 = vmatpush1.bf16.msra.mxu0 %v465
      %570 = vmatprep.mubr.bf16.mxu0 %v301
      %571 = vmatmul.mubr.bf16.gmra.mrb[0].mxu0 %v300
      %v572 = vpop.f32.mrb[0].mxu0
      %v573 = vadd.f32 %v533, %v572
      %v574 = vpop.f32.mrb[0].mxu0
      %v575 = vpop.f32.mrb[0].mxu0
      %v576 = vpop.f32.mrb[0].mxu0
      %577 = vdwg.mxu0
      %v578 = vadd.f32 %v225, %v573
      %579 = vst [vmem:[#allocation2] sm:$0xff] %v578
      %p580 = scmp.eq.s32.totalorder %s19, 7
      // Predicated region
      $region37: #{patchgan_forward.15} parent=31 // pred_check
        %p581 = pneg %p580
      $region38: #{patchgan_forward.15} parent=31 // pred_check_branch
        %583 = sbr.rel (%p581) target = $region40
      $region39: #{patchgan_forward.15} parent=31 // pred_region
        %v584 = vld [vmem:[#allocation2] sm:$0xff]
        %v585 = vld [vmem:[%s2] sm:$0x1]
        %v587 = vlaneseq
        %v588 = vshrl.u32 %v587, 7
        %v589 = vsub.s32 0, %v588
        %v590 = vrot.slane %v585, %v589
        %v592 = vadd.f32 %v584, %v590
        %593 = vst [vmem:[%s218] sm:$0xff] %v592
      $region40: #{patchgan_forward.15} parent=31 // pred_fallthru
        _
      %p594 = scmp.lt.s32.totalorder %s18, 0
      %s595 = scalar_select %p594, %s18, 0
      %s596 = smul.addr %s595, 8
      %s597 = scalar_lea.vmem %s3, %s596
      // Predicated region
      $region41: #{patchgan_forward.15} parent=31 // pred_check
        %p598 = pneg %p119
      $region42: #{patchgan_forward.15} parent=31 // pred_check_branch
        %600 = sbr.rel (%p598) target = $region44
      $region43: #{patchgan_forward.15} parent=31 // pred_region
        _
      $region44: #{patchgan_forward.15} parent=31 // pred_fallthru
        _
      // Predicated region
      $region45: #{patchgan_forward.15} parent=31 // pred_check
        %p601 = pneg %p119
      $region46: #{patchgan_forward.15} parent=31 // pred_check_branch
        %603 = sbr.rel (%p601) target = $region48
      $region47: #{patchgan_forward.15} parent=31 // pred_region
        %p604 = scmp.lt.s32.totalorder %s18, 0
        %s605 = scalar_select %p604, %s18, 0
        %s606 = smul.addr %s605, 8
        %s607 = scalar_lea.vmem %s3, %s606
      $region48: #{patchgan_forward.15} parent=31 // pred_fallthru
        _
    $region32: #{patchgan_forward.15} parent=5 // pred_fallthru
      _
    %p608 = scmp.le.s32.totalorder 2, %s9
    // Predicated region
    $region49: #{patchgan_forward.15} parent=5 // pred_check
      %p609 = pneg %p608
    $region50: #{patchgan_forward.15} parent=5 // pred_check_branch
      %611 = sbr.rel (%p609) target = $region52
    $region51: #{patchgan_forward.15} parent=5 // pred_region
      %s612 = ssub.s32 %s9, 2
    $region52: #{patchgan_forward.15} parent=5 // pred_fallthru
      _
  $region6: #{patchgan_forward.15} parent=0 // loop_footer
    %s13 = sadd.s32 1, %s9
  $region7: #{patchgan_forward.15} parent=0 // loop_footer_branch
    %8 = sbr.rel target = $region3
  $region8: #{patchgan_forward.15} parent=0 // loop_exit
    _

</llo_original>
